<compile_context>
chip_gen: v6e
topology: v6e:2x2x1
jax: 0.10.0
libtpu: 0.0.40
codegen_flags: <defaults>
</compile_context>

<pallas_src>
import jax
import jax.numpy as jnp
from jax import lax
from jax.experimental import pallas as pl
from jax.experimental.pallas import tpu as pltpu


# --------------------------------------------------------------------------
# Small helpers
# --------------------------------------------------------------------------
def _binary_mat(n_rows, n_cols, fn):
    """0/1 selection matrix built in-kernel from iota comparisons.

    Used for stride-2 column picking, even/odd phase interleave and the concat
    placement.  All-matmul formulation avoids strided slices / minor-dim
    concatenates inside the kernel (weaker lowering guarantees at these odd,
    sub-128-lane sizes)."""
    r = lax.broadcasted_iota(jnp.int32, (n_rows, n_cols), 0)
    c = lax.broadcasted_iota(jnp.int32, (n_rows, n_cols), 1)
    return fn(r, c).astype(jnp.float32)


def _weight_spec(arr):
    zeros = (0,) * arr.ndim
    return pl.BlockSpec(arr.shape, lambda b, _z=zeros: _z)


def _batched_spec(shape):
    tail = (0,) * (len(shape) - 1)
    return pl.BlockSpec((1,) + tuple(shape[1:]), lambda b, _t=tail: (b,) + _t)


def _compiler_params():
    return pltpu.CompilerParams(dimension_semantics=("parallel",),
                                vmem_limit_bytes=32 * 1024 * 1024)


# ---- weight re-layouts (XLA side, weights only: negligible, one-time) ------
def _flat_conv_w(w):
    """Conv1d weight (Cout, Cin, K) -> (Cout, K*Cin) with tap-major columns."""
    co, ci, k = w.shape
    return jnp.transpose(w, (0, 2, 1)).reshape(co, k * ci)


def _deconv_s2_w(w_t):
    """ConvTranspose1d(k=7, s=2, p=3, op=1) weight (Cin, Cout, 7) ->
    even/odd phase matmul weights (Cout, 3*Cin) / (Cout, 4*Cin)."""
    wt = jnp.transpose(w_t, (2, 1, 0))                  # (7, Cout, Cin); wt[k] = W_k^T
    w_even = jnp.concatenate([wt[5], wt[3], wt[1]], axis=1)
    w_odd = jnp.concatenate([wt[6], wt[4], wt[2], wt[0]], axis=1)
    return w_even, w_odd


def _deconv_s1_w(w_t):
    """ConvTranspose1d(k=7, s=1, p=3) weight (Cin, Cout, 7) -> (Cout, 7*Cin)
    with flipped taps."""
    wt = jnp.transpose(w_t, (2, 1, 0))
    return jnp.concatenate([wt[6 - s] for s in range(7)], axis=1)


# --------------------------------------------------------------------------
# Kernel 1: encoder (conv0, conv1) + MTCE front end, fully fused
# --------------------------------------------------------------------------
def _make_encoder_frontend_kernel(T, l0, l1):
    l_tot = l0 + l1

    def kernel(x_ref, w0_ref, b0_ref, w1_ref, b1_ref,
               wb1_ref, bb1_ref, wb2_ref, bb2_ref,
               x1_ref, xs_ref, sc_ref,
               xp0_ref, blk0_ref, xp1_ref, blk1_ref):
        f32 = jnp.float32
        cin0 = xp0_ref.shape[0]
        cin1 = xp1_ref.shape[0]

        # Constant selection matrices (cheap VPU work, once per grid step).
        # TODO(synk): at production lengths replace these O(L^2) selection
        # matmuls with strided `ref[pl.ds(start, n, 2)]` reads to avoid the
        # quadratic term; at these sizes the matmul form is free and robust.
        d0 = _binary_mat(T, l0, lambda r, c: r == 2 * c)         # stride-2 pick
        d1 = _binary_mat(l0, l1, lambda r, c: r == 2 * c)
        p1 = _binary_mat(l0, l_tot, lambda r, c: c == r)         # concat placement
        p2 = _binary_mat(l1, l_tot, lambda r, c: c == r + l0)

        def conv7(xpad_ref, blk_ref, x, wf_ref, b_ref, d_mat, lin, cin):
            # Conv1d(k=7, pad=3, stride=2) + ReLU as ONE wide-K matmul:
            # (Cout, 7*Cin) @ (7*Cin, lin) tap block, stride-2 folded into a
            # 0/1 selection matmul (commutes with bias + ReLU column-wise).
            xpad_ref[...] = jnp.zeros(xpad_ref.shape, f32)
            xpad_ref[:, 3:3 + lin] = x
            for t in range(7):
                blk_ref[t * cin:(t + 1) * cin, :] = xpad_ref[:, t:t + lin]
            y = jnp.dot(wf_ref[...], blk_ref[...], preferred_element_type=f32)
            y = jnp.dot(y, d_mat, preferred_element_type=f32) + b_ref[...]
            return jnp.maximum(y, 0.0)

        x0 = conv7(xp0_ref, blk0_ref, x_ref[0], w0_ref, b0_ref, d0, T, cin0)   # (32, l0)
        x1 = conv7(xp1_ref, blk1_ref, x0, w1_ref, b1_ref, d1, l0, cin1)        # (16, l1)
        x1_ref[0] = x1

        # MTCE front end: branch 1x1 convs + ReLU, concat (in registers),
        # Gram softmax (dim=2), column scores (sum over dim=1).
        h1 = jnp.maximum(jnp.dot(wb1_ref[...], x0, preferred_element_type=f32)
                         + bb1_ref[...], 0.0)                                  # (16, l0)
        h2 = jnp.maximum(jnp.dot(wb2_ref[...], x1, preferred_element_type=f32)
                         + bb2_ref[...], 0.0)                                  # (16, l1)
        xs_b = (jnp.dot(h1, p1, preferred_element_type=f32)
                + jnp.dot(h2, p2, preferred_element_type=f32))                 # (16, L)
        xs_ref[0] = xs_b
        s = lax.dot_general(xs_b, xs_b, (((0,), (0,)), ((), ())),
                            preferred_element_type=f32)                        # (L, L)
        s = s - jnp.max(s, axis=-1, keepdims=True)
        e = jnp.exp(s)
        p = e / jnp.sum(e, axis=-1, keepdims=True)
        sc_ref[0] = jnp.sum(p, axis=0, keepdims=True)                          # (1, L)

    return kernel


def encoder_frontend(xt, params):
    batch, cin, T = xt.shape
    l0 = (T - 1) // 2 + 1
    l1 = (l0 - 1) // 2 + 1
    l_tot = l0 + l1
    w0f = _flat_conv_w(params["w0"])
    w1f = _flat_conv_w(params["w1"])
    c0, c1 = w0f.shape[0], w1f.shape[0]
    b0 = params["b0"].reshape(c0, 1)
    b1 = params["b1"].reshape(c1, 1)
    wb1 = params["br1_w"][:, :, 0]
    bb1 = params["br1_b"].reshape(-1, 1)
    wb2 = params["br2_w"][:, :, 0]
    bb2 = params["br2_b"].reshape(-1, 1)
    cm = wb1.shape[0]
    ins = (xt, w0f, b0, w1f, b1, wb1, bb1, wb2, bb2)

    x1, xs, sc = pl.pallas_call(
        _make_encoder_frontend_kernel(T, l0, l1),
        grid=(batch,),
        in_specs=[_batched_spec(xt.shape)] + [_weight_spec(a) for a in ins[1:]],
        out_specs=(_batched_spec((batch, c1, l1)),
                   _batched_spec((batch, cm, l_tot)),
                   _batched_spec((batch, 1, l_tot))),
        out_shape=(jax.ShapeDtypeStruct((batch, c1, l1), jnp.float32),
                   jax.ShapeDtypeStruct((batch, cm, l_tot), jnp.float32),
                   jax.ShapeDtypeStruct((batch, 1, l_tot), jnp.float32)),
        scratch_shapes=[pltpu.VMEM((cin, T + 6), jnp.float32),
                        pltpu.VMEM((7 * cin, T), jnp.float32),
                        pltpu.VMEM((c0, l0 + 6), jnp.float32),
                        pltpu.VMEM((7 * c0, l0), jnp.float32)],
        compiler_params=_compiler_params(),
    )(*ins)
    return x1, xs, sc[:, 0, :]


# --------------------------------------------------------------------------
# Kernel 2: MTCE reconstruct + residual + fused 3-layer decoder (both paths)
# --------------------------------------------------------------------------
def _make_reconstruct_decoder_kernel(l0, l1):
    L1, L2, L3 = l1, 2 * l1, 4 * l1

    def kernel(x1_ref, xs_ref, mu_ref, wout_ref, bout_ref,
               w0e_ref, w0o_ref, b0_ref,
               w1e_ref, w1o_ref, b1_ref,
               w2_ref, b2_ref,
               x2_ref, x2r_ref,
               dp0_ref, dblk0_ref, dp1_ref, dblk1_ref, dp2_ref, dblk2_ref):
        f32 = jnp.float32
        # phase interleave:  y[:, 2j] = even[:, j], y[:, 2j+1] = odd[:, j]
        e0 = _binary_mat(L1, 2 * L1, lambda r, c: c == 2 * r)
        o0 = _binary_mat(L1, 2 * L1, lambda r, c: c == 2 * r + 1)
        e1 = _binary_mat(L2, 2 * L2, lambda r, c: c == 2 * r)
        o1 = _binary_mat(L2, 2 * L2, lambda r, c: c == 2 * r + 1)

        # ---- MTCE.reconstruct + out_trans + residual --------------------
        x_rr = xs_ref[0][:, l0:]                                   # (16, l1)
        mu = mu_ref[0]                                             # (16, K)
        z = lax.dot_general(x_rr, mu, (((0,), (0,)), ((), ())),
                            preferred_element_type=f32)            # (l1, K)
        z = z - jnp.max(z, axis=-1, keepdims=True)
        z = jnp.exp(z)
        z = z / jnp.sum(z, axis=-1, keepdims=True)                 # softmax dim=2
        z = z / (1e-6 + jnp.sum(z, axis=0, keepdims=True))         # / sum dim=1
        zd = lax.dot_general(mu, z, (((1,), (1,)), ((), ())),
                             preferred_element_type=f32)           # (16, l1)
        x1_r = jnp.maximum(jnp.dot(wout_ref[...], zd, preferred_element_type=f32)
                           + bout_ref[...], 0.0) + x_rr            # (16, l1)

        # ---- decoder layers (shared weights; Dropout = identity at eval) --
        def deconv_s2(x, pad_ref, blk_ref, we_ref, wo_ref, b_ref, lin, e_mat, o_mat):
            # ConvTranspose1d(k=7, s=2, p=3, op=1) + ReLU via even/odd output
            # phases (no zero-dilated buffer), each phase one wide-K matmul,
            # interleave done with constant 0/1 matmuls.
            cin = pad_ref.shape[0]
            pad_ref[...] = jnp.zeros(pad_ref.shape, f32)
            pad_ref[:, 1:1 + lin] = x                              # pad (1, 2)
            for s in range(4):
                blk_ref[s * cin:(s + 1) * cin, :] = pad_ref[:, s:s + lin]
            ev = jnp.dot(we_ref[...], blk_ref[0:3 * cin, :], preferred_element_type=f32)
            od = jnp.dot(wo_ref[...], blk_ref[...], preferred_element_type=f32)
            ev = jnp.maximum(ev + b_ref[...], 0.0)
            od = jnp.maximum(od + b_ref[...], 0.0)
            return (jnp.dot(ev, e_mat, preferred_element_type=f32)
                    + jnp.dot(od, o_mat, preferred_element_type=f32))

        def deconv_s1(x, pad_ref, blk_ref, w_ref, b_ref, lin):
            # ConvTranspose1d(k=7, s=1, p=3), no activation.
            cin = pad_ref.shape[0]
            pad_ref[...] = jnp.zeros(pad_ref.shape, f32)
            pad_ref[:, 3:3 + lin] = x                              # pad (3, 3)
            for s in range(7):
                blk_ref[s * cin:(s + 1) * cin, :] = pad_ref[:, s:s + lin]
            return jnp.dot(w_ref[...], blk_ref[...], preferred_element_type=f32) + b_ref[...]

        def decode(z0):
            y = deconv_s2(z0, dp0_ref, dblk0_ref, w0e_ref, w0o_ref, b0_ref, L1, e0, o0)
            y = deconv_s2(y, dp1_ref, dblk1_ref, w1e_ref, w1o_ref, b1_ref, L2, e1, o1)
            return deconv_s1(y, dp2_ref, dblk2_ref, w2_ref, b2_ref, L3)

        x2_ref[0] = decode(x1_ref[0])
        x2r_ref[0] = decode(x1_r)

    return kernel


def reconstruct_decoder(x1, xs, basis, params, l0):
    batch, c1, l1 = x1.shape
    L3 = 4 * l1
    w0e, w0o = _deconv_s2_w(params["ct0_w"])
    w1e, w1o = _deconv_s2_w(params["ct1_w"])
    w2f = _deconv_s1_w(params["ct2_w"])
    c_d0 = params["ct0_w"].shape[1]
    c_d1 = params["ct1_w"].shape[1]
    c_out = params["ct2_w"].shape[1]
    wout = params["out_w"][:, :, 0]
    bout = params["out_b"].reshape(-1, 1)
    b0 = params["ct0_b"].reshape(-1, 1)
    b1 = params["ct1_b"].reshape(-1, 1)
    b2 = params["ct2_b"].reshape(-1, 1)
    ins = (x1, xs, basis, wout, bout, w0e, w0o, b0, w1e, w1o, b1, w2f, b2)

    x2, x2r = pl.pallas_call(
        _make_reconstruct_decoder_kernel(l0, l1),
        grid=(batch,),
        in_specs=[_batched_spec(x1.shape), _batched_spec(xs.shape),
                  _batched_spec(basis.shape)] + [_weight_spec(a) for a in ins[3:]],
        out_specs=(_batched_spec((batch, c_out, L3)),
                   _batched_spec((batch, c_out, L3))),
        out_shape=(jax.ShapeDtypeStruct((batch, c_out, L3), jnp.float32),
                   jax.ShapeDtypeStruct((batch, c_out, L3), jnp.float32)),
        scratch_shapes=[pltpu.VMEM((c1, l1 + 3), jnp.float32),
                        pltpu.VMEM((4 * c1, l1), jnp.float32),
                        pltpu.VMEM((c_d0, 2 * l1 + 3), jnp.float32),
                        pltpu.VMEM((4 * c_d0, 2 * l1), jnp.float32),
                        pltpu.VMEM((c_d1, L3 + 6), jnp.float32),
                        pltpu.VMEM((7 * c_d1, L3), jnp.float32)],
        compiler_params=_compiler_params(),
    )(*ins)
    return x2, x2r


# --------------------------------------------------------------------------
# Model forward (2 pallas_calls + tiny top-K/gather glue)
# --------------------------------------------------------------------------
def convae_mtce_forward(params, x, ratio=0.5):
    xt = jnp.transpose(x, (0, 2, 1))                   # (B, C, T), like torch
    x1, xs, scores = encoder_frontend(xt, params)
    batch, cm, l_tot = xs.shape
    l0 = l_tot - x1.shape[2]
    k_top = max(1, int(ratio * l_tot))                 # torch: int(ratio * L)
    # TODO(synk): top-K + column gather stays in plain-JAX glue; lax.top_k
    # tie-break order is not guaranteed to match torch.sort on exact ties.
    _, tidxs = lax.top_k(scores, k_top)
    basis = jnp.take_along_axis(
        xs, jnp.broadcast_to(tidxs[:, None, :], (batch, cm, k_top)), axis=2)
    x2, x2_r = reconstruct_decoder(x1, xs, basis, params, l0)
    return jnp.transpose(x2, (0, 2, 1)), jnp.transpose(x2_r, (0, 2, 1))


# --------------------------------------------------------------------------
# Deterministic parameter init (shapes follow the PyTorch __init__)
# --------------------------------------------------------------------------
def init_params(key):
    ks = jax.random.split(key, 16)
    w = lambda k, s: 0.1 * jax.random.normal(k, s, jnp.float32)
    return dict(
        # encoder
        w0=w(ks[0], (32, 8, 7)), b0=w(ks[1], (32,)),
        w1=w(ks[2], (16, 32, 7)), b1=w(ks[3], (16,)),
        # decoder (ConvTranspose1d weights are (Cin, Cout, K))
        ct0_w=w(ks[4], (16, 16, 7)), ct0_b=w(ks[5], (16,)),
        ct1_w=w(ks[6], (16, 32, 7)), ct1_b=w(ks[7], (32,)),
        ct2_w=w(ks[8], (32, 8, 7)), ct2_b=w(ks[9], (8,)),
        # MTCE
        br1_w=w(ks[10], (16, 32, 1)), br1_b=w(ks[11], (16,)),
        br2_w=w(ks[12], (16, 16, 1)), br2_b=w(ks[13], (16,)),
        out_w=w(ks[14], (16, 16, 1)), out_b=w(ks[15], (16,)),
    )


if __name__ == "__main__":
    key = jax.random.PRNGKey(0)
    kp, kx = jax.random.split(key)
    params = init_params(kp)

    B, T, C = 2, 16, 8
    x = jax.random.normal(kx, (B, T, C), dtype=jnp.float32)

    fwd = jax.jit(convae_mtce_forward)
    x2, x2_r = fwd(params, x)
    jax.block_until_ready((x2, x2_r))
    assert x2.shape == (B, T, C) and x2_r.shape == (B, T, C)
    assert bool(jnp.all(jnp.isfinite(x2))) and bool(jnp.all(jnp.isfinite(x2_r)))

    # ---- numerical check vs. a plain-XLA reference of the full forward ----
    def ref_conv(xn, w, b, stride, pad):
        y = lax.conv_general_dilated(xn, w, (stride,), [(pad, pad)],
                                     dimension_numbers=("NCH", "OIH", "NCH"),
                                     precision=lax.Precision.HIGHEST)
        return y + b[None, :, None]

    def ref_deconv(xn, w_t, b, stride, pad, opad):
        k = w_t.shape[2]
        w = jnp.flip(jnp.transpose(w_t, (1, 0, 2)), axis=2)
        y = lax.conv_general_dilated(xn, w, (1,),
                                     [(k - 1 - pad, k - 1 - pad + opad)],
                                     lhs_dilation=(stride,),
                                     dimension_numbers=("NCH", "OIH", "NCH"),
                                     precision=lax.Precision.HIGHEST)
        return y + b[None, :, None]

    def ref_forward(params, x, ratio=0.5):
        xt = jnp.transpose(x, (0, 2, 1))
        x0 = jnp.maximum(ref_conv(xt, params["w0"], params["b0"], 2, 3), 0.0)
        x1 = jnp.maximum(ref_conv(x0, params["w1"], params["b1"], 2, 3), 0.0)
        h1 = jnp.maximum(jnp.einsum("oc,bcl->bol", params["br1_w"][:, :, 0], x0)
                         + params["br1_b"][None, :, None], 0.0)
        h2 = jnp.maximum(jnp.einsum("oc,bcl->bol", params["br2_w"][:, :, 0], x1)
                         + params["br2_b"][None, :, None], 0.0)
        xs = jnp.concatenate([h1, h2], axis=2)
        x_rr = h2
        sim = jax.nn.softmax(jnp.einsum("bcl,bcm->blm", xs, xs), axis=2)
        scores = jnp.sum(sim, axis=1)
        k_top = max(1, int(ratio * xs.shape[2]))
        _, tid = lax.top_k(scores, k_top)
        basis = jnp.take_along_axis(
            xs, jnp.broadcast_to(tid[:, None, :],
                                 (xs.shape[0], xs.shape[1], k_top)), axis=2)
        z = jax.nn.softmax(jnp.einsum("bcl,bck->blk", x_rr, basis), axis=2)
        z = z / (1e-6 + jnp.sum(z, axis=1, keepdims=True))
        zd = jnp.einsum("bck,blk->bcl", basis, z)
        x1_r = jnp.maximum(jnp.einsum("oc,bcl->bol", params["out_w"][:, :, 0], zd)
                           + params["out_b"][None, :, None], 0.0) + x_rr

        def dec(z0):
            y = jnp.maximum(ref_deconv(z0, params["ct0_w"], params["ct0_b"], 2, 3, 1), 0.0)
            y = jnp.maximum(ref_deconv(y, params["ct1_w"], params["ct1_b"], 2, 3, 1), 0.0)
            return ref_deconv(y, params["ct2_w"], params["ct2_b"], 1, 3, 0)

        return jnp.transpose(dec(x1), (0, 2, 1)), jnp.transpose(dec(x1_r), (0, 2, 1))

    r2, r2_r = ref_forward(params, x)

    def close(a, b):
        return bool(jnp.allclose(a, b, atol=2e-2, rtol=2e-2))

    assert close(x2, r2), "x2 mismatch vs XLA reference"
    assert close(x2_r, r2_r), "x2_r mismatch vs XLA reference"

    print("KERNEL_OK")
</pallas_src>

<mosaic_0001>
module attributes {stable_mosaic.version = 11 : i64} {
  func.func @kernel(%arg0: i32, %arg1: memref<1x8x16xf32, #tpu.memory_space<vmem>>, %arg2: memref<32x56xf32, #tpu.memory_space<vmem>>, %arg3: memref<32x1xf32, #tpu.memory_space<vmem>>, %arg4: memref<16x224xf32, #tpu.memory_space<vmem>>, %arg5: memref<16x1xf32, #tpu.memory_space<vmem>>, %arg6: memref<16x32xf32, #tpu.memory_space<vmem>>, %arg7: memref<16x1xf32, #tpu.memory_space<vmem>>, %arg8: memref<16x16xf32, #tpu.memory_space<vmem>>, %arg9: memref<16x1xf32, #tpu.memory_space<vmem>>, %arg10: memref<1x16x4xf32, #tpu.memory_space<vmem>>, %arg11: memref<1x16x12xf32, #tpu.memory_space<vmem>>, %arg12: memref<1x1x12xf32, #tpu.memory_space<vmem>>, %arg13: memref<8x22xf32, #tpu.memory_space<vmem>>, %arg14: memref<56x16xf32, #tpu.memory_space<vmem>>, %arg15: memref<32x14xf32, #tpu.memory_space<vmem>>, %arg16: memref<224x8xf32, #tpu.memory_space<vmem>>) attributes {dimension_semantics = [#tpu.dimension_semantics<parallel>], iteration_bounds = array<i64: 2>, scalar_prefetch = 0 : i64, scratch_operands = 4 : i64, tpu.core_type = #tpu.core_type<tc>, window_params = [{transform_indices = @transform_0, window_bounds = array<i64: 1, 8, 16>}, {pipeline_mode = #tpu.pipeline_mode<synchronous>, transform_indices = @transform_1, window_bounds = array<i64: 32, 56>}, {pipeline_mode = #tpu.pipeline_mode<synchronous>, transform_indices = @transform_2, window_bounds = array<i64: 32, 1>}, {pipeline_mode = #tpu.pipeline_mode<synchronous>, transform_indices = @transform_3, window_bounds = array<i64: 16, 224>}, {pipeline_mode = #tpu.pipeline_mode<synchronous>, transform_indices = @transform_4, window_bounds = array<i64: 16, 1>}, {pipeline_mode = #tpu.pipeline_mode<synchronous>, transform_indices = @transform_5, window_bounds = array<i64: 16, 32>}, {pipeline_mode = #tpu.pipeline_mode<synchronous>, transform_indices = @transform_6, window_bounds = array<i64: 16, 1>}, {pipeline_mode = #tpu.pipeline_mode<synchronous>, transform_indices = @transform_7, window_bounds = array<i64: 16, 16>}, {pipeline_mode = #tpu.pipeline_mode<synchronous>, transform_indices = @transform_8, window_bounds = array<i64: 16, 1>}, {transform_indices = @transform_9, window_bounds = array<i64: 1, 16, 4>}, {transform_indices = @transform_10, window_bounds = array<i64: 1, 16, 12>}, {transform_indices = @transform_11, window_bounds = array<i64: 1, 1, 12>}]} {
    %0 = tpu.iota {dimensions = array<i32: 0>} : vector<16x8xi32>
    %1 = tpu.iota {dimensions = array<i32: 1>} : vector<16x8xi32>
    %c2_i32 = arith.constant 2 : i32
    %2 = vector.broadcast %c2_i32 : i32 to vector<16x8xi32>
    %3 = arith.muli %2, %1 : vector<16x8xi32>
    %4 = arith.cmpi eq, %0, %3 : vector<16x8xi32>
    %5 = arith.extui %4 : vector<16x8xi1> to vector<16x8xi32>
    %6 = arith.sitofp %5 : vector<16x8xi32> to vector<16x8xf32>
    %7 = tpu.iota {dimensions = array<i32: 0>} : vector<8x4xi32>
    %8 = tpu.iota {dimensions = array<i32: 1>} : vector<8x4xi32>
    %c2_i32_0 = arith.constant 2 : i32
    %9 = vector.broadcast %c2_i32_0 : i32 to vector<8x4xi32>
    %10 = arith.muli %9, %8 : vector<8x4xi32>
    %11 = arith.cmpi eq, %7, %10 : vector<8x4xi32>
    %12 = arith.extui %11 : vector<8x4xi1> to vector<8x4xi32>
    %13 = arith.sitofp %12 : vector<8x4xi32> to vector<8x4xf32>
    %14 = tpu.iota {dimensions = array<i32: 0>} : vector<8x12xi32>
    %15 = tpu.iota {dimensions = array<i32: 1>} : vector<8x12xi32>
    %16 = arith.cmpi eq, %15, %14 : vector<8x12xi32>
    %17 = arith.extui %16 : vector<8x12xi1> to vector<8x12xi32>
    %18 = arith.sitofp %17 : vector<8x12xi32> to vector<8x12xf32>
    %19 = tpu.iota {dimensions = array<i32: 0>} : vector<4x12xi32>
    %20 = tpu.iota {dimensions = array<i32: 1>} : vector<4x12xi32>
    %c8_i32 = arith.constant 8 : i32
    %21 = vector.broadcast %c8_i32 : i32 to vector<4x12xi32>
    %22 = arith.addi %19, %21 : vector<4x12xi32>
    %23 = arith.cmpi eq, %20, %22 : vector<4x12xi32>
    %24 = arith.extui %23 : vector<4x12xi1> to vector<4x12xi32>
    %25 = arith.sitofp %24 : vector<4x12xi32> to vector<4x12xf32>
    %c0 = arith.constant 0 : index
    %c0_1 = arith.constant 0 : index
    %c0_2 = arith.constant 0 : index
    %26 = vector.load %arg1[%c0, %c0_1, %c0_2] : memref<1x8x16xf32, #tpu.memory_space<vmem>>, vector<1x8x16xf32>
    %27 = vector.shape_cast %26 : vector<1x8x16xf32> to vector<8x16xf32>
    %cst = arith.constant 0.000000e+00 : f32
    %28 = vector.broadcast %cst : f32 to vector<8x22xf32>
    %c0_3 = arith.constant 0 : index
    %c0_4 = arith.constant 0 : index
    %29 = vector.load %arg13[%c0_3, %c0_4] : memref<8x22xf32, #tpu.memory_space<vmem>>, vector<8x22xf32>
    tpu.vector_store %arg13[%c0_3, %c0_4], %28 {strides = array<i32>} : memref<8x22xf32, #tpu.memory_space<vmem>>, vector<8x22xf32>,
    %c0_5 = arith.constant 0 : index
    %c3 = arith.constant 3 : index
    %30 = vector.load %arg13[%c0_5, %c3] : memref<8x22xf32, #tpu.memory_space<vmem>>, vector<8x16xf32>
    tpu.vector_store %arg13[%c0_5, %c3], %27 {strides = array<i32>} : memref<8x22xf32, #tpu.memory_space<vmem>>, vector<8x16xf32>,
    %c0_6 = arith.constant 0 : index
    %c0_7 = arith.constant 0 : index
    %31 = vector.load %arg13[%c0_6, %c0_7] : memref<8x22xf32, #tpu.memory_space<vmem>>, vector<8x16xf32>
    %c0_8 = arith.constant 0 : index
    %c0_9 = arith.constant 0 : index
    %32 = vector.load %arg14[%c0_8, %c0_9] : memref<56x16xf32, #tpu.memory_space<vmem>>, vector<8x16xf32>
    tpu.vector_store %arg14[%c0_8, %c0_9], %31 {strides = array<i32>} : memref<56x16xf32, #tpu.memory_space<vmem>>, vector<8x16xf32>,
    %c0_10 = arith.constant 0 : index
    %c1 = arith.constant 1 : index
    %33 = vector.load %arg13[%c0_10, %c1] : memref<8x22xf32, #tpu.memory_space<vmem>>, vector<8x16xf32>
    %c8 = arith.constant 8 : index
    %c0_11 = arith.constant 0 : index
    %34 = vector.load %arg14[%c8, %c0_11] : memref<56x16xf32, #tpu.memory_space<vmem>>, vector<8x16xf32>
    tpu.vector_store %arg14[%c8, %c0_11], %33 {strides = array<i32>} : memref<56x16xf32, #tpu.memory_space<vmem>>, vector<8x16xf32>,
    %c0_12 = arith.constant 0 : index
    %c2 = arith.constant 2 : index
    %35 = vector.load %arg13[%c0_12, %c2] : memref<8x22xf32, #tpu.memory_space<vmem>>, vector<8x16xf32>
    %c16 = arith.constant 16 : index
    %c0_13 = arith.constant 0 : index
    %36 = vector.load %arg14[%c16, %c0_13] : memref<56x16xf32, #tpu.memory_space<vmem>>, vector<8x16xf32>
    tpu.vector_store %arg14[%c16, %c0_13], %35 {strides = array<i32>} : memref<56x16xf32, #tpu.memory_space<vmem>>, vector<8x16xf32>,
    %c0_14 = arith.constant 0 : index
    %c3_15 = arith.constant 3 : index
    %37 = vector.load %arg13[%c0_14, %c3_15] : memref<8x22xf32, #tpu.memory_space<vmem>>, vector<8x16xf32>
    %c24 = arith.constant 24 : index
    %c0_16 = arith.constant 0 : index
    %38 = vector.load %arg14[%c24, %c0_16] : memref<56x16xf32, #tpu.memory_space<vmem>>, vector<8x16xf32>
    tpu.vector_store %arg14[%c24, %c0_16], %37 {strides = array<i32>} : memref<56x16xf32, #tpu.memory_space<vmem>>, vector<8x16xf32>,
    %c0_17 = arith.constant 0 : index
    %c4 = arith.constant 4 : index
    %39 = vector.load %arg13[%c0_17, %c4] : memref<8x22xf32, #tpu.memory_space<vmem>>, vector<8x16xf32>
    %c32 = arith.constant 32 : index
    %c0_18 = arith.constant 0 : index
    %40 = vector.load %arg14[%c32, %c0_18] : memref<56x16xf32, #tpu.memory_space<vmem>>, vector<8x16xf32>
    tpu.vector_store %arg14[%c32, %c0_18], %39 {strides = array<i32>} : memref<56x16xf32, #tpu.memory_space<vmem>>, vector<8x16xf32>,
    %c0_19 = arith.constant 0 : index
    %c5 = arith.constant 5 : index
    %41 = vector.load %arg13[%c0_19, %c5] : memref<8x22xf32, #tpu.memory_space<vmem>>, vector<8x16xf32>
    %c40 = arith.constant 40 : index
    %c0_20 = arith.constant 0 : index
    %42 = vector.load %arg14[%c40, %c0_20] : memref<56x16xf32, #tpu.memory_space<vmem>>, vector<8x16xf32>
    tpu.vector_store %arg14[%c40, %c0_20], %41 {strides = array<i32>} : memref<56x16xf32, #tpu.memory_space<vmem>>, vector<8x16xf32>,
    %c0_21 = arith.constant 0 : index
    %c6 = arith.constant 6 : index
    %43 = vector.load %arg13[%c0_21, %c6] : memref<8x22xf32, #tpu.memory_space<vmem>>, vector<8x16xf32>
    %c48 = arith.constant 48 : index
    %c0_22 = arith.constant 0 : index
    %44 = vector.load %arg14[%c48, %c0_22] : memref<56x16xf32, #tpu.memory_space<vmem>>, vector<8x16xf32>
    tpu.vector_store %arg14[%c48, %c0_22], %43 {strides = array<i32>} : memref<56x16xf32, #tpu.memory_space<vmem>>, vector<8x16xf32>,
    %c0_23 = arith.constant 0 : index
    %c0_24 = arith.constant 0 : index
    %45 = vector.load %arg2[%c0_23, %c0_24] : memref<32x56xf32, #tpu.memory_space<vmem>>, vector<32x56xf32>
    %c0_25 = arith.constant 0 : index
    %c0_26 = arith.constant 0 : index
    %46 = vector.load %arg14[%c0_25, %c0_26] : memref<56x16xf32, #tpu.memory_space<vmem>>, vector<56x16xf32>
    %cst_27 = arith.constant dense<0.000000e+00> : vector<32x16xf32>
    %47 = tpu.matmul %45, %46, %cst_27 {dimension_numbers = #tpu.dot_dimension_numbers<[1], [0], [0], [1], [0, 0, 1, 1], [], []>} : vector<32x56xf32>, vector<56x16xf32>, vector<32x16xf32> -> vector<32x16xf32>
    %cst_28 = arith.constant dense<0.000000e+00> : vector<32x8xf32>
    %48 = tpu.matmul %47, %6, %cst_28 {dimension_numbers = #tpu.dot_dimension_numbers<[1], [0], [0], [1], [0, 0, 1, 1], [], []>} : vector<32x16xf32>, vector<16x8xf32>, vector<32x8xf32> -> vector<32x8xf32>
    %c0_29 = arith.constant 0 : index
    %c0_30 = arith.constant 0 : index
    %49 = vector.load %arg3[%c0_29, %c0_30] : memref<32x1xf32, #tpu.memory_space<vmem>>, vector<32x1xf32>
    %50 = vector.broadcast %49 : vector<32x1xf32> to vector<32x8xf32>
    %51 = arith.addf %48, %50 : vector<32x8xf32>
    %cst_31 = arith.constant 0.000000e+00 : f32
    %52 = vector.broadcast %cst_31 : f32 to vector<32x8xf32>
    %53 = arith.maximumf %51, %52 : vector<32x8xf32>
    %cst_32 = arith.constant 0.000000e+00 : f32
    %54 = vector.broadcast %cst_32 : f32 to vector<32x14xf32>
    %c0_33 = arith.constant 0 : index
    %c0_34 = arith.constant 0 : index
    %55 = vector.load %arg15[%c0_33, %c0_34] : memref<32x14xf32, #tpu.memory_space<vmem>>, vector<32x14xf32>
    tpu.vector_store %arg15[%c0_33, %c0_34], %54 {strides = array<i32>} : memref<32x14xf32, #tpu.memory_space<vmem>>, vector<32x14xf32>,
    %c0_35 = arith.constant 0 : index
    %c3_36 = arith.constant 3 : index
    %56 = vector.load %arg15[%c0_35, %c3_36] : memref<32x14xf32, #tpu.memory_space<vmem>>, vector<32x8xf32>
    tpu.vector_store %arg15[%c0_35, %c3_36], %53 {strides = array<i32>} : memref<32x14xf32, #tpu.memory_space<vmem>>, vector<32x8xf32>,
    %c0_37 = arith.constant 0 : index
    %c0_38 = arith.constant 0 : index
    %57 = vector.load %arg15[%c0_37, %c0_38] : memref<32x14xf32, #tpu.memory_space<vmem>>, vector<32x8xf32>
    %c0_39 = arith.constant 0 : index
    %c0_40 = arith.constant 0 : index
    %58 = vector.load %arg16[%c0_39, %c0_40] : memref<224x8xf32, #tpu.memory_space<vmem>>, vector<32x8xf32>
    tpu.vector_store %arg16[%c0_39, %c0_40], %57 {strides = array<i32>} : memref<224x8xf32, #tpu.memory_space<vmem>>, vector<32x8xf32>,
    %c0_41 = arith.constant 0 : index
    %c1_42 = arith.constant 1 : index
    %59 = vector.load %arg15[%c0_41, %c1_42] : memref<32x14xf32, #tpu.memory_space<vmem>>, vector<32x8xf32>
    %c32_43 = arith.constant 32 : index
    %c0_44 = arith.constant 0 : index
    %60 = vector.load %arg16[%c32_43, %c0_44] : memref<224x8xf32, #tpu.memory_space<vmem>>, vector<32x8xf32>
    tpu.vector_store %arg16[%c32_43, %c0_44], %59 {strides = array<i32>} : memref<224x8xf32, #tpu.memory_space<vmem>>, vector<32x8xf32>,
    %c0_45 = arith.constant 0 : index
    %c2_46 = arith.constant 2 : index
    %61 = vector.load %arg15[%c0_45, %c2_46] : memref<32x14xf32, #tpu.memory_space<vmem>>, vector<32x8xf32>
    %c64 = arith.constant 64 : index
    %c0_47 = arith.constant 0 : index
    %62 = vector.load %arg16[%c64, %c0_47] : memref<224x8xf32, #tpu.memory_space<vmem>>, vector<32x8xf32>
    tpu.vector_store %arg16[%c64, %c0_47], %61 {strides = array<i32>} : memref<224x8xf32, #tpu.memory_space<vmem>>, vector<32x8xf32>,
    %c0_48 = arith.constant 0 : index
    %c3_49 = arith.constant 3 : index
    %63 = vector.load %arg15[%c0_48, %c3_49] : memref<32x14xf32, #tpu.memory_space<vmem>>, vector<32x8xf32>
    %c96 = arith.constant 96 : index
    %c0_50 = arith.constant 0 : index
    %64 = vector.load %arg16[%c96, %c0_50] : memref<224x8xf32, #tpu.memory_space<vmem>>, vector<32x8xf32>
    tpu.vector_store %arg16[%c96, %c0_50], %63 {strides = array<i32>} : memref<224x8xf32, #tpu.memory_space<vmem>>, vector<32x8xf32>,
    %c0_51 = arith.constant 0 : index
    %c4_52 = arith.constant 4 : index
    %65 = vector.load %arg15[%c0_51, %c4_52] : memref<32x14xf32, #tpu.memory_space<vmem>>, vector<32x8xf32>
    %c128 = arith.constant 128 : index
    %c0_53 = arith.constant 0 : index
    %66 = vector.load %arg16[%c128, %c0_53] : memref<224x8xf32, #tpu.memory_space<vmem>>, vector<32x8xf32>
    tpu.vector_store %arg16[%c128, %c0_53], %65 {strides = array<i32>} : memref<224x8xf32, #tpu.memory_space<vmem>>, vector<32x8xf32>,
    %c0_54 = arith.constant 0 : index
    %c5_55 = arith.constant 5 : index
    %67 = vector.load %arg15[%c0_54, %c5_55] : memref<32x14xf32, #tpu.memory_space<vmem>>, vector<32x8xf32>
    %c160 = arith.constant 160 : index
    %c0_56 = arith.constant 0 : index
    %68 = vector.load %arg16[%c160, %c0_56] : memref<224x8xf32, #tpu.memory_space<vmem>>, vector<32x8xf32>
    tpu.vector_store %arg16[%c160, %c0_56], %67 {strides = array<i32>} : memref<224x8xf32, #tpu.memory_space<vmem>>, vector<32x8xf32>,
    %c0_57 = arith.constant 0 : index
    %c6_58 = arith.constant 6 : index
    %69 = vector.load %arg15[%c0_57, %c6_58] : memref<32x14xf32, #tpu.memory_space<vmem>>, vector<32x8xf32>
    %c192 = arith.constant 192 : index
    %c0_59 = arith.constant 0 : index
    %70 = vector.load %arg16[%c192, %c0_59] : memref<224x8xf32, #tpu.memory_space<vmem>>, vector<32x8xf32>
    tpu.vector_store %arg16[%c192, %c0_59], %69 {strides = array<i32>} : memref<224x8xf32, #tpu.memory_space<vmem>>, vector<32x8xf32>,
    %c0_60 = arith.constant 0 : index
    %c0_61 = arith.constant 0 : index
    %71 = vector.load %arg4[%c0_60, %c0_61] : memref<16x224xf32, #tpu.memory_space<vmem>>, vector<16x224xf32>
    %c0_62 = arith.constant 0 : index
    %c0_63 = arith.constant 0 : index
    %72 = vector.load %arg16[%c0_62, %c0_63] : memref<224x8xf32, #tpu.memory_space<vmem>>, vector<224x8xf32>
    %cst_64 = arith.constant dense<0.000000e+00> : vector<16x8xf32>
    %73 = tpu.matmul %71, %72, %cst_64 {dimension_numbers = #tpu.dot_dimension_numbers<[1], [0], [0], [1], [0, 0, 1, 1], [], []>} : vector<16x224xf32>, vector<224x8xf32>, vector<16x8xf32> -> vector<16x8xf32>
    %cst_65 = arith.constant dense<0.000000e+00> : vector<16x4xf32>
    %74 = tpu.matmul %73, %13, %cst_65 {dimension_numbers = #tpu.dot_dimension_numbers<[1], [0], [0], [1], [0, 0, 1, 1], [], []>} : vector<16x8xf32>, vector<8x4xf32>, vector<16x4xf32> -> vector<16x4xf32>
    %c0_66 = arith.constant 0 : index
    %c0_67 = arith.constant 0 : index
    %75 = vector.load %arg5[%c0_66, %c0_67] : memref<16x1xf32, #tpu.memory_space<vmem>>, vector<16x1xf32>
    %76 = vector.broadcast %75 : vector<16x1xf32> to vector<16x4xf32>
    %77 = arith.addf %74, %76 : vector<16x4xf32>
    %cst_68 = arith.constant 0.000000e+00 : f32
    %78 = vector.broadcast %cst_68 : f32 to vector<16x4xf32>
    %79 = arith.maximumf %77, %78 : vector<16x4xf32>
    %c0_69 = arith.constant 0 : index
    %c0_70 = arith.constant 0 : index
    %c0_71 = arith.constant 0 : index
    %80 = vector.load %arg10[%c0_69, %c0_70, %c0_71] : memref<1x16x4xf32, #tpu.memory_space<vmem>>, vector<1x16x4xf32>
    %81 = vector.shape_cast %80 : vector<1x16x4xf32> to vector<16x4xf32>
    %82 = vector.shape_cast %79 : vector<16x4xf32> to vector<1x16x4xf32>
    tpu.vector_store %arg10[%c0_69, %c0_70, %c0_71], %82 {strides = array<i32>} : memref<1x16x4xf32, #tpu.memory_space<vmem>>, vector<1x16x4xf32>,
    %c0_72 = arith.constant 0 : index
    %c0_73 = arith.constant 0 : index
    %83 = vector.load %arg6[%c0_72, %c0_73] : memref<16x32xf32, #tpu.memory_space<vmem>>, vector<16x32xf32>
    %cst_74 = arith.constant dense<0.000000e+00> : vector<16x8xf32>
    %84 = tpu.matmul %83, %53, %cst_74 {dimension_numbers = #tpu.dot_dimension_numbers<[1], [0], [0], [1], [0, 0, 1, 1], [], []>} : vector<16x32xf32>, vector<32x8xf32>, vector<16x8xf32> -> vector<16x8xf32>
    %c0_75 = arith.constant 0 : index
    %c0_76 = arith.constant 0 : index
    %85 = vector.load %arg7[%c0_75, %c0_76] : memref<16x1xf32, #tpu.memory_space<vmem>>, vector<16x1xf32>
    %86 = vector.broadcast %85 : vector<16x1xf32> to vector<16x8xf32>
    %87 = arith.addf %84, %86 : vector<16x8xf32>
    %cst_77 = arith.constant 0.000000e+00 : f32
    %88 = vector.broadcast %cst_77 : f32 to vector<16x8xf32>
    %89 = arith.maximumf %87, %88 : vector<16x8xf32>
    %c0_78 = arith.constant 0 : index
    %c0_79 = arith.constant 0 : index
    %90 = vector.load %arg8[%c0_78, %c0_79] : memref<16x16xf32, #tpu.memory_space<vmem>>, vector<16x16xf32>
    %cst_80 = arith.constant dense<0.000000e+00> : vector<16x4xf32>
    %91 = tpu.matmul %90, %79, %cst_80 {dimension_numbers = #tpu.dot_dimension_numbers<[1], [0], [0], [1], [0, 0, 1, 1], [], []>} : vector<16x16xf32>, vector<16x4xf32>, vector<16x4xf32> -> vector<16x4xf32>
    %c0_81 = arith.constant 0 : index
    %c0_82 = arith.constant 0 : index
    %92 = vector.load %arg9[%c0_81, %c0_82] : memref<16x1xf32, #tpu.memory_space<vmem>>, vector<16x1xf32>
    %93 = vector.broadcast %92 : vector<16x1xf32> to vector<16x4xf32>
    %94 = arith.addf %91, %93 : vector<16x4xf32>
    %cst_83 = arith.constant 0.000000e+00 : f32
    %95 = vector.broadcast %cst_83 : f32 to vector<16x4xf32>
    %96 = arith.maximumf %94, %95 : vector<16x4xf32>
    %cst_84 = arith.constant dense<0.000000e+00> : vector<16x12xf32>
    %97 = tpu.matmul %89, %18, %cst_84 {dimension_numbers = #tpu.dot_dimension_numbers<[1], [0], [0], [1], [0, 0, 1, 1], [], []>} : vector<16x8xf32>, vector<8x12xf32>, vector<16x12xf32> -> vector<16x12xf32>
    %cst_85 = arith.constant dense<0.000000e+00> : vector<16x12xf32>
    %98 = tpu.matmul %96, %25, %cst_85 {dimension_numbers = #tpu.dot_dimension_numbers<[1], [0], [0], [1], [0, 0, 1, 1], [], []>} : vector<16x4xf32>, vector<4x12xf32>, vector<16x12xf32> -> vector<16x12xf32>
    %99 = arith.addf %97, %98 : vector<16x12xf32>
    %c0_86 = arith.constant 0 : index
    %c0_87 = arith.constant 0 : index
    %c0_88 = arith.constant 0 : index
    %100 = vector.load %arg11[%c0_86, %c0_87, %c0_88] : memref<1x16x12xf32, #tpu.memory_space<vmem>>, vector<1x16x12xf32>
    %101 = vector.shape_cast %100 : vector<1x16x12xf32> to vector<16x12xf32>
    %102 = vector.shape_cast %99 : vector<16x12xf32> to vector<1x16x12xf32>
    tpu.vector_store %arg11[%c0_86, %c0_87, %c0_88], %102 {strides = array<i32>} : memref<1x16x12xf32, #tpu.memory_space<vmem>>, vector<1x16x12xf32>,
    %cst_89 = arith.constant dense<0.000000e+00> : vector<12x12xf32>
    %103 = tpu.matmul %99, %99, %cst_89 {dimension_numbers = #tpu.dot_dimension_numbers<[0], [0], [1], [1], [0, 1, 1, 1], [], []>} : vector<16x12xf32>, vector<16x12xf32>, vector<12x12xf32> -> vector<12x12xf32>
    %cst_90 = arith.constant dense<0xFF800000> : vector<12xf32>
    %104 = vector.multi_reduction <maximumf>, %103, %cst_90 [1] : vector<12x12xf32> to vector<12xf32>
    %105 = vector.shape_cast %104 : vector<12xf32> to vector<12x1xf32>
    %106 = vector.broadcast %105 : vector<12x1xf32> to vector<12x12xf32>
    %107 = arith.subf %103, %106 : vector<12x12xf32>
    %108 = math.exp %107 : vector<12x12xf32>
    %cst_91 = arith.constant dense<0.000000e+00> : vector<12xf32>
    %109 = vector.multi_reduction <add>, %108, %cst_91 [1] : vector<12x12xf32> to vector<12xf32>
    %110 = vector.shape_cast %109 : vector<12xf32> to vector<12x1xf32>
    %111 = vector.broadcast %110 : vector<12x1xf32> to vector<12x12xf32>
    %112 = arith.divf %108, %111 : vector<12x12xf32>
    %cst_92 = arith.constant dense<0.000000e+00> : vector<12xf32>
    %113 = vector.multi_reduction <add>, %112, %cst_92 [0] : vector<12x12xf32> to vector<12xf32>
    %114 = vector.shape_cast %113 : vector<12xf32> to vector<1x12xf32>
    %c0_93 = arith.constant 0 : index
    %c0_94 = arith.constant 0 : index
    %c0_95 = arith.constant 0 : index
    %115 = vector.load %arg12[%c0_93, %c0_94, %c0_95] : memref<1x1x12xf32, #tpu.memory_space<vmem>>, vector<1x1x12xf32>
    %116 = vector.shape_cast %115 : vector<1x1x12xf32> to vector<1x12xf32>
    %117 = vector.shape_cast %114 : vector<1x12xf32> to vector<1x1x12xf32>
    tpu.vector_store %arg12[%c0_93, %c0_94, %c0_95], %117 {strides = array<i32>} : memref<1x1x12xf32, #tpu.memory_space<vmem>>, vector<1x1x12xf32>,
    return
  }
  func.func @transform_0(%arg0: i32) -> (i32, i32, i32) {
    %c0_i32 = arith.constant 0 : i32
    %c0_i32_0 = arith.constant 0 : i32
    %c0_i32_1 = arith.constant 0 : i32
    return %arg0, %c0_i32, %c0_i32_0 : i32, i32, i32
  }
  func.func @transform_1(%arg0: i32) -> (i32, i32) {
    %c0_i32 = arith.constant 0 : i32
    %c0_i32_0 = arith.constant 0 : i32
    %c0_i32_1 = arith.constant 0 : i32
    return %c0_i32, %c0_i32_0 : i32, i32
  }
  func.func @transform_2(%arg0: i32) -> (i32, i32) {
    %c0_i32 = arith.constant 0 : i32
    %c0_i32_0 = arith.constant 0 : i32
    %c0_i32_1 = arith.constant 0 : i32
    return %c0_i32, %c0_i32_0 : i32, i32
  }
  func.func @transform_3(%arg0: i32) -> (i32, i32) {
    %c0_i32 = arith.constant 0 : i32
    %c0_i32_0 = arith.constant 0 : i32
    %c0_i32_1 = arith.constant 0 : i32
    return %c0_i32, %c0_i32_0 : i32, i32
  }
  func.func @transform_4(%arg0: i32) -> (i32, i32) {
    %c0_i32 = arith.constant 0 : i32
    %c0_i32_0 = arith.constant 0 : i32
    %c0_i32_1 = arith.constant 0 : i32
    return %c0_i32, %c0_i32_0 : i32, i32
  }
  func.func @transform_5(%arg0: i32) -> (i32, i32) {
    %c0_i32 = arith.constant 0 : i32
    %c0_i32_0 = arith.constant 0 : i32
    %c0_i32_1 = arith.constant 0 : i32
    return %c0_i32, %c0_i32_0 : i32, i32
  }
  func.func @transform_6(%arg0: i32) -> (i32, i32) {
    %c0_i32 = arith.constant 0 : i32
    %c0_i32_0 = arith.constant 0 : i32
    %c0_i32_1 = arith.constant 0 : i32
    return %c0_i32, %c0_i32_0 : i32, i32
  }
  func.func @transform_7(%arg0: i32) -> (i32, i32) {
    %c0_i32 = arith.constant 0 : i32
    %c0_i32_0 = arith.constant 0 : i32
    %c0_i32_1 = arith.constant 0 : i32
    return %c0_i32, %c0_i32_0 : i32, i32
  }
  func.func @transform_8(%arg0: i32) -> (i32, i32) {
    %c0_i32 = arith.constant 0 : i32
    %c0_i32_0 = arith.constant 0 : i32
    %c0_i32_1 = arith.constant 0 : i32
    return %c0_i32, %c0_i32_0 : i32, i32
  }
  func.func @transform_9(%arg0: i32) -> (i32, i32, i32) {
    %c0_i32 = arith.constant 0 : i32
    %c0_i32_0 = arith.constant 0 : i32
    %c0_i32_1 = arith.constant 0 : i32
    return %arg0, %c0_i32, %c0_i32_0 : i32, i32, i32
  }
  func.func @transform_10(%arg0: i32) -> (i32, i32, i32) {
    %c0_i32 = arith.constant 0 : i32
    %c0_i32_0 = arith.constant 0 : i32
    %c0_i32_1 = arith.constant 0 : i32
    return %arg0, %c0_i32, %c0_i32_0 : i32, i32, i32
  }
  func.func @transform_11(%arg0: i32) -> (i32, i32, i32) {
    %c0_i32 = arith.constant 0 : i32
    %c0_i32_0 = arith.constant 0 : i32
    %c0_i32_1 = arith.constant 0 : i32
    return %arg0, %c0_i32, %c0_i32_0 : i32, i32, i32
  }
}

module attributes {stable_mosaic.version = 11 : i64} {
  func.func @kernel(%arg0: i32, %arg1: memref<1x16x4xf32, #tpu.memory_space<vmem>>, %arg2: memref<1x16x12xf32, #tpu.memory_space<vmem>>, %arg3: memref<1x16x6xf32, #tpu.memory_space<vmem>>, %arg4: memref<16x16xf32, #tpu.memory_space<vmem>>, %arg5: memref<16x1xf32, #tpu.memory_space<vmem>>, %arg6: memref<16x48xf32, #tpu.memory_space<vmem>>, %arg7: memref<16x64xf32, #tpu.memory_space<vmem>>, %arg8: memref<16x1xf32, #tpu.memory_space<vmem>>, %arg9: memref<32x48xf32, #tpu.memory_space<vmem>>, %arg10: memref<32x64xf32, #tpu.memory_space<vmem>>, %arg11: memref<32x1xf32, #tpu.memory_space<vmem>>, %arg12: memref<8x224xf32, #tpu.memory_space<vmem>>, %arg13: memref<8x1xf32, #tpu.memory_space<vmem>>, %arg14: memref<1x8x16xf32, #tpu.memory_space<vmem>>, %arg15: memref<1x8x16xf32, #tpu.memory_space<vmem>>, %arg16: memref<16x7xf32, #tpu.memory_space<vmem>>, %arg17: memref<64x4xf32, #tpu.memory_space<vmem>>, %arg18: memref<16x11xf32, #tpu.memory_space<vmem>>, %arg19: memref<64x8xf32, #tpu.memory_space<vmem>>, %arg20: memref<32x22xf32, #tpu.memory_space<vmem>>, %arg21: memref<224x16xf32, #tpu.memory_space<vmem>>) attributes {dimension_semantics = [#tpu.dimension_semantics<parallel>], iteration_bounds = array<i64: 2>, scalar_prefetch = 0 : i64, scratch_operands = 6 : i64, tpu.core_type = #tpu.core_type<tc>, window_params = [{transform_indices = @transform_0, window_bounds = array<i64: 1, 16, 4>}, {transform_indices = @transform_1, window_bounds = array<i64: 1, 16, 12>}, {transform_indices = @transform_2, window_bounds = array<i64: 1, 16, 6>}, {pipeline_mode = #tpu.pipeline_mode<synchronous>, transform_indices = @transform_3, window_bounds = array<i64: 16, 16>}, {pipeline_mode = #tpu.pipeline_mode<synchronous>, transform_indices = @transform_4, window_bounds = array<i64: 16, 1>}, {pipeline_mode = #tpu.pipeline_mode<synchronous>, transform_indices = @transform_5, window_bounds = array<i64: 16, 48>}, {pipeline_mode = #tpu.pipeline_mode<synchronous>, transform_indices = @transform_6, window_bounds = array<i64: 16, 64>}, {pipeline_mode = #tpu.pipeline_mode<synchronous>, transform_indices = @transform_7, window_bounds = array<i64: 16, 1>}, {pipeline_mode = #tpu.pipeline_mode<synchronous>, transform_indices = @transform_8, window_bounds = array<i64: 32, 48>}, {pipeline_mode = #tpu.pipeline_mode<synchronous>, transform_indices = @transform_9, window_bounds = array<i64: 32, 64>}, {pipeline_mode = #tpu.pipeline_mode<synchronous>, transform_indices = @transform_10, window_bounds = array<i64: 32, 1>}, {pipeline_mode = #tpu.pipeline_mode<synchronous>, transform_indices = @transform_11, window_bounds = array<i64: 8, 224>}, {pipeline_mode = #tpu.pipeline_mode<synchronous>, transform_indices = @transform_12, window_bounds = array<i64: 8, 1>}, {transform_indices = @transform_13, window_bounds = array<i64: 1, 8, 16>}, {transform_indices = @transform_14, window_bounds = array<i64: 1, 8, 16>}]} {
    %0 = tpu.iota {dimensions = array<i32: 0>} : vector<4x8xi32>
    %1 = tpu.iota {dimensions = array<i32: 1>} : vector<4x8xi32>
    %c2_i32 = arith.constant 2 : i32
    %2 = vector.broadcast %c2_i32 : i32 to vector<4x8xi32>
    %3 = arith.muli %2, %0 : vector<4x8xi32>
    %4 = arith.cmpi eq, %1, %3 : vector<4x8xi32>
    %5 = arith.extui %4 : vector<4x8xi1> to vector<4x8xi32>
    %6 = arith.sitofp %5 : vector<4x8xi32> to vector<4x8xf32>
    %7 = tpu.iota {dimensions = array<i32: 0>} : vector<4x8xi32>
    %8 = tpu.iota {dimensions = array<i32: 1>} : vector<4x8xi32>
    %c2_i32_0 = arith.constant 2 : i32
    %9 = vector.broadcast %c2_i32_0 : i32 to vector<4x8xi32>
    %10 = arith.muli %9, %7 : vector<4x8xi32>
    %c1_i32 = arith.constant 1 : i32
    %11 = vector.broadcast %c1_i32 : i32 to vector<4x8xi32>
    %12 = arith.addi %10, %11 : vector<4x8xi32>
    %13 = arith.cmpi eq, %8, %12 : vector<4x8xi32>
    %14 = arith.extui %13 : vector<4x8xi1> to vector<4x8xi32>
    %15 = arith.sitofp %14 : vector<4x8xi32> to vector<4x8xf32>
    %16 = tpu.iota {dimensions = array<i32: 0>} : vector<8x16xi32>
    %17 = tpu.iota {dimensions = array<i32: 1>} : vector<8x16xi32>
    %c2_i32_1 = arith.constant 2 : i32
    %18 = vector.broadcast %c2_i32_1 : i32 to vector<8x16xi32>
    %19 = arith.muli %18, %16 : vector<8x16xi32>
    %20 = arith.cmpi eq, %17, %19 : vector<8x16xi32>
    %21 = arith.extui %20 : vector<8x16xi1> to vector<8x16xi32>
    %22 = arith.sitofp %21 : vector<8x16xi32> to vector<8x16xf32>
    %23 = tpu.iota {dimensions = array<i32: 0>} : vector<8x16xi32>
    %24 = tpu.iota {dimensions = array<i32: 1>} : vector<8x16xi32>
    %c2_i32_2 = arith.constant 2 : i32
    %25 = vector.broadcast %c2_i32_2 : i32 to vector<8x16xi32>
    %26 = arith.muli %25, %23 : vector<8x16xi32>
    %c1_i32_3 = arith.constant 1 : i32
    %27 = vector.broadcast %c1_i32_3 : i32 to vector<8x16xi32>
    %28 = arith.addi %26, %27 : vector<8x16xi32>
    %29 = arith.cmpi eq, %24, %28 : vector<8x16xi32>
    %30 = arith.extui %29 : vector<8x16xi1> to vector<8x16xi32>
    %31 = arith.sitofp %30 : vector<8x16xi32> to vector<8x16xf32>
    %c0 = arith.constant 0 : index
    %c0_4 = arith.constant 0 : index
    %c0_5 = arith.constant 0 : index
    %32 = vector.load %arg2[%c0, %c0_4, %c0_5] : memref<1x16x12xf32, #tpu.memory_space<vmem>>, vector<1x16x12xf32>
    %33 = vector.shape_cast %32 : vector<1x16x12xf32> to vector<16x12xf32>
    %34 = vector.extract_strided_slice %33 {offsets = [0, 8], sizes = [16, 4], strides = [1, 1]} : vector<16x12xf32> to vector<16x4xf32>
    %c0_6 = arith.constant 0 : index
    %c0_7 = arith.constant 0 : index
    %c0_8 = arith.constant 0 : index
    %35 = vector.load %arg3[%c0_6, %c0_7, %c0_8] : memref<1x16x6xf32, #tpu.memory_space<vmem>>, vector<1x16x6xf32>
    %36 = vector.shape_cast %35 : vector<1x16x6xf32> to vector<16x6xf32>
    %cst = arith.constant dense<0.000000e+00> : vector<4x6xf32>
    %37 = tpu.matmul %34, %36, %cst {dimension_numbers = #tpu.dot_dimension_numbers<[0], [0], [1], [1], [0, 1, 1, 1], [], []>} : vector<16x4xf32>, vector<16x6xf32>, vector<4x6xf32> -> vector<4x6xf32>
    %cst_9 = arith.constant dense<0xFF800000> : vector<4xf32>
    %38 = vector.multi_reduction <maximumf>, %37, %cst_9 [1] : vector<4x6xf32> to vector<4xf32>
    %39 = vector.shape_cast %38 : vector<4xf32> to vector<4x1xf32>
    %40 = vector.broadcast %39 : vector<4x1xf32> to vector<4x6xf32>
    %41 = arith.subf %37, %40 : vector<4x6xf32>
    %42 = math.exp %41 : vector<4x6xf32>
    %cst_10 = arith.constant dense<0.000000e+00> : vector<4xf32>
    %43 = vector.multi_reduction <add>, %42, %cst_10 [1] : vector<4x6xf32> to vector<4xf32>
    %44 = vector.shape_cast %43 : vector<4xf32> to vector<4x1xf32>
    %45 = vector.broadcast %44 : vector<4x1xf32> to vector<4x6xf32>
    %46 = arith.divf %42, %45 : vector<4x6xf32>
    %cst_11 = arith.constant dense<0.000000e+00> : vector<6xf32>
    %47 = vector.multi_reduction <add>, %46, %cst_11 [0] : vector<4x6xf32> to vector<6xf32>
    %48 = vector.shape_cast %47 : vector<6xf32> to vector<1x6xf32>
    %cst_12 = arith.constant 9.99999997E-7 : f32
    %49 = vector.broadcast %cst_12 : f32 to vector<1x6xf32>
    %50 = arith.addf %49, %48 : vector<1x6xf32>
    %51 = vector.broadcast %50 : vector<1x6xf32> to vector<4x6xf32>
    %52 = arith.divf %46, %51 : vector<4x6xf32>
    %cst_13 = arith.constant dense<0.000000e+00> : vector<16x4xf32>
    %53 = tpu.matmul %36, %52, %cst_13 {dimension_numbers = #tpu.dot_dimension_numbers<[1], [1], [0], [0], [0, 0, 1, 0], [], []>} : vector<16x6xf32>, vector<4x6xf32>, vector<16x4xf32> -> vector<16x4xf32>
    %c0_14 = arith.constant 0 : index
    %c0_15 = arith.constant 0 : index
    %54 = vector.load %arg4[%c0_14, %c0_15] : memref<16x16xf32, #tpu.memory_space<vmem>>, vector<16x16xf32>
    %cst_16 = arith.constant dense<0.000000e+00> : vector<16x4xf32>
    %55 = tpu.matmul %54, %53, %cst_16 {dimension_numbers = #tpu.dot_dimension_numbers<[1], [0], [0], [1], [0, 0, 1, 1], [], []>} : vector<16x16xf32>, vector<16x4xf32>, vector<16x4xf32> -> vector<16x4xf32>
    %c0_17 = arith.constant 0 : index
    %c0_18 = arith.constant 0 : index
    %56 = vector.load %arg5[%c0_17, %c0_18] : memref<16x1xf32, #tpu.memory_space<vmem>>, vector<16x1xf32>
    %57 = vector.broadcast %56 : vector<16x1xf32> to vector<16x4xf32>
    %58 = arith.addf %55, %57 : vector<16x4xf32>
    %cst_19 = arith.constant 0.000000e+00 : f32
    %59 = vector.broadcast %cst_19 : f32 to vector<16x4xf32>
    %60 = arith.maximumf %58, %59 : vector<16x4xf32>
    %61 = arith.addf %60, %34 : vector<16x4xf32>
    %c0_20 = arith.constant 0 : index
    %c0_21 = arith.constant 0 : index
    %c0_22 = arith.constant 0 : index
    %62 = vector.load %arg1[%c0_20, %c0_21, %c0_22] : memref<1x16x4xf32, #tpu.memory_space<vmem>>, vector<1x16x4xf32>
    %63 = vector.shape_cast %62 : vector<1x16x4xf32> to vector<16x4xf32>
    %cst_23 = arith.constant 0.000000e+00 : f32
    %64 = vector.broadcast %cst_23 : f32 to vector<16x7xf32>
    %c0_24 = arith.constant 0 : index
    %c0_25 = arith.constant 0 : index
    %65 = vector.load %arg16[%c0_24, %c0_25] : memref<16x7xf32, #tpu.memory_space<vmem>>, vector<16x7xf32>
    tpu.vector_store %arg16[%c0_24, %c0_25], %64 {strides = array<i32>} : memref<16x7xf32, #tpu.memory_space<vmem>>, vector<16x7xf32>,
    %c0_26 = arith.constant 0 : index
    %c1 = arith.constant 1 : index
    %66 = vector.load %arg16[%c0_26, %c1] : memref<16x7xf32, #tpu.memory_space<vmem>>, vector<16x4xf32>
    tpu.vector_store %arg16[%c0_26, %c1], %63 {strides = array<i32>} : memref<16x7xf32, #tpu.memory_space<vmem>>, vector<16x4xf32>,
    %c0_27 = arith.constant 0 : index
    %c0_28 = arith.constant 0 : index
    %67 = vector.load %arg16[%c0_27, %c0_28] : memref<16x7xf32, #tpu.memory_space<vmem>>, vector<16x4xf32>
    %c0_29 = arith.constant 0 : index
    %c0_30 = arith.constant 0 : index
    %68 = vector.load %arg17[%c0_29, %c0_30] : memref<64x4xf32, #tpu.memory_space<vmem>>, vector<16x4xf32>
    tpu.vector_store %arg17[%c0_29, %c0_30], %67 {strides = array<i32>} : memref<64x4xf32, #tpu.memory_space<vmem>>, vector<16x4xf32>,
    %c0_31 = arith.constant 0 : index
    %c1_32 = arith.constant 1 : index
    %69 = vector.load %arg16[%c0_31, %c1_32] : memref<16x7xf32, #tpu.memory_space<vmem>>, vector<16x4xf32>
    %c16 = arith.constant 16 : index
    %c0_33 = arith.constant 0 : index
    %70 = vector.load %arg17[%c16, %c0_33] : memref<64x4xf32, #tpu.memory_space<vmem>>, vector<16x4xf32>
    tpu.vector_store %arg17[%c16, %c0_33], %69 {strides = array<i32>} : memref<64x4xf32, #tpu.memory_space<vmem>>, vector<16x4xf32>,
    %c0_34 = arith.constant 0 : index
    %c2 = arith.constant 2 : index
    %71 = vector.load %arg16[%c0_34, %c2] : memref<16x7xf32, #tpu.memory_space<vmem>>, vector<16x4xf32>
    %c32 = arith.constant 32 : index
    %c0_35 = arith.constant 0 : index
    %72 = vector.load %arg17[%c32, %c0_35] : memref<64x4xf32, #tpu.memory_space<vmem>>, vector<16x4xf32>
    tpu.vector_store %arg17[%c32, %c0_35], %71 {strides = array<i32>} : memref<64x4xf32, #tpu.memory_space<vmem>>, vector<16x4xf32>,
    %c0_36 = arith.constant 0 : index
    %c3 = arith.constant 3 : index
    %73 = vector.load %arg16[%c0_36, %c3] : memref<16x7xf32, #tpu.memory_space<vmem>>, vector<16x4xf32>
    %c48 = arith.constant 48 : index
    %c0_37 = arith.constant 0 : index
    %74 = vector.load %arg17[%c48, %c0_37] : memref<64x4xf32, #tpu.memory_space<vmem>>, vector<16x4xf32>
    tpu.vector_store %arg17[%c48, %c0_37], %73 {strides = array<i32>} : memref<64x4xf32, #tpu.memory_space<vmem>>, vector<16x4xf32>,
    %c0_38 = arith.constant 0 : index
    %c0_39 = arith.constant 0 : index
    %75 = vector.load %arg6[%c0_38, %c0_39] : memref<16x48xf32, #tpu.memory_space<vmem>>, vector<16x48xf32>
    %c0_40 = arith.constant 0 : index
    %c0_41 = arith.constant 0 : index
    %76 = vector.load %arg17[%c0_40, %c0_41] : memref<64x4xf32, #tpu.memory_space<vmem>>, vector<48x4xf32>
    %cst_42 = arith.constant dense<0.000000e+00> : vector<16x4xf32>
    %77 = tpu.matmul %75, %76, %cst_42 {dimension_numbers = #tpu.dot_dimension_numbers<[1], [0], [0], [1], [0, 0, 1, 1], [], []>} : vector<16x48xf32>, vector<48x4xf32>, vector<16x4xf32> -> vector<16x4xf32>
    %c0_43 = arith.constant 0 : index
    %c0_44 = arith.constant 0 : index
    %78 = vector.load %arg7[%c0_43, %c0_44] : memref<16x64xf32, #tpu.memory_space<vmem>>, vector<16x64xf32>
    %c0_45 = arith.constant 0 : index
    %c0_46 = arith.constant 0 : index
    %79 = vector.load %arg17[%c0_45, %c0_46] : memref<64x4xf32, #tpu.memory_space<vmem>>, vector<64x4xf32>
    %cst_47 = arith.constant dense<0.000000e+00> : vector<16x4xf32>
    %80 = tpu.matmul %78, %79, %cst_47 {dimension_numbers = #tpu.dot_dimension_numbers<[1], [0], [0], [1], [0, 0, 1, 1], [], []>} : vector<16x64xf32>, vector<64x4xf32>, vector<16x4xf32> -> vector<16x4xf32>
    %c0_48 = arith.constant 0 : index
    %c0_49 = arith.constant 0 : index
    %81 = vector.load %arg8[%c0_48, %c0_49] : memref<16x1xf32, #tpu.memory_space<vmem>>, vector<16x1xf32>
    %82 = vector.broadcast %81 : vector<16x1xf32> to vector<16x4xf32>
    %83 = arith.addf %77, %82 : vector<16x4xf32>
    %cst_50 = arith.constant 0.000000e+00 : f32
    %84 = vector.broadcast %cst_50 : f32 to vector<16x4xf32>
    %85 = arith.maximumf %83, %84 : vector<16x4xf32>
    %c0_51 = arith.constant 0 : index
    %c0_52 = arith.constant 0 : index
    %86 = vector.load %arg8[%c0_51, %c0_52] : memref<16x1xf32, #tpu.memory_space<vmem>>, vector<16x1xf32>
    %87 = vector.broadcast %86 : vector<16x1xf32> to vector<16x4xf32>
    %88 = arith.addf %80, %87 : vector<16x4xf32>
    %cst_53 = arith.constant 0.000000e+00 : f32
    %89 = vector.broadcast %cst_53 : f32 to vector<16x4xf32>
    %90 = arith.maximumf %88, %89 : vector<16x4xf32>
    %cst_54 = arith.constant dense<0.000000e+00> : vector<16x8xf32>
    %91 = tpu.matmul %85, %6, %cst_54 {dimension_numbers = #tpu.dot_dimension_numbers<[1], [0], [0], [1], [0, 0, 1, 1], [], []>} : vector<16x4xf32>, vector<4x8xf32>, vector<16x8xf32> -> vector<16x8xf32>
    %cst_55 = arith.constant dense<0.000000e+00> : vector<16x8xf32>
    %92 = tpu.matmul %90, %15, %cst_55 {dimension_numbers = #tpu.dot_dimension_numbers<[1], [0], [0], [1], [0, 0, 1, 1], [], []>} : vector<16x4xf32>, vector<4x8xf32>, vector<16x8xf32> -> vector<16x8xf32>
    %93 = arith.addf %91, %92 : vector<16x8xf32>
    %cst_56 = arith.constant 0.000000e+00 : f32
    %94 = vector.broadcast %cst_56 : f32 to vector<16x11xf32>
    %c0_57 = arith.constant 0 : index
    %c0_58 = arith.constant 0 : index
    %95 = vector.load %arg18[%c0_57, %c0_58] : memref<16x11xf32, #tpu.memory_space<vmem>>, vector<16x11xf32>
    tpu.vector_store %arg18[%c0_57, %c0_58], %94 {strides = array<i32>} : memref<16x11xf32, #tpu.memory_space<vmem>>, vector<16x11xf32>,
    %c0_59 = arith.constant 0 : index
    %c1_60 = arith.constant 1 : index
    %96 = vector.load %arg18[%c0_59, %c1_60] : memref<16x11xf32, #tpu.memory_space<vmem>>, vector<16x8xf32>
    tpu.vector_store %arg18[%c0_59, %c1_60], %93 {strides = array<i32>} : memref<16x11xf32, #tpu.memory_space<vmem>>, vector<16x8xf32>,
    %c0_61 = arith.constant 0 : index
    %c0_62 = arith.constant 0 : index
    %97 = vector.load %arg18[%c0_61, %c0_62] : memref<16x11xf32, #tpu.memory_space<vmem>>, vector<16x8xf32>
    %c0_63 = arith.constant 0 : index
    %c0_64 = arith.constant 0 : index
    %98 = vector.load %arg19[%c0_63, %c0_64] : memref<64x8xf32, #tpu.memory_space<vmem>>, vector<16x8xf32>
    tpu.vector_store %arg19[%c0_63, %c0_64], %97 {strides = array<i32>} : memref<64x8xf32, #tpu.memory_space<vmem>>, vector<16x8xf32>,
    %c0_65 = arith.constant 0 : index
    %c1_66 = arith.constant 1 : index
    %99 = vector.load %arg18[%c0_65, %c1_66] : memref<16x11xf32, #tpu.memory_space<vmem>>, vector<16x8xf32>
    %c16_67 = arith.constant 16 : index
    %c0_68 = arith.constant 0 : index
    %100 = vector.load %arg19[%c16_67, %c0_68] : memref<64x8xf32, #tpu.memory_space<vmem>>, vector<16x8xf32>
    tpu.vector_store %arg19[%c16_67, %c0_68], %99 {strides = array<i32>} : memref<64x8xf32, #tpu.memory_space<vmem>>, vector<16x8xf32>,
    %c0_69 = arith.constant 0 : index
    %c2_70 = arith.constant 2 : index
    %101 = vector.load %arg18[%c0_69, %c2_70] : memref<16x11xf32, #tpu.memory_space<vmem>>, vector<16x8xf32>
    %c32_71 = arith.constant 32 : index
    %c0_72 = arith.constant 0 : index
    %102 = vector.load %arg19[%c32_71, %c0_72] : memref<64x8xf32, #tpu.memory_space<vmem>>, vector<16x8xf32>
    tpu.vector_store %arg19[%c32_71, %c0_72], %101 {strides = array<i32>} : memref<64x8xf32, #tpu.memory_space<vmem>>, vector<16x8xf32>,
    %c0_73 = arith.constant 0 : index
    %c3_74 = arith.constant 3 : index
    %103 = vector.load %arg18[%c0_73, %c3_74] : memref<16x11xf32, #tpu.memory_space<vmem>>, vector<16x8xf32>
    %c48_75 = arith.constant 48 : index
    %c0_76 = arith.constant 0 : index
    %104 = vector.load %arg19[%c48_75, %c0_76] : memref<64x8xf32, #tpu.memory_space<vmem>>, vector<16x8xf32>
    tpu.vector_store %arg19[%c48_75, %c0_76], %103 {strides = array<i32>} : memref<64x8xf32, #tpu.memory_space<vmem>>, vector<16x8xf32>,
    %c0_77 = arith.constant 0 : index
    %c0_78 = arith.constant 0 : index
    %105 = vector.load %arg9[%c0_77, %c0_78] : memref<32x48xf32, #tpu.memory_space<vmem>>, vector<32x48xf32>
    %c0_79 = arith.constant 0 : index
    %c0_80 = arith.constant 0 : index
    %106 = vector.load %arg19[%c0_79, %c0_80] : memref<64x8xf32, #tpu.memory_space<vmem>>, vector<48x8xf32>
    %cst_81 = arith.constant dense<0.000000e+00> : vector<32x8xf32>
    %107 = tpu.matmul %105, %106, %cst_81 {dimension_numbers = #tpu.dot_dimension_numbers<[1], [0], [0], [1], [0, 0, 1, 1], [], []>} : vector<32x48xf32>, vector<48x8xf32>, vector<32x8xf32> -> vector<32x8xf32>
    %c0_82 = arith.constant 0 : index
    %c0_83 = arith.constant 0 : index
    %108 = vector.load %arg10[%c0_82, %c0_83] : memref<32x64xf32, #tpu.memory_space<vmem>>, vector<32x64xf32>
    %c0_84 = arith.constant 0 : index
    %c0_85 = arith.constant 0 : index
    %109 = vector.load %arg19[%c0_84, %c0_85] : memref<64x8xf32, #tpu.memory_space<vmem>>, vector<64x8xf32>
    %cst_86 = arith.constant dense<0.000000e+00> : vector<32x8xf32>
    %110 = tpu.matmul %108, %109, %cst_86 {dimension_numbers = #tpu.dot_dimension_numbers<[1], [0], [0], [1], [0, 0, 1, 1], [], []>} : vector<32x64xf32>, vector<64x8xf32>, vector<32x8xf32> -> vector<32x8xf32>
    %c0_87 = arith.constant 0 : index
    %c0_88 = arith.constant 0 : index
    %111 = vector.load %arg11[%c0_87, %c0_88] : memref<32x1xf32, #tpu.memory_space<vmem>>, vector<32x1xf32>
    %112 = vector.broadcast %111 : vector<32x1xf32> to vector<32x8xf32>
    %113 = arith.addf %107, %112 : vector<32x8xf32>
    %cst_89 = arith.constant 0.000000e+00 : f32
    %114 = vector.broadcast %cst_89 : f32 to vector<32x8xf32>
    %115 = arith.maximumf %113, %114 : vector<32x8xf32>
    %c0_90 = arith.constant 0 : index
    %c0_91 = arith.constant 0 : index
    %116 = vector.load %arg11[%c0_90, %c0_91] : memref<32x1xf32, #tpu.memory_space<vmem>>, vector<32x1xf32>
    %117 = vector.broadcast %116 : vector<32x1xf32> to vector<32x8xf32>
    %118 = arith.addf %110, %117 : vector<32x8xf32>
    %cst_92 = arith.constant 0.000000e+00 : f32
    %119 = vector.broadcast %cst_92 : f32 to vector<32x8xf32>
    %120 = arith.maximumf %118, %119 : vector<32x8xf32>
    %cst_93 = arith.constant dense<0.000000e+00> : vector<32x16xf32>
    %121 = tpu.matmul %115, %22, %cst_93 {dimension_numbers = #tpu.dot_dimension_numbers<[1], [0], [0], [1], [0, 0, 1, 1], [], []>} : vector<32x8xf32>, vector<8x16xf32>, vector<32x16xf32> -> vector<32x16xf32>
    %cst_94 = arith.constant dense<0.000000e+00> : vector<32x16xf32>
    %122 = tpu.matmul %120, %31, %cst_94 {dimension_numbers = #tpu.dot_dimension_numbers<[1], [0], [0], [1], [0, 0, 1, 1], [], []>} : vector<32x8xf32>, vector<8x16xf32>, vector<32x16xf32> -> vector<32x16xf32>
    %123 = arith.addf %121, %122 : vector<32x16xf32>
    %cst_95 = arith.constant 0.000000e+00 : f32
    %124 = vector.broadcast %cst_95 : f32 to vector<32x22xf32>
    %c0_96 = arith.constant 0 : index
    %c0_97 = arith.constant 0 : index
    %125 = vector.load %arg20[%c0_96, %c0_97] : memref<32x22xf32, #tpu.memory_space<vmem>>, vector<32x22xf32>
    tpu.vector_store %arg20[%c0_96, %c0_97], %124 {strides = array<i32>} : memref<32x22xf32, #tpu.memory_space<vmem>>, vector<32x22xf32>,
    %c0_98 = arith.constant 0 : index
    %c3_99 = arith.constant 3 : index
    %126 = vector.load %arg20[%c0_98, %c3_99] : memref<32x22xf32, #tpu.memory_space<vmem>>, vector<32x16xf32>
    tpu.vector_store %arg20[%c0_98, %c3_99], %123 {strides = array<i32>} : memref<32x22xf32, #tpu.memory_space<vmem>>, vector<32x16xf32>,
    %c0_100 = arith.constant 0 : index
    %c0_101 = arith.constant 0 : index
    %127 = vector.load %arg20[%c0_100, %c0_101] : memref<32x22xf32, #tpu.memory_space<vmem>>, vector<32x16xf32>
    %c0_102 = arith.constant 0 : index
    %c0_103 = arith.constant 0 : index
    %128 = vector.load %arg21[%c0_102, %c0_103] : memref<224x16xf32, #tpu.memory_space<vmem>>, vector<32x16xf32>
    tpu.vector_store %arg21[%c0_102, %c0_103], %127 {strides = array<i32>} : memref<224x16xf32, #tpu.memory_space<vmem>>, vector<32x16xf32>,
    %c0_104 = arith.constant 0 : index
    %c1_105 = arith.constant 1 : index
    %129 = vector.load %arg20[%c0_104, %c1_105] : memref<32x22xf32, #tpu.memory_space<vmem>>, vector<32x16xf32>
    %c32_106 = arith.constant 32 : index
    %c0_107 = arith.constant 0 : index
    %130 = vector.load %arg21[%c32_106, %c0_107] : memref<224x16xf32, #tpu.memory_space<vmem>>, vector<32x16xf32>
    tpu.vector_store %arg21[%c32_106, %c0_107], %129 {strides = array<i32>} : memref<224x16xf32, #tpu.memory_space<vmem>>, vector<32x16xf32>,
    %c0_108 = arith.constant 0 : index
    %c2_109 = arith.constant 2 : index
    %131 = vector.load %arg20[%c0_108, %c2_109] : memref<32x22xf32, #tpu.memory_space<vmem>>, vector<32x16xf32>
    %c64 = arith.constant 64 : index
    %c0_110 = arith.constant 0 : index
    %132 = vector.load %arg21[%c64, %c0_110] : memref<224x16xf32, #tpu.memory_space<vmem>>, vector<32x16xf32>
    tpu.vector_store %arg21[%c64, %c0_110], %131 {strides = array<i32>} : memref<224x16xf32, #tpu.memory_space<vmem>>, vector<32x16xf32>,
    %c0_111 = arith.constant 0 : index
    %c3_112 = arith.constant 3 : index
    %133 = vector.load %arg20[%c0_111, %c3_112] : memref<32x22xf32, #tpu.memory_space<vmem>>, vector<32x16xf32>
    %c96 = arith.constant 96 : index
    %c0_113 = arith.constant 0 : index
    %134 = vector.load %arg21[%c96, %c0_113] : memref<224x16xf32, #tpu.memory_space<vmem>>, vector<32x16xf32>
    tpu.vector_store %arg21[%c96, %c0_113], %133 {strides = array<i32>} : memref<224x16xf32, #tpu.memory_space<vmem>>, vector<32x16xf32>,
    %c0_114 = arith.constant 0 : index
    %c4 = arith.constant 4 : index
    %135 = vector.load %arg20[%c0_114, %c4] : memref<32x22xf32, #tpu.memory_space<vmem>>, vector<32x16xf32>
    %c128 = arith.constant 128 : index
    %c0_115 = arith.constant 0 : index
    %136 = vector.load %arg21[%c128, %c0_115] : memref<224x16xf32, #tpu.memory_space<vmem>>, vector<32x16xf32>
    tpu.vector_store %arg21[%c128, %c0_115], %135 {strides = array<i32>} : memref<224x16xf32, #tpu.memory_space<vmem>>, vector<32x16xf32>,
    %c0_116 = arith.constant 0 : index
    %c5 = arith.constant 5 : index
    %137 = vector.load %arg20[%c0_116, %c5] : memref<32x22xf32, #tpu.memory_space<vmem>>, vector<32x16xf32>
    %c160 = arith.constant 160 : index
    %c0_117 = arith.constant 0 : index
    %138 = vector.load %arg21[%c160, %c0_117] : memref<224x16xf32, #tpu.memory_space<vmem>>, vector<32x16xf32>
    tpu.vector_store %arg21[%c160, %c0_117], %137 {strides = array<i32>} : memref<224x16xf32, #tpu.memory_space<vmem>>, vector<32x16xf32>,
    %c0_118 = arith.constant 0 : index
    %c6 = arith.constant 6 : index
    %139 = vector.load %arg20[%c0_118, %c6] : memref<32x22xf32, #tpu.memory_space<vmem>>, vector<32x16xf32>
    %c192 = arith.constant 192 : index
    %c0_119 = arith.constant 0 : index
    %140 = vector.load %arg21[%c192, %c0_119] : memref<224x16xf32, #tpu.memory_space<vmem>>, vector<32x16xf32>
    tpu.vector_store %arg21[%c192, %c0_119], %139 {strides = array<i32>} : memref<224x16xf32, #tpu.memory_space<vmem>>, vector<32x16xf32>,
    %c0_120 = arith.constant 0 : index
    %c0_121 = arith.constant 0 : index
    %141 = vector.load %arg12[%c0_120, %c0_121] : memref<8x224xf32, #tpu.memory_space<vmem>>, vector<8x224xf32>
    %c0_122 = arith.constant 0 : index
    %c0_123 = arith.constant 0 : index
    %142 = vector.load %arg21[%c0_122, %c0_123] : memref<224x16xf32, #tpu.memory_space<vmem>>, vector<224x16xf32>
    %cst_124 = arith.constant dense<0.000000e+00> : vector<8x16xf32>
    %143 = tpu.matmul %141, %142, %cst_124 {dimension_numbers = #tpu.dot_dimension_numbers<[1], [0], [0], [1], [0, 0, 1, 1], [], []>} : vector<8x224xf32>, vector<224x16xf32>, vector<8x16xf32> -> vector<8x16xf32>
    %c0_125 = arith.constant 0 : index
    %c0_126 = arith.constant 0 : index
    %144 = vector.load %arg13[%c0_125, %c0_126] : memref<8x1xf32, #tpu.memory_space<vmem>>, vector<8x1xf32>
    %145 = vector.broadcast %144 : vector<8x1xf32> to vector<8x16xf32>
    %146 = arith.addf %143, %145 : vector<8x16xf32>
    %c0_127 = arith.constant 0 : index
    %c0_128 = arith.constant 0 : index
    %c0_129 = arith.constant 0 : index
    %147 = vector.load %arg14[%c0_127, %c0_128, %c0_129] : memref<1x8x16xf32, #tpu.memory_space<vmem>>, vector<1x8x16xf32>
    %148 = vector.shape_cast %147 : vector<1x8x16xf32> to vector<8x16xf32>
    %149 = vector.shape_cast %146 : vector<8x16xf32> to vector<1x8x16xf32>
    tpu.vector_store %arg14[%c0_127, %c0_128, %c0_129], %149 {strides = array<i32>} : memref<1x8x16xf32, #tpu.memory_space<vmem>>, vector<1x8x16xf32>,
    %cst_130 = arith.constant 0.000000e+00 : f32
    %150 = vector.broadcast %cst_130 : f32 to vector<16x7xf32>
    %c0_131 = arith.constant 0 : index
    %c0_132 = arith.constant 0 : index
    %151 = vector.load %arg16[%c0_131, %c0_132] : memref<16x7xf32, #tpu.memory_space<vmem>>, vector<16x7xf32>
    tpu.vector_store %arg16[%c0_131, %c0_132], %150 {strides = array<i32>} : memref<16x7xf32, #tpu.memory_space<vmem>>, vector<16x7xf32>,
    %c0_133 = arith.constant 0 : index
    %c1_134 = arith.constant 1 : index
    %152 = vector.load %arg16[%c0_133, %c1_134] : memref<16x7xf32, #tpu.memory_space<vmem>>, vector<16x4xf32>
    tpu.vector_store %arg16[%c0_133, %c1_134], %61 {strides = array<i32>} : memref<16x7xf32, #tpu.memory_space<vmem>>, vector<16x4xf32>,
    %c0_135 = arith.constant 0 : index
    %c0_136 = arith.constant 0 : index
    %153 = vector.load %arg16[%c0_135, %c0_136] : memref<16x7xf32, #tpu.memory_space<vmem>>, vector<16x4xf32>
    %c0_137 = arith.constant 0 : index
    %c0_138 = arith.constant 0 : index
    %154 = vector.load %arg17[%c0_137, %c0_138] : memref<64x4xf32, #tpu.memory_space<vmem>>, vector<16x4xf32>
    tpu.vector_store %arg17[%c0_137, %c0_138], %153 {strides = array<i32>} : memref<64x4xf32, #tpu.memory_space<vmem>>, vector<16x4xf32>,
    %c0_139 = arith.constant 0 : index
    %c1_140 = arith.constant 1 : index
    %155 = vector.load %arg16[%c0_139, %c1_140] : memref<16x7xf32, #tpu.memory_space<vmem>>, vector<16x4xf32>
    %c16_141 = arith.constant 16 : index
    %c0_142 = arith.constant 0 : index
    %156 = vector.load %arg17[%c16_141, %c0_142] : memref<64x4xf32, #tpu.memory_space<vmem>>, vector<16x4xf32>
    tpu.vector_store %arg17[%c16_141, %c0_142], %155 {strides = array<i32>} : memref<64x4xf32, #tpu.memory_space<vmem>>, vector<16x4xf32>,
    %c0_143 = arith.constant 0 : index
    %c2_144 = arith.constant 2 : index
    %157 = vector.load %arg16[%c0_143, %c2_144] : memref<16x7xf32, #tpu.memory_space<vmem>>, vector<16x4xf32>
    %c32_145 = arith.constant 32 : index
    %c0_146 = arith.constant 0 : index
    %158 = vector.load %arg17[%c32_145, %c0_146] : memref<64x4xf32, #tpu.memory_space<vmem>>, vector<16x4xf32>
    tpu.vector_store %arg17[%c32_145, %c0_146], %157 {strides = array<i32>} : memref<64x4xf32, #tpu.memory_space<vmem>>, vector<16x4xf32>,
    %c0_147 = arith.constant 0 : index
    %c3_148 = arith.constant 3 : index
    %159 = vector.load %arg16[%c0_147, %c3_148] : memref<16x7xf32, #tpu.memory_space<vmem>>, vector<16x4xf32>
    %c48_149 = arith.constant 48 : index
    %c0_150 = arith.constant 0 : index
    %160 = vector.load %arg17[%c48_149, %c0_150] : memref<64x4xf32, #tpu.memory_space<vmem>>, vector<16x4xf32>
    tpu.vector_store %arg17[%c48_149, %c0_150], %159 {strides = array<i32>} : memref<64x4xf32, #tpu.memory_space<vmem>>, vector<16x4xf32>,
    %c0_151 = arith.constant 0 : index
    %c0_152 = arith.constant 0 : index
    %161 = vector.load %arg6[%c0_151, %c0_152] : memref<16x48xf32, #tpu.memory_space<vmem>>, vector<16x48xf32>
    %c0_153 = arith.constant 0 : index
    %c0_154 = arith.constant 0 : index
    %162 = vector.load %arg17[%c0_153, %c0_154] : memref<64x4xf32, #tpu.memory_space<vmem>>, vector<48x4xf32>
    %cst_155 = arith.constant dense<0.000000e+00> : vector<16x4xf32>
    %163 = tpu.matmul %161, %162, %cst_155 {dimension_numbers = #tpu.dot_dimension_numbers<[1], [0], [0], [1], [0, 0, 1, 1], [], []>} : vector<16x48xf32>, vector<48x4xf32>, vector<16x4xf32> -> vector<16x4xf32>
    %c0_156 = arith.constant 0 : index
    %c0_157 = arith.constant 0 : index
    %164 = vector.load %arg7[%c0_156, %c0_157] : memref<16x64xf32, #tpu.memory_space<vmem>>, vector<16x64xf32>
    %c0_158 = arith.constant 0 : index
    %c0_159 = arith.constant 0 : index
    %165 = vector.load %arg17[%c0_158, %c0_159] : memref<64x4xf32, #tpu.memory_space<vmem>>, vector<64x4xf32>
    %cst_160 = arith.constant dense<0.000000e+00> : vector<16x4xf32>
    %166 = tpu.matmul %164, %165, %cst_160 {dimension_numbers = #tpu.dot_dimension_numbers<[1], [0], [0], [1], [0, 0, 1, 1], [], []>} : vector<16x64xf32>, vector<64x4xf32>, vector<16x4xf32> -> vector<16x4xf32>
    %c0_161 = arith.constant 0 : index
    %c0_162 = arith.constant 0 : index
    %167 = vector.load %arg8[%c0_161, %c0_162] : memref<16x1xf32, #tpu.memory_space<vmem>>, vector<16x1xf32>
    %168 = vector.broadcast %167 : vector<16x1xf32> to vector<16x4xf32>
    %169 = arith.addf %163, %168 : vector<16x4xf32>
    %cst_163 = arith.constant 0.000000e+00 : f32
    %170 = vector.broadcast %cst_163 : f32 to vector<16x4xf32>
    %171 = arith.maximumf %169, %170 : vector<16x4xf32>
    %c0_164 = arith.constant 0 : index
    %c0_165 = arith.constant 0 : index
    %172 = vector.load %arg8[%c0_164, %c0_165] : memref<16x1xf32, #tpu.memory_space<vmem>>, vector<16x1xf32>
    %173 = vector.broadcast %172 : vector<16x1xf32> to vector<16x4xf32>
    %174 = arith.addf %166, %173 : vector<16x4xf32>
    %cst_166 = arith.constant 0.000000e+00 : f32
    %175 = vector.broadcast %cst_166 : f32 to vector<16x4xf32>
    %176 = arith.maximumf %174, %175 : vector<16x4xf32>
    %cst_167 = arith.constant dense<0.000000e+00> : vector<16x8xf32>
    %177 = tpu.matmul %171, %6, %cst_167 {dimension_numbers = #tpu.dot_dimension_numbers<[1], [0], [0], [1], [0, 0, 1, 1], [], []>} : vector<16x4xf32>, vector<4x8xf32>, vector<16x8xf32> -> vector<16x8xf32>
    %cst_168 = arith.constant dense<0.000000e+00> : vector<16x8xf32>
    %178 = tpu.matmul %176, %15, %cst_168 {dimension_numbers = #tpu.dot_dimension_numbers<[1], [0], [0], [1], [0, 0, 1, 1], [], []>} : vector<16x4xf32>, vector<4x8xf32>, vector<16x8xf32> -> vector<16x8xf32>
    %179 = arith.addf %177, %178 : vector<16x8xf32>
    %cst_169 = arith.constant 0.000000e+00 : f32
    %180 = vector.broadcast %cst_169 : f32 to vector<16x11xf32>
    %c0_170 = arith.constant 0 : index
    %c0_171 = arith.constant 0 : index
    %181 = vector.load %arg18[%c0_170, %c0_171] : memref<16x11xf32, #tpu.memory_space<vmem>>, vector<16x11xf32>
    tpu.vector_store %arg18[%c0_170, %c0_171], %180 {strides = array<i32>} : memref<16x11xf32, #tpu.memory_space<vmem>>, vector<16x11xf32>,
    %c0_172 = arith.constant 0 : index
    %c1_173 = arith.constant 1 : index
    %182 = vector.load %arg18[%c0_172, %c1_173] : memref<16x11xf32, #tpu.memory_space<vmem>>, vector<16x8xf32>
    tpu.vector_store %arg18[%c0_172, %c1_173], %179 {strides = array<i32>} : memref<16x11xf32, #tpu.memory_space<vmem>>, vector<16x8xf32>,
    %c0_174 = arith.constant 0 : index
    %c0_175 = arith.constant 0 : index
    %183 = vector.load %arg18[%c0_174, %c0_175] : memref<16x11xf32, #tpu.memory_space<vmem>>, vector<16x8xf32>
    %c0_176 = arith.constant 0 : index
    %c0_177 = arith.constant 0 : index
    %184 = vector.load %arg19[%c0_176, %c0_177] : memref<64x8xf32, #tpu.memory_space<vmem>>, vector<16x8xf32>
    tpu.vector_store %arg19[%c0_176, %c0_177], %183 {strides = array<i32>} : memref<64x8xf32, #tpu.memory_space<vmem>>, vector<16x8xf32>,
    %c0_178 = arith.constant 0 : index
    %c1_179 = arith.constant 1 : index
    %185 = vector.load %arg18[%c0_178, %c1_179] : memref<16x11xf32, #tpu.memory_space<vmem>>, vector<16x8xf32>
    %c16_180 = arith.constant 16 : index
    %c0_181 = arith.constant 0 : index
    %186 = vector.load %arg19[%c16_180, %c0_181] : memref<64x8xf32, #tpu.memory_space<vmem>>, vector<16x8xf32>
    tpu.vector_store %arg19[%c16_180, %c0_181], %185 {strides = array<i32>} : memref<64x8xf32, #tpu.memory_space<vmem>>, vector<16x8xf32>,
    %c0_182 = arith.constant 0 : index
    %c2_183 = arith.constant 2 : index
    %187 = vector.load %arg18[%c0_182, %c2_183] : memref<16x11xf32, #tpu.memory_space<vmem>>, vector<16x8xf32>
    %c32_184 = arith.constant 32 : index
    %c0_185 = arith.constant 0 : index
    %188 = vector.load %arg19[%c32_184, %c0_185] : memref<64x8xf32, #tpu.memory_space<vmem>>, vector<16x8xf32>
    tpu.vector_store %arg19[%c32_184, %c0_185], %187 {strides = array<i32>} : memref<64x8xf32, #tpu.memory_space<vmem>>, vector<16x8xf32>,
    %c0_186 = arith.constant 0 : index
    %c3_187 = arith.constant 3 : index
    %189 = vector.load %arg18[%c0_186, %c3_187] : memref<16x11xf32, #tpu.memory_space<vmem>>, vector<16x8xf32>
    %c48_188 = arith.constant 48 : index
    %c0_189 = arith.constant 0 : index
    %190 = vector.load %arg19[%c48_188, %c0_189] : memref<64x8xf32, #tpu.memory_space<vmem>>, vector<16x8xf32>
    tpu.vector_store %arg19[%c48_188, %c0_189], %189 {strides = array<i32>} : memref<64x8xf32, #tpu.memory_space<vmem>>, vector<16x8xf32>,
    %c0_190 = arith.constant 0 : index
    %c0_191 = arith.constant 0 : index
    %191 = vector.load %arg9[%c0_190, %c0_191] : memref<32x48xf32, #tpu.memory_space<vmem>>, vector<32x48xf32>
    %c0_192 = arith.constant 0 : index
    %c0_193 = arith.constant 0 : index
    %192 = vector.load %arg19[%c0_192, %c0_193] : memref<64x8xf32, #tpu.memory_space<vmem>>, vector<48x8xf32>
    %cst_194 = arith.constant dense<0.000000e+00> : vector<32x8xf32>
    %193 = tpu.matmul %191, %192, %cst_194 {dimension_numbers = #tpu.dot_dimension_numbers<[1], [0], [0], [1], [0, 0, 1, 1], [], []>} : vector<32x48xf32>, vector<48x8xf32>, vector<32x8xf32> -> vector<32x8xf32>
    %c0_195 = arith.constant 0 : index
    %c0_196 = arith.constant 0 : index
    %194 = vector.load %arg10[%c0_195, %c0_196] : memref<32x64xf32, #tpu.memory_space<vmem>>, vector<32x64xf32>
    %c0_197 = arith.constant 0 : index
    %c0_198 = arith.constant 0 : index
    %195 = vector.load %arg19[%c0_197, %c0_198] : memref<64x8xf32, #tpu.memory_space<vmem>>, vector<64x8xf32>
    %cst_199 = arith.constant dense<0.000000e+00> : vector<32x8xf32>
    %196 = tpu.matmul %194, %195, %cst_199 {dimension_numbers = #tpu.dot_dimension_numbers<[1], [0], [0], [1], [0, 0, 1, 1], [], []>} : vector<32x64xf32>, vector<64x8xf32>, vector<32x8xf32> -> vector<32x8xf32>
    %c0_200 = arith.constant 0 : index
    %c0_201 = arith.constant 0 : index
    %197 = vector.load %arg11[%c0_200, %c0_201] : memref<32x1xf32, #tpu.memory_space<vmem>>, vector<32x1xf32>
    %198 = vector.broadcast %197 : vector<32x1xf32> to vector<32x8xf32>
    %199 = arith.addf %193, %198 : vector<32x8xf32>
    %cst_202 = arith.constant 0.000000e+00 : f32
    %200 = vector.broadcast %cst_202 : f32 to vector<32x8xf32>
    %201 = arith.maximumf %199, %200 : vector<32x8xf32>
    %c0_203 = arith.constant 0 : index
    %c0_204 = arith.constant 0 : index
    %202 = vector.load %arg11[%c0_203, %c0_204] : memref<32x1xf32, #tpu.memory_space<vmem>>, vector<32x1xf32>
    %203 = vector.broadcast %202 : vector<32x1xf32> to vector<32x8xf32>
    %204 = arith.addf %196, %203 : vector<32x8xf32>
    %cst_205 = arith.constant 0.000000e+00 : f32
    %205 = vector.broadcast %cst_205 : f32 to vector<32x8xf32>
    %206 = arith.maximumf %204, %205 : vector<32x8xf32>
    %cst_206 = arith.constant dense<0.000000e+00> : vector<32x16xf32>
    %207 = tpu.matmul %201, %22, %cst_206 {dimension_numbers = #tpu.dot_dimension_numbers<[1], [0], [0], [1], [0, 0, 1, 1], [], []>} : vector<32x8xf32>, vector<8x16xf32>, vector<32x16xf32> -> vector<32x16xf32>
    %cst_207 = arith.constant dense<0.000000e+00> : vector<32x16xf32>
    %208 = tpu.matmul %206, %31, %cst_207 {dimension_numbers = #tpu.dot_dimension_numbers<[1], [0], [0], [1], [0, 0, 1, 1], [], []>} : vector<32x8xf32>, vector<8x16xf32>, vector<32x16xf32> -> vector<32x16xf32>
    %209 = arith.addf %207, %208 : vector<32x16xf32>
    %cst_208 = arith.constant 0.000000e+00 : f32
    %210 = vector.broadcast %cst_208 : f32 to vector<32x22xf32>
    %c0_209 = arith.constant 0 : index
    %c0_210 = arith.constant 0 : index
    %211 = vector.load %arg20[%c0_209, %c0_210] : memref<32x22xf32, #tpu.memory_space<vmem>>, vector<32x22xf32>
    tpu.vector_store %arg20[%c0_209, %c0_210], %210 {strides = array<i32>} : memref<32x22xf32, #tpu.memory_space<vmem>>, vector<32x22xf32>,
    %c0_211 = arith.constant 0 : index
    %c3_212 = arith.constant 3 : index
    %212 = vector.load %arg20[%c0_211, %c3_212] : memref<32x22xf32, #tpu.memory_space<vmem>>, vector<32x16xf32>
    tpu.vector_store %arg20[%c0_211, %c3_212], %209 {strides = array<i32>} : memref<32x22xf32, #tpu.memory_space<vmem>>, vector<32x16xf32>,
    %c0_213 = arith.constant 0 : index
    %c0_214 = arith.constant 0 : index
    %213 = vector.load %arg20[%c0_213, %c0_214] : memref<32x22xf32, #tpu.memory_space<vmem>>, vector<32x16xf32>
    %c0_215 = arith.constant 0 : index
    %c0_216 = arith.constant 0 : index
    %214 = vector.load %arg21[%c0_215, %c0_216] : memref<224x16xf32, #tpu.memory_space<vmem>>, vector<32x16xf32>
    tpu.vector_store %arg21[%c0_215, %c0_216], %213 {strides = array<i32>} : memref<224x16xf32, #tpu.memory_space<vmem>>, vector<32x16xf32>,
    %c0_217 = arith.constant 0 : index
    %c1_218 = arith.constant 1 : index
    %215 = vector.load %arg20[%c0_217, %c1_218] : memref<32x22xf32, #tpu.memory_space<vmem>>, vector<32x16xf32>
    %c32_219 = arith.constant 32 : index
    %c0_220 = arith.constant 0 : index
    %216 = vector.load %arg21[%c32_219, %c0_220] : memref<224x16xf32, #tpu.memory_space<vmem>>, vector<32x16xf32>
    tpu.vector_store %arg21[%c32_219, %c0_220], %215 {strides = array<i32>} : memref<224x16xf32, #tpu.memory_space<vmem>>, vector<32x16xf32>,
    %c0_221 = arith.constant 0 : index
    %c2_222 = arith.constant 2 : index
    %217 = vector.load %arg20[%c0_221, %c2_222] : memref<32x22xf32, #tpu.memory_space<vmem>>, vector<32x16xf32>
    %c64_223 = arith.constant 64 : index
    %c0_224 = arith.constant 0 : index
    %218 = vector.load %arg21[%c64_223, %c0_224] : memref<224x16xf32, #tpu.memory_space<vmem>>, vector<32x16xf32>
    tpu.vector_store %arg21[%c64_223, %c0_224], %217 {strides = array<i32>} : memref<224x16xf32, #tpu.memory_space<vmem>>, vector<32x16xf32>,
    %c0_225 = arith.constant 0 : index
    %c3_226 = arith.constant 3 : index
    %219 = vector.load %arg20[%c0_225, %c3_226] : memref<32x22xf32, #tpu.memory_space<vmem>>, vector<32x16xf32>
    %c96_227 = arith.constant 96 : index
    %c0_228 = arith.constant 0 : index
    %220 = vector.load %arg21[%c96_227, %c0_228] : memref<224x16xf32, #tpu.memory_space<vmem>>, vector<32x16xf32>
    tpu.vector_store %arg21[%c96_227, %c0_228], %219 {strides = array<i32>} : memref<224x16xf32, #tpu.memory_space<vmem>>, vector<32x16xf32>,
    %c0_229 = arith.constant 0 : index
    %c4_230 = arith.constant 4 : index
    %221 = vector.load %arg20[%c0_229, %c4_230] : memref<32x22xf32, #tpu.memory_space<vmem>>, vector<32x16xf32>
    %c128_231 = arith.constant 128 : index
    %c0_232 = arith.constant 0 : index
    %222 = vector.load %arg21[%c128_231, %c0_232] : memref<224x16xf32, #tpu.memory_space<vmem>>, vector<32x16xf32>
    tpu.vector_store %arg21[%c128_231, %c0_232], %221 {strides = array<i32>} : memref<224x16xf32, #tpu.memory_space<vmem>>, vector<32x16xf32>,
    %c0_233 = arith.constant 0 : index
    %c5_234 = arith.constant 5 : index
    %223 = vector.load %arg20[%c0_233, %c5_234] : memref<32x22xf32, #tpu.memory_space<vmem>>, vector<32x16xf32>
    %c160_235 = arith.constant 160 : index
    %c0_236 = arith.constant 0 : index
    %224 = vector.load %arg21[%c160_235, %c0_236] : memref<224x16xf32, #tpu.memory_space<vmem>>, vector<32x16xf32>
    tpu.vector_store %arg21[%c160_235, %c0_236], %223 {strides = array<i32>} : memref<224x16xf32, #tpu.memory_space<vmem>>, vector<32x16xf32>,
    %c0_237 = arith.constant 0 : index
    %c6_238 = arith.constant 6 : index
    %225 = vector.load %arg20[%c0_237, %c6_238] : memref<32x22xf32, #tpu.memory_space<vmem>>, vector<32x16xf32>
    %c192_239 = arith.constant 192 : index
    %c0_240 = arith.constant 0 : index
    %226 = vector.load %arg21[%c192_239, %c0_240] : memref<224x16xf32, #tpu.memory_space<vmem>>, vector<32x16xf32>
    tpu.vector_store %arg21[%c192_239, %c0_240], %225 {strides = array<i32>} : memref<224x16xf32, #tpu.memory_space<vmem>>, vector<32x16xf32>,
    %c0_241 = arith.constant 0 : index
    %c0_242 = arith.constant 0 : index
    %227 = vector.load %arg12[%c0_241, %c0_242] : memref<8x224xf32, #tpu.memory_space<vmem>>, vector<8x224xf32>
    %c0_243 = arith.constant 0 : index
    %c0_244 = arith.constant 0 : index
    %228 = vector.load %arg21[%c0_243, %c0_244] : memref<224x16xf32, #tpu.memory_space<vmem>>, vector<224x16xf32>
    %cst_245 = arith.constant dense<0.000000e+00> : vector<8x16xf32>
    %229 = tpu.matmul %227, %228, %cst_245 {dimension_numbers = #tpu.dot_dimension_numbers<[1], [0], [0], [1], [0, 0, 1, 1], [], []>} : vector<8x224xf32>, vector<224x16xf32>, vector<8x16xf32> -> vector<8x16xf32>
    %c0_246 = arith.constant 0 : index
    %c0_247 = arith.constant 0 : index
    %230 = vector.load %arg13[%c0_246, %c0_247] : memref<8x1xf32, #tpu.memory_space<vmem>>, vector<8x1xf32>
    %231 = vector.broadcast %230 : vector<8x1xf32> to vector<8x16xf32>
    %232 = arith.addf %229, %231 : vector<8x16xf32>
    %c0_248 = arith.constant 0 : index
    %c0_249 = arith.constant 0 : index
    %c0_250 = arith.constant 0 : index
    %233 = vector.load %arg15[%c0_248, %c0_249, %c0_250] : memref<1x8x16xf32, #tpu.memory_space<vmem>>, vector<1x8x16xf32>
    %234 = vector.shape_cast %233 : vector<1x8x16xf32> to vector<8x16xf32>
    %235 = vector.shape_cast %232 : vector<8x16xf32> to vector<1x8x16xf32>
    tpu.vector_store %arg15[%c0_248, %c0_249, %c0_250], %235 {strides = array<i32>} : memref<1x8x16xf32, #tpu.memory_space<vmem>>, vector<1x8x16xf32>,
    return
  }
  func.func @transform_0(%arg0: i32) -> (i32, i32, i32) {
    %c0_i32 = arith.constant 0 : i32
    %c0_i32_0 = arith.constant 0 : i32
    %c0_i32_1 = arith.constant 0 : i32
    return %arg0, %c0_i32, %c0_i32_0 : i32, i32, i32
  }
  func.func @transform_1(%arg0: i32) -> (i32, i32, i32) {
    %c0_i32 = arith.constant 0 : i32
    %c0_i32_0 = arith.constant 0 : i32
    %c0_i32_1 = arith.constant 0 : i32
    return %arg0, %c0_i32, %c0_i32_0 : i32, i32, i32
  }
  func.func @transform_2(%arg0: i32) -> (i32, i32, i32) {
    %c0_i32 = arith.constant 0 : i32
    %c0_i32_0 = arith.constant 0 : i32
    %c0_i32_1 = arith.constant 0 : i32
    return %arg0, %c0_i32, %c0_i32_0 : i32, i32, i32
  }
  func.func @transform_3(%arg0: i32) -> (i32, i32) {
    %c0_i32 = arith.constant 0 : i32
    %c0_i32_0 = arith.constant 0 : i32
    %c0_i32_1 = arith.constant 0 : i32
    return %c0_i32, %c0_i32_0 : i32, i32
  }
  func.func @transform_4(%arg0: i32) -> (i32, i32) {
    %c0_i32 = arith.constant 0 : i32
    %c0_i32_0 = arith.constant 0 : i32
    %c0_i32_1 = arith.constant 0 : i32
    return %c0_i32, %c0_i32_0 : i32, i32
  }
  func.func @transform_5(%arg0: i32) -> (i32, i32) {
    %c0_i32 = arith.constant 0 : i32
    %c0_i32_0 = arith.constant 0 : i32
    %c0_i32_1 = arith.constant 0 : i32
    return %c0_i32, %c0_i32_0 : i32, i32
  }
  func.func @transform_6(%arg0: i32) -> (i32, i32) {
    %c0_i32 = arith.constant 0 : i32
    %c0_i32_0 = arith.constant 0 : i32
    %c0_i32_1 = arith.constant 0 : i32
    return %c0_i32, %c0_i32_0 : i32, i32
  }
  func.func @transform_7(%arg0: i32) -> (i32, i32) {
    %c0_i32 = arith.constant 0 : i32
    %c0_i32_0 = arith.constant 0 : i32
    %c0_i32_1 = arith.constant 0 : i32
    return %c0_i32, %c0_i32_0 : i32, i32
  }
  func.func @transform_8(%arg0: i32) -> (i32, i32) {
    %c0_i32 = arith.constant 0 : i32
    %c0_i32_0 = arith.constant 0 : i32
    %c0_i32_1 = arith.constant 0 : i32
    return %c0_i32, %c0_i32_0 : i32, i32
  }
  func.func @transform_9(%arg0: i32) -> (i32, i32) {
    %c0_i32 = arith.constant 0 : i32
    %c0_i32_0 = arith.constant 0 : i32
    %c0_i32_1 = arith.constant 0 : i32
    return %c0_i32, %c0_i32_0 : i32, i32
  }
  func.func @transform_10(%arg0: i32) -> (i32, i32) {
    %c0_i32 = arith.constant 0 : i32
    %c0_i32_0 = arith.constant 0 : i32
    %c0_i32_1 = arith.constant 0 : i32
    return %c0_i32, %c0_i32_0 : i32, i32
  }
  func.func @transform_11(%arg0: i32) -> (i32, i32) {
    %c0_i32 = arith.constant 0 : i32
    %c0_i32_0 = arith.constant 0 : i32
    %c0_i32_1 = arith.constant 0 : i32
    return %c0_i32, %c0_i32_0 : i32, i32
  }
  func.func @transform_12(%arg0: i32) -> (i32, i32) {
    %c0_i32 = arith.constant 0 : i32
    %c0_i32_0 = arith.constant 0 : i32
    %c0_i32_1 = arith.constant 0 : i32
    return %c0_i32, %c0_i32_0 : i32, i32
  }
  func.func @transform_13(%arg0: i32) -> (i32, i32, i32) {
    %c0_i32 = arith.constant 0 : i32
    %c0_i32_0 = arith.constant 0 : i32
    %c0_i32_1 = arith.constant 0 : i32
    return %arg0, %c0_i32, %c0_i32_0 : i32, i32, i32
  }
  func.func @transform_14(%arg0: i32) -> (i32, i32, i32) {
    %c0_i32 = arith.constant 0 : i32
    %c0_i32_0 = arith.constant 0 : i32
    %c0_i32_1 = arith.constant 0 : i32
    return %arg0, %c0_i32, %c0_i32_0 : i32, i32, i32
  }
}

</mosaic_0001>

<llo_original>
// kernel: convae_mtce_forward.2
$region0: #{convae_mtce_forward.2}
  #allocation0 [shape = 'u32[]', space=smem, size = 0x4, offset = 0x4, fixed_abs, tag = 'smem constant byte address 0x4 - core index']
  #allocation1 [shape = 'u32[144,128]{1,0:T(1,128)}', space=vmem, size = 0x12000, scoped, tag = 'internal scratch']
  #allocation2 [shape = 'f32[8,22]{1,0:T(8,128)}', space=vmem, size = 0x1000, scoped, tag = 'scratch operand']
  #allocation3 [shape = 'f32[56,16]{1,0:T(8,128)}', space=vmem, size = 0x7000, scoped, tag = 'scratch operand']
  #allocation4 [shape = 'f32[32,14]{1,0:T(8,128)}', space=vmem, size = 0x4000, scoped, tag = 'scratch operand']
  #allocation5 [shape = 'f32[224,8]{1,0:T(8,128)}', space=vmem, size = 0x1c000, scoped, tag = 'scratch operand']
  %s0 = inlined_call_operand.vmem [shape: f32[2,8,16], index: 0, kind: input, shape index: {}]
  %s1 = inlined_call_operand.vmem [shape: f32[32,56], index: 1, kind: input, shape index: {}]
  %s2 = inlined_call_operand.vmem [shape: f32[32,1], index: 2, kind: input, shape index: {}]
  %s3 = inlined_call_operand.vmem [shape: f32[16,224], index: 3, kind: input, shape index: {}]
  %s4 = inlined_call_operand.vmem [shape: f32[16,1], index: 4, kind: input, shape index: {}]
  %s5 = inlined_call_operand.vmem [shape: f32[16,32], index: 5, kind: input, shape index: {}]
  %s6 = inlined_call_operand.vmem [shape: f32[16,1], index: 6, kind: input, shape index: {}]
  %s7 = inlined_call_operand.vmem [shape: f32[16,16], index: 7, kind: input, shape index: {}]
  %s8 = inlined_call_operand.vmem [shape: f32[16,1], index: 8, kind: input, shape index: {}]
  %s9 = inlined_call_operand.vmem [shape: f32[2,16,4], index: 9, kind: output, shape index: {0}]
  %s10 = inlined_call_operand.vmem [shape: f32[2,16,12], index: 10, kind: output, shape index: {1}]
  %s11 = inlined_call_operand.vmem [shape: f32[2,1,12], index: 11, kind: output, shape index: {2}]
  %12 = xla_tuple %s9, %s10, %s11
  %s13 = sld [smem:[#allocation0]]
  $region85: #{convae_mtce_forward.2} parent=0
    _
  %s15 = ssub.s32 1, %s13
  %s16 = scalar_select 0, %s15, %s13
  loop: start=0, step=1, limit=4
  $region2: #{convae_mtce_forward.2} parent=0 // loop_pre_header
    _
  $region3: #{convae_mtce_forward.2} parent=0 // loop_header
    %s18 = sphi 0, %s22
    %p19 = scmp.ge.s32.totalorder %s18, 4
    %s28 = sphi 0, %s30
    %s31 = sphi 0, %s28
    %s32 = sphi 0, %s31
    %s48 = sphi 0, %s32
    %s52 = sphi 0, %s52
    %s54 = sphi 0, %s52
    %s55 = sphi 0, %s54
    %s69 = sphi 0, %s55
    %s73 = sphi 0, %s73
    %s75 = sphi 0, %s73
    %s76 = sphi 0, %s75
    %s90 = sphi 0, %s76
    %s94 = sphi 0, %s94
    %s96 = sphi 0, %s94
    %s97 = sphi 0, %s96
    %s111 = sphi 0, %s97
    %s115 = sphi 0, %s115
    %s117 = sphi 0, %s115
    %s118 = sphi 0, %s117
    %s132 = sphi 0, %s118
    %s136 = sphi 0, %s136
    %s138 = sphi 0, %s136
    %s139 = sphi 0, %s138
    %s153 = sphi 0, %s139
    %s157 = sphi 0, %s157
    %s159 = sphi 0, %s157
    %s160 = sphi 0, %s159
    %s174 = sphi 0, %s160
    %s178 = sphi 0, %s178
    %s180 = sphi 0, %s178
    %s181 = sphi 0, %s180
    %s195 = sphi 0, %s181
    %s199 = sphi 0, %s199
    %s201 = sphi 0, %s199
    %s202 = sphi 0, %s201
    %s216 = sphi 0, %s202
    %s222 = sphi 0, %s224
    %s225 = sphi 0, %s222
    %s226 = sphi 0, %s225
    %s242 = sphi 0, %s226
    %s248 = sphi 0, %s250
    %s251 = sphi 0, %s248
    %s252 = sphi 0, %s251
    %s268 = sphi 0, %s252
    %s274 = sphi 0, %s276
    %s277 = sphi 0, %s274
    %s278 = sphi 0, %s277
    %s294 = sphi 0, %s278
  $region4: #{convae_mtce_forward.2} parent=0 // loop_header_branch
    %21 = sbr.rel (%p19) target = $region8
  $region5: #{convae_mtce_forward.2} parent=0 // loop_body
    %s23 = ssub.s32 %s18, 1
    %s24 = ssub.s32 %s18, 2
    %s25 = sadd.s32 %s18, 1
    %s26 = ssub.s32 %s18, %s25
    %p27 = scmp.eq.s32.totalorder %s26, 0
    %s29 = sadd.s32 %s28, 1
    %s30 = scalar_select %p27, %s28, %s29
    %p33 = pneg %p27
    %p34 = scmp.eq.s32.totalorder %s18, 1
    %p35 = por %p33, %p34
    %p36 = scmp.ne.s32.totalorder %s28, %s31
    %p37 = scmp.eq.s32.totalorder %s18, 0
    %p38 = por %p36, %p37
    %p39 = scmp.ne.s32.totalorder %s28, %s31
    %p40 = scmp.eq.s32.totalorder %s23, 1
    %p41 = por %p39, %p40
    %p42 = scmp.ne.s32.totalorder %s31, %s32
    %p43 = scmp.eq.s32.totalorder %s23, 0
    %p44 = por %p42, %p43
    %p45 = scmp.ne.s32.totalorder %s31, %s32
    %p46 = scmp.eq.s32.totalorder %s24, 1
    %p47 = por %p45, %p46
    %p49 = scmp.ne.s32.totalorder %s32, %s48
    %p50 = scmp.eq.s32.totalorder %s24, 0
    %p51 = por %p49, %p50
    %s53 = sadd.s32 %s52, 1
    %p56 = scmp.eq.s32.totalorder %s18, 1
    %p57 = scmp.ne.s32.totalorder %s52, %s54
    %p58 = scmp.eq.s32.totalorder %s18, 0
    %p59 = por %p57, %p58
    %p60 = scmp.ne.s32.totalorder %s52, %s54
    %p61 = scmp.eq.s32.totalorder %s23, 1
    %p62 = por %p60, %p61
    %p63 = scmp.ne.s32.totalorder %s54, %s55
    %p64 = scmp.eq.s32.totalorder %s23, 0
    %p65 = por %p63, %p64
    %p66 = scmp.ne.s32.totalorder %s54, %s55
    %p67 = scmp.eq.s32.totalorder %s24, 1
    %p68 = por %p66, %p67
    %p70 = scmp.ne.s32.totalorder %s55, %s69
    %p71 = scmp.eq.s32.totalorder %s24, 0
    %p72 = por %p70, %p71
    %s74 = sadd.s32 %s73, 1
    %p77 = scmp.eq.s32.totalorder %s18, 1
    %p78 = scmp.ne.s32.totalorder %s73, %s75
    %p79 = scmp.eq.s32.totalorder %s18, 0
    %p80 = por %p78, %p79
    %p81 = scmp.ne.s32.totalorder %s73, %s75
    %p82 = scmp.eq.s32.totalorder %s23, 1
    %p83 = por %p81, %p82
    %p84 = scmp.ne.s32.totalorder %s75, %s76
    %p85 = scmp.eq.s32.totalorder %s23, 0
    %p86 = por %p84, %p85
    %p87 = scmp.ne.s32.totalorder %s75, %s76
    %p88 = scmp.eq.s32.totalorder %s24, 1
    %p89 = por %p87, %p88
    %p91 = scmp.ne.s32.totalorder %s76, %s90
    %p92 = scmp.eq.s32.totalorder %s24, 0
    %p93 = por %p91, %p92
    %s95 = sadd.s32 %s94, 1
    %p98 = scmp.eq.s32.totalorder %s18, 1
    %p99 = scmp.ne.s32.totalorder %s94, %s96
    %p100 = scmp.eq.s32.totalorder %s18, 0
    %p101 = por %p99, %p100
    %p102 = scmp.ne.s32.totalorder %s94, %s96
    %p103 = scmp.eq.s32.totalorder %s23, 1
    %p104 = por %p102, %p103
    %p105 = scmp.ne.s32.totalorder %s96, %s97
    %p106 = scmp.eq.s32.totalorder %s23, 0
    %p107 = por %p105, %p106
    %p108 = scmp.ne.s32.totalorder %s96, %s97
    %p109 = scmp.eq.s32.totalorder %s24, 1
    %p110 = por %p108, %p109
    %p112 = scmp.ne.s32.totalorder %s97, %s111
    %p113 = scmp.eq.s32.totalorder %s24, 0
    %p114 = por %p112, %p113
    %s116 = sadd.s32 %s115, 1
    %p119 = scmp.eq.s32.totalorder %s18, 1
    %p120 = scmp.ne.s32.totalorder %s115, %s117
    %p121 = scmp.eq.s32.totalorder %s18, 0
    %p122 = por %p120, %p121
    %p123 = scmp.ne.s32.totalorder %s115, %s117
    %p124 = scmp.eq.s32.totalorder %s23, 1
    %p125 = por %p123, %p124
    %p126 = scmp.ne.s32.totalorder %s117, %s118
    %p127 = scmp.eq.s32.totalorder %s23, 0
    %p128 = por %p126, %p127
    %p129 = scmp.ne.s32.totalorder %s117, %s118
    %p130 = scmp.eq.s32.totalorder %s24, 1
    %p131 = por %p129, %p130
    %p133 = scmp.ne.s32.totalorder %s118, %s132
    %p134 = scmp.eq.s32.totalorder %s24, 0
    %p135 = por %p133, %p134
    %s137 = sadd.s32 %s136, 1
    %p140 = scmp.eq.s32.totalorder %s18, 1
    %p141 = scmp.ne.s32.totalorder %s136, %s138
    %p142 = scmp.eq.s32.totalorder %s18, 0
    %p143 = por %p141, %p142
    %p144 = scmp.ne.s32.totalorder %s136, %s138
    %p145 = scmp.eq.s32.totalorder %s23, 1
    %p146 = por %p144, %p145
    %p147 = scmp.ne.s32.totalorder %s138, %s139
    %p148 = scmp.eq.s32.totalorder %s23, 0
    %p149 = por %p147, %p148
    %p150 = scmp.ne.s32.totalorder %s138, %s139
    %p151 = scmp.eq.s32.totalorder %s24, 1
    %p152 = por %p150, %p151
    %p154 = scmp.ne.s32.totalorder %s139, %s153
    %p155 = scmp.eq.s32.totalorder %s24, 0
    %p156 = por %p154, %p155
    %s158 = sadd.s32 %s157, 1
    %p161 = scmp.eq.s32.totalorder %s18, 1
    %p162 = scmp.ne.s32.totalorder %s157, %s159
    %p163 = scmp.eq.s32.totalorder %s18, 0
    %p164 = por %p162, %p163
    %p165 = scmp.ne.s32.totalorder %s157, %s159
    %p166 = scmp.eq.s32.totalorder %s23, 1
    %p167 = por %p165, %p166
    %p168 = scmp.ne.s32.totalorder %s159, %s160
    %p169 = scmp.eq.s32.totalorder %s23, 0
    %p170 = por %p168, %p169
    %p171 = scmp.ne.s32.totalorder %s159, %s160
    %p172 = scmp.eq.s32.totalorder %s24, 1
    %p173 = por %p171, %p172
    %p175 = scmp.ne.s32.totalorder %s160, %s174
    %p176 = scmp.eq.s32.totalorder %s24, 0
    %p177 = por %p175, %p176
    %s179 = sadd.s32 %s178, 1
    %p182 = scmp.eq.s32.totalorder %s18, 1
    %p183 = scmp.ne.s32.totalorder %s178, %s180
    %p184 = scmp.eq.s32.totalorder %s18, 0
    %p185 = por %p183, %p184
    %p186 = scmp.ne.s32.totalorder %s178, %s180
    %p187 = scmp.eq.s32.totalorder %s23, 1
    %p188 = por %p186, %p187
    %p189 = scmp.ne.s32.totalorder %s180, %s181
    %p190 = scmp.eq.s32.totalorder %s23, 0
    %p191 = por %p189, %p190
    %p192 = scmp.ne.s32.totalorder %s180, %s181
    %p193 = scmp.eq.s32.totalorder %s24, 1
    %p194 = por %p192, %p193
    %p196 = scmp.ne.s32.totalorder %s181, %s195
    %p197 = scmp.eq.s32.totalorder %s24, 0
    %p198 = por %p196, %p197
    %s200 = sadd.s32 %s199, 1
    %p203 = scmp.eq.s32.totalorder %s18, 1
    %p204 = scmp.ne.s32.totalorder %s199, %s201
    %p205 = scmp.eq.s32.totalorder %s18, 0
    %p206 = por %p204, %p205
    %p207 = scmp.ne.s32.totalorder %s199, %s201
    %p208 = scmp.eq.s32.totalorder %s23, 1
    %p209 = por %p207, %p208
    %p210 = scmp.ne.s32.totalorder %s201, %s202
    %p211 = scmp.eq.s32.totalorder %s23, 0
    %p212 = por %p210, %p211
    %p213 = scmp.ne.s32.totalorder %s201, %s202
    %p214 = scmp.eq.s32.totalorder %s24, 1
    %p215 = por %p213, %p214
    %p217 = scmp.ne.s32.totalorder %s202, %s216
    %p218 = scmp.eq.s32.totalorder %s24, 0
    %p219 = por %p217, %p218
    %s220 = ssub.s32 %s18, %s25
    %p221 = scmp.eq.s32.totalorder %s220, 0
    %s223 = sadd.s32 %s222, 1
    %s224 = scalar_select %p221, %s222, %s223
    %p227 = pneg %p221
    %p228 = scmp.eq.s32.totalorder %s18, 1
    %p229 = por %p227, %p228
    %p230 = scmp.ne.s32.totalorder %s222, %s225
    %p231 = scmp.eq.s32.totalorder %s18, 0
    %p232 = por %p230, %p231
    %p233 = scmp.ne.s32.totalorder %s222, %s225
    %p234 = scmp.eq.s32.totalorder %s23, 1
    %p235 = por %p233, %p234
    %p236 = scmp.ne.s32.totalorder %s225, %s226
    %p237 = scmp.eq.s32.totalorder %s23, 0
    %p238 = por %p236, %p237
    %p239 = scmp.ne.s32.totalorder %s225, %s226
    %p240 = scmp.eq.s32.totalorder %s24, 1
    %p241 = por %p239, %p240
    %p243 = scmp.ne.s32.totalorder %s226, %s242
    %p244 = scmp.eq.s32.totalorder %s24, 0
    %p245 = por %p243, %p244
    %s246 = ssub.s32 %s18, %s25
    %p247 = scmp.eq.s32.totalorder %s246, 0
    %s249 = sadd.s32 %s248, 1
    %s250 = scalar_select %p247, %s248, %s249
    %p253 = pneg %p247
    %p254 = scmp.eq.s32.totalorder %s18, 1
    %p255 = por %p253, %p254
    %p256 = scmp.ne.s32.totalorder %s248, %s251
    %p257 = scmp.eq.s32.totalorder %s18, 0
    %p258 = por %p256, %p257
    %p259 = scmp.ne.s32.totalorder %s248, %s251
    %p260 = scmp.eq.s32.totalorder %s23, 1
    %p261 = por %p259, %p260
    %p262 = scmp.ne.s32.totalorder %s251, %s252
    %p263 = scmp.eq.s32.totalorder %s23, 0
    %p264 = por %p262, %p263
    %p265 = scmp.ne.s32.totalorder %s251, %s252
    %p266 = scmp.eq.s32.totalorder %s24, 1
    %p267 = por %p265, %p266
    %p269 = scmp.ne.s32.totalorder %s252, %s268
    %p270 = scmp.eq.s32.totalorder %s24, 0
    %p271 = por %p269, %p270
    %s272 = ssub.s32 %s18, %s25
    %p273 = scmp.eq.s32.totalorder %s272, 0
    %s275 = sadd.s32 %s274, 1
    %s276 = scalar_select %p273, %s274, %s275
    %p279 = pneg %p273
    %p280 = scmp.eq.s32.totalorder %s18, 1
    %p281 = por %p279, %p280
    %p282 = scmp.ne.s32.totalorder %s274, %s277
    %p283 = scmp.eq.s32.totalorder %s18, 0
    %p284 = por %p282, %p283
    %p285 = scmp.ne.s32.totalorder %s274, %s277
    %p286 = scmp.eq.s32.totalorder %s23, 1
    %p287 = por %p285, %p286
    %p288 = scmp.ne.s32.totalorder %s277, %s278
    %p289 = scmp.eq.s32.totalorder %s23, 0
    %p290 = por %p288, %p289
    %p291 = scmp.ne.s32.totalorder %s277, %s278
    %p292 = scmp.eq.s32.totalorder %s24, 1
    %p293 = por %p291, %p292
    %p295 = scmp.ne.s32.totalorder %s278, %s294
    %p296 = scmp.eq.s32.totalorder %s24, 0
    %p297 = por %p295, %p296
    %p298 = scmp.le.s32.totalorder 1, %s18
    %p299 = scmp.lt.s32.totalorder %s18, 3
    %p300 = pnand %p298, %p299
    %p301 = pneg %p300
    // Predicated region
    $region9: #{convae_mtce_forward.2} parent=5 // pred_check
      _
    $region10: #{convae_mtce_forward.2} parent=5 // pred_check_branch
      %303 = sbr.rel (%p300) target = $region12
    $region11: #{convae_mtce_forward.2} parent=5 // pred_region
      %s304 = ssub.s32 %s18, 1
      // Predicated region
      $region13: #{convae_mtce_forward.2} parent=11 // pred_check
        %p305 = pneg %p65
      $region14: #{convae_mtce_forward.2} parent=11 // pred_check_branch
        %307 = sbr.rel (%p305) target = $region16
      $region15: #{convae_mtce_forward.2} parent=11 // pred_region
        _
      $region16: #{convae_mtce_forward.2} parent=11 // pred_fallthru
        _
      // Predicated region
      $region17: #{convae_mtce_forward.2} parent=11 // pred_check
        %p308 = pneg %p86
      $region18: #{convae_mtce_forward.2} parent=11 // pred_check_branch
        %310 = sbr.rel (%p308) target = $region20
      $region19: #{convae_mtce_forward.2} parent=11 // pred_region
        _
      $region20: #{convae_mtce_forward.2} parent=11 // pred_fallthru
        _
      // Predicated region
      $region21: #{convae_mtce_forward.2} parent=11 // pred_check
        %p311 = pneg %p107
      $region22: #{convae_mtce_forward.2} parent=11 // pred_check_branch
        %313 = sbr.rel (%p311) target = $region24
      $region23: #{convae_mtce_forward.2} parent=11 // pred_region
        _
      $region24: #{convae_mtce_forward.2} parent=11 // pred_fallthru
        _
      // Predicated region
      $region25: #{convae_mtce_forward.2} parent=11 // pred_check
        %p314 = pneg %p128
      $region26: #{convae_mtce_forward.2} parent=11 // pred_check_branch
        %316 = sbr.rel (%p314) target = $region28
      $region27: #{convae_mtce_forward.2} parent=11 // pred_region
        _
      $region28: #{convae_mtce_forward.2} parent=11 // pred_fallthru
        _
      // Predicated region
      $region29: #{convae_mtce_forward.2} parent=11 // pred_check
        %p317 = pneg %p149
      $region30: #{convae_mtce_forward.2} parent=11 // pred_check_branch
        %319 = sbr.rel (%p317) target = $region32
      $region31: #{convae_mtce_forward.2} parent=11 // pred_region
        _
      $region32: #{convae_mtce_forward.2} parent=11 // pred_fallthru
        _
      // Predicated region
      $region33: #{convae_mtce_forward.2} parent=11 // pred_check
        %p320 = pneg %p170
      $region34: #{convae_mtce_forward.2} parent=11 // pred_check_branch
        %322 = sbr.rel (%p320) target = $region36
      $region35: #{convae_mtce_forward.2} parent=11 // pred_region
        _
      $region36: #{convae_mtce_forward.2} parent=11 // pred_fallthru
        _
      // Predicated region
      $region37: #{convae_mtce_forward.2} parent=11 // pred_check
        %p323 = pneg %p191
      $region38: #{convae_mtce_forward.2} parent=11 // pred_check_branch
        %325 = sbr.rel (%p323) target = $region40
      $region39: #{convae_mtce_forward.2} parent=11 // pred_region
        _
      $region40: #{convae_mtce_forward.2} parent=11 // pred_fallthru
        _
      // Predicated region
      $region41: #{convae_mtce_forward.2} parent=11 // pred_check
        %p326 = pneg %p212
      $region42: #{convae_mtce_forward.2} parent=11 // pred_check_branch
        %328 = sbr.rel (%p326) target = $region44
      $region43: #{convae_mtce_forward.2} parent=11 // pred_region
        _
      $region44: #{convae_mtce_forward.2} parent=11 // pred_fallthru
        _
    $region12: #{convae_mtce_forward.2} parent=5 // pred_fallthru
      _
    %p329 = scmp.lt.s32.totalorder %s18, 2
    // Predicated region
    $region45: #{convae_mtce_forward.2} parent=5 // pred_check
      %p330 = pneg %p329
    $region46: #{convae_mtce_forward.2} parent=5 // pred_check_branch
      %332 = sbr.rel (%p330) target = $region48
    $region47: #{convae_mtce_forward.2} parent=5 // pred_region
      // Predicated region
      $region49: #{convae_mtce_forward.2} parent=47 // pred_check
        %p333 = pneg %p38
      $region50: #{convae_mtce_forward.2} parent=47 // pred_check_branch
        %335 = sbr.rel (%p333) target = $region52
      $region51: #{convae_mtce_forward.2} parent=47 // pred_region
        %p336 = scmp.lt.s32.totalorder %s18, 1
        %s337 = scalar_select %p336, %s18, 1
        %s338 = smul.addr %s337, 8
        %s339 = scalar_lea.vmem %s0, %s338
      $region52: #{convae_mtce_forward.2} parent=47 // pred_fallthru
        _
    $region48: #{convae_mtce_forward.2} parent=5 // pred_fallthru
      _
    %p340 = scmp.le.s32.totalorder 1, %s18
    %p341 = scmp.lt.s32.totalorder %s18, 3
    %p342 = pnand %p340, %p341
    %p343 = pneg %p342
    // Predicated region
    $region53: #{convae_mtce_forward.2} parent=5 // pred_check
      _
    $region54: #{convae_mtce_forward.2} parent=5 // pred_check_branch
      %345 = sbr.rel (%p342) target = $region56
    $region55: #{convae_mtce_forward.2} parent=5 // pred_region
      %s346 = ssub.s32 %s18, 1
      %p347 = scmp.lt.s32.totalorder %s23, 1
      %s348 = scalar_select %p347, %s23, 1
      %s349 = smul.addr %s348, 8
      %s350 = scalar_lea.vmem %s0, %s349
      %p351 = pneg %p44
      %p352 = pneg %p41
      %p353 = pneg %p65
      %p354 = pneg %p62
      %p355 = pneg %p86
      %p356 = pneg %p83
      %p357 = pneg %p107
      %p358 = pneg %p104
      %p359 = pneg %p128
      %p360 = pneg %p125
      %p361 = pneg %p149
      %p362 = pneg %p146
      %p363 = pneg %p170
      %p364 = pneg %p167
      %p365 = pneg %p191
      %p366 = pneg %p188
      %p367 = pneg %p212
      %p368 = pneg %p209
      %p369 = pneg %p238
      %p370 = pneg %p235
      %p371 = scmp.lt.s32.totalorder %s23, 1
      %s372 = scalar_select %p371, %s23, 1
      %s373 = smul.addr %s372, 2
      %s374 = smul.addr %s373, 8
      %s375 = scalar_lea.vmem %s9, %s374
      %p376 = pneg %p264
      %p377 = pneg %p261
      %p378 = scmp.lt.s32.totalorder %s23, 1
      %s379 = scalar_select %p378, %s23, 1
      %s380 = smul.addr %s379, 2
      %s381 = smul.addr %s380, 8
      %s382 = scalar_lea.vmem %s10, %s381
      %p383 = pneg %p290
      %p384 = pneg %p287
      %p385 = scmp.lt.s32.totalorder %s23, 1
      %s386 = scalar_select %p385, %s23, 1
      %s387 = scalar_lea.vmem %s11, %s386
      %p388 = scmp.lt.s32.totalorder %s23, 1
      %s389 = scalar_select %p388, %s23, 1
      %s390 = smul.addr %s389, 8
      %s391 = scalar_lea.vmem %s0, %s390
      %p392 = scmp.lt.s32.totalorder %s23, 1
      %s393 = scalar_select %p392, %s23, 1
      %s394 = smul.addr %s393, 2
      %s395 = smul.addr %s394, 8
      %s396 = scalar_lea.vmem %s9, %s395
      %p397 = scmp.lt.s32.totalorder %s23, 1
      %s398 = scalar_select %p397, %s23, 1
      %s399 = smul.addr %s398, 2
      %s400 = smul.addr %s399, 8
      %s401 = scalar_lea.vmem %s10, %s400
      %p402 = scmp.lt.s32.totalorder %s23, 1
      %s403 = scalar_select %p402, %s23, 1
      %s404 = scalar_lea.vmem %s11, %s403
      %v405 = vlaneseq
      %v406 = vshrl.u32 %v405, 7
      %v407 = vadd.s32 %v406, 8
      %v408 = vlaneseq
      %v409 = vand.u32 %v408, 127
      %v410 = vmul.u32 %v409, 2
      %vm411 = vcmp.eq.s32.totalorder %v406, %v410
      %vm412 = vcmp.eq.s32.totalorder %v407, %v410
      %v413 = vsel %vm411, 1, 0
      %v414 = vsel %vm412, 1, 0
      %v415 = vcvt.s32.f32 %v413
      %v416 = vcvt.s32.f32 %v414
      %vm417 = vcmp.eq.s32.totalorder %v409, %v406
      %v418 = vsel %vm417, 1, 0
      %v419 = vcvt.s32.f32 %v418
      %vm420 = vcmp.eq.s32.totalorder %v409, %v407
      %v421 = vsel %vm420, 1, 0
      %v422 = vcvt.s32.f32 %v421
      %v423 = vld [vmem:[%s391] sm:$0xff]
      %vm424 = vcmask 179200
      %425 = vst.msk [vmem:[#allocation2] sm:$0xff] %vm424, 0.0
      %427 = vrot.lane.b32.xlu0 %v423, 3
      %v428 = vpop.permute.xlu0 %427
      %vm430 = vcmask 154648
      %431 = vst.msk [vmem:[#allocation2] sm:$0xff] %vm430, %v428
      %v432 = vld [vmem:[#allocation2] sm:$0xff]
      %vm433 = vcmask 130048
      %434 = vst.msk [vmem:[#allocation3] sm:$0xff] %vm433, %v432
      %v435 = vld [vmem:[#allocation2] sm:$0xff]
      %437 = vrot.lane.b32.xlu0 %v435, 127
      %v438 = vpop.permute.xlu0 %437
      %440 = vst.msk [vmem:[#allocation3 + $0x8] sm:$0xff] %vm433, %v438
      %v441 = vld [vmem:[#allocation2] sm:$0xff]
      %443 = vrot.lane.b32.xlu0 %v441, 126
      %v444 = vpop.permute.xlu0 %443
      %446 = vst.msk [vmem:[#allocation3 + $0x10] sm:$0xff] %vm433, %v444
      %v447 = vld [vmem:[#allocation2] sm:$0xff]
      %449 = vrot.lane.b32.xlu0 %v447, 125
      %v450 = vpop.permute.xlu0 %449
      %452 = vst.msk [vmem:[#allocation3 + $0x18] sm:$0xff] %vm433, %v450
      %v453 = vld [vmem:[#allocation2] sm:$0xff]
      %455 = vrot.lane.b32.xlu0 %v453, 124
      %v456 = vpop.permute.xlu0 %455
      %458 = vst.msk [vmem:[#allocation3 + $0x20] sm:$0xff] %vm433, %v456
      %v459 = vld [vmem:[#allocation2] sm:$0xff]
      %461 = vrot.lane.b32.xlu0 %v459, 123
      %v462 = vpop.permute.xlu0 %461
      %464 = vst.msk [vmem:[#allocation3 + $0x28] sm:$0xff] %vm433, %v462
      %v465 = vld [vmem:[#allocation2] sm:$0xff]
      %467 = vrot.lane.b32.xlu0 %v465, 122
      %v468 = vpop.permute.xlu0 %467
      %470 = vst.msk [vmem:[#allocation3 + $0x30] sm:$0xff] %vm433, %v468
      %v471 = vld [vmem:[%s1] sm:$0xff]
      %v472 = vld [vmem:[%s1 + $0x8] sm:$0xff]
      %v473 = vld [vmem:[%s1 + $0x10] sm:$0xff]
      %v474 = vld [vmem:[%s1 + $0x18] sm:$0xff]
      %v475 = vld [vmem:[#allocation3] sm:$0xff]
      %v476 = vld [vmem:[#allocation3 + $0x8] sm:$0xff]
      %v477 = vld [vmem:[#allocation3 + $0x10] sm:$0xff]
      %v478 = vld [vmem:[#allocation3 + $0x18] sm:$0xff]
      %v479 = vld [vmem:[#allocation3 + $0x20] sm:$0xff]
      %v480 = vld [vmem:[#allocation3 + $0x28] sm:$0xff]
      %v481 = vld [vmem:[#allocation3 + $0x30] sm:$0xff]
      %vm482 = vcmask 457728
      %v484 = vsel %vm482, %v471, 0
      %v487 = vsel %vm482, %v472, 0
      %v490 = vsel %vm482, %v473, 0
      %v493 = vsel %vm482, %v474, 0
      %495 = vmatprep.subr.mxu0 0.0
      %496 = vmatpush1.msra.mxu0 0.0
      %497 = vmatprep.subr.mxu0 0.0
      %498 = vmatpush1.msra.mxu0 0.0
      %499 = vmatprep.subr.mxu0 0.0
      %500 = vmatpush1.msra.mxu0 0.0
      %501 = vmatprep.subr.mxu0 0.0
      %502 = vmatpush1.msra.mxu0 0.0
      %503 = vmatprep.subr.mxu0 0.0
      %504 = vmatpush1.msra.mxu0 0.0
      %505 = vmatprep.subr.mxu0 0.0
      %506 = vmatpush1.msra.mxu0 0.0
      %507 = vmatprep.subr.mxu0 0.0
      %508 = vmatpush1.msra.mxu0 0.0
      %509 = vmatprep.subr.mxu0 0.0
      %510 = vmatpush1.msra.mxu0 0.0
      %511 = vmatprep.subr.mxu0 0.0
      %512 = vmatpush1.msra.mxu0 0.0
      %513 = vmatprep.subr.mxu0 0.0
      %514 = vmatpush1.msra.mxu0 %v481
      %515 = vmatprep.subr.mxu0 0.0
      %516 = vmatpush1.msra.mxu0 %v480
      %517 = vmatprep.subr.mxu0 0.0
      %518 = vmatpush1.msra.mxu0 %v479
      %519 = vmatprep.subr.mxu0 0.0
      %520 = vmatpush1.msra.mxu0 %v478
      %521 = vmatprep.subr.mxu0 0.0
      %522 = vmatpush1.msra.mxu0 %v477
      %523 = vmatprep.subr.mxu0 0.0
      %524 = vmatpush1.msra.mxu0 %v476
      %525 = vmatprep.subr.mxu0 0.0
      %526 = vmatpush1.msra.mxu0 %v475
      %527 = vmatprep.subr.mxu0 0.0
      %528 = vmatpush2.msra.mxu0 0.0
      %529 = vmatprep.subr.mxu0 0.0
      %530 = vmatpush2.msra.mxu0 0.0
      %531 = vmatprep.subr.mxu0 0.0
      %532 = vmatpush2.msra.mxu0 0.0
      %533 = vmatprep.subr.mxu0 0.0
      %534 = vmatpush2.msra.mxu0 0.0
      %535 = vmatprep.subr.mxu0 0.0
      %536 = vmatpush2.msra.mxu0 0.0
      %537 = vmatprep.subr.mxu0 0.0
      %538 = vmatpush2.msra.mxu0 0.0
      %539 = vmatprep.subr.mxu0 0.0
      %540 = vmatpush2.msra.mxu0 0.0
      %541 = vmatprep.subr.mxu0 0.0
      %542 = vmatpush2.msra.mxu0 0.0
      %543 = vmatprep.subr.mxu0 0.0
      %544 = vmatpush2.msra.mxu0 0.0
      %545 = vmatprep.subr.mxu0 0.0
      %546 = vmatpush2.msra.mxu0 0.0
      %547 = vmatprep.subr.mxu0 0.0
      %548 = vmatpush2.msra.mxu0 0.0
      %549 = vmatprep.subr.mxu0 0.0
      %550 = vmatpush2.msra.mxu0 0.0
      %551 = vmatprep.subr.mxu0 0.0
      %552 = vmatpush2.msra.mxu0 0.0
      %553 = vmatprep.subr.mxu0 0.0
      %554 = vmatpush2.msra.mxu0 0.0
      %555 = vmatprep.subr.mxu0 0.0
      %556 = vmatpush2.msra.mxu0 0.0
      %557 = vmatprep.subr.mxu0 0.0
      %558 = vmatpush2.msra.mxu0 0.0
      %559 = vmatprep.mubr.f32.mxu0 0.0
      %560 = vmatmul.mubr.f32.gmra.mxu0 %v484
      %v561 = vpop.f32.mrf.mxu0
      %v562 = vadd.f32 0.0, %v561
      %v563 = vpop.f32.mrf.mxu0
      %564 = vmatprep.mubr.f32.mxu0 0.0
      %565 = vmatmul.mubr.f32.gmra.mxu0 %v487
      %v566 = vpop.f32.mrf.mxu0
      %v567 = vadd.f32 0.0, %v566
      %v568 = vpop.f32.mrf.mxu0
      %569 = vmatprep.mubr.f32.mxu0 0.0
      %570 = vmatmul.mubr.f32.gmra.mxu0 %v490
      %v571 = vpop.f32.mrf.mxu0
      %v572 = vadd.f32 0.0, %v571
      %v573 = vpop.f32.mrf.mxu0
      %574 = vmatprep.mubr.f32.mxu0 0.0
      %575 = vmatmul.mubr.f32.gmra.mxu0 %v493
      %v576 = vpop.f32.mrf.mxu0
      %v577 = vadd.f32 0.0, %v576
      %v578 = vpop.f32.mrf.mxu0
      %579 = vdwg.mxu0
      %v580 = vld [vmem:[%s2] sm:$0xff]
      %v581 = vld [vmem:[%s2 + $0x8] sm:$0xff]
      %v582 = vld [vmem:[%s2 + $0x10] sm:$0xff]
      %v583 = vld [vmem:[%s2 + $0x18] sm:$0xff]
      %585 = vset.pattern.permute.xlu0 0
      %586 = vperm.xlu0 %585, %v580
      %v587 = vpop.permute.xlu0 %586
      %590 = vset.pattern.permute.xlu0 0
      %591 = vperm.xlu0 %590, %v581
      %v592 = vpop.permute.xlu0 %591
      %595 = vset.pattern.permute.xlu0 0
      %596 = vperm.xlu0 %595, %v582
      %v597 = vpop.permute.xlu0 %596
      %600 = vset.pattern.permute.xlu0 0
      %601 = vperm.xlu0 %600, %v583
      %v602 = vpop.permute.xlu0 %601
      %v605 = vsel %vm433, %v562, 0
      %v608 = vsel %vm433, %v567, 0
      %v611 = vsel %vm433, %v572, 0
      %v614 = vsel %vm433, %v577, 0
      %616 = vmatprep.subr.mxu0 0.0
      %617 = vmatpush1.msra.mxu0 0.0
      %618 = vmatprep.subr.mxu0 0.0
      %619 = vmatpush1.msra.mxu0 0.0
      %620 = vmatprep.subr.mxu0 0.0
      %621 = vmatpush1.msra.mxu0 0.0
      %622 = vmatprep.subr.mxu0 0.0
      %623 = vmatpush1.msra.mxu0 0.0
      %624 = vmatprep.subr.mxu0 0.0
      %625 = vmatpush1.msra.mxu0 0.0
      %626 = vmatprep.subr.mxu0 0.0
      %627 = vmatpush1.msra.mxu0 0.0
      %628 = vmatprep.subr.mxu0 0.0
      %629 = vmatpush1.msra.mxu0 0.0
      %630 = vmatprep.subr.mxu0 0.0
      %631 = vmatpush1.msra.mxu0 0.0
      %632 = vmatprep.subr.mxu0 0.0
      %633 = vmatpush1.msra.mxu0 0.0
      %634 = vmatprep.subr.mxu0 0.0
      %635 = vmatpush1.msra.mxu0 0.0
      %636 = vmatprep.subr.mxu0 0.0
      %637 = vmatpush1.msra.mxu0 0.0
      %638 = vmatprep.subr.mxu0 0.0
      %639 = vmatpush1.msra.mxu0 0.0
      %640 = vmatprep.subr.mxu0 0.0
      %641 = vmatpush1.msra.mxu0 0.0
      %642 = vmatprep.subr.mxu0 0.0
      %643 = vmatpush1.msra.mxu0 0.0
      %644 = vmatprep.subr.mxu0 0.0
      %645 = vmatpush1.msra.mxu0 %v416
      %646 = vmatprep.subr.mxu0 0.0
      %647 = vmatpush1.msra.mxu0 %v415
      %648 = vmatprep.subr.mxu0 0.0
      %649 = vmatpush2.msra.mxu0 0.0
      %650 = vmatprep.subr.mxu0 0.0
      %651 = vmatpush2.msra.mxu0 0.0
      %652 = vmatprep.subr.mxu0 0.0
      %653 = vmatpush2.msra.mxu0 0.0
      %654 = vmatprep.subr.mxu0 0.0
      %655 = vmatpush2.msra.mxu0 0.0
      %656 = vmatprep.subr.mxu0 0.0
      %657 = vmatpush2.msra.mxu0 0.0
      %658 = vmatprep.subr.mxu0 0.0
      %659 = vmatpush2.msra.mxu0 0.0
      %660 = vmatprep.subr.mxu0 0.0
      %661 = vmatpush2.msra.mxu0 0.0
      %662 = vmatprep.subr.mxu0 0.0
      %663 = vmatpush2.msra.mxu0 0.0
      %664 = vmatprep.subr.mxu0 0.0
      %665 = vmatpush2.msra.mxu0 0.0
      %666 = vmatprep.subr.mxu0 0.0
      %667 = vmatpush2.msra.mxu0 0.0
      %668 = vmatprep.subr.mxu0 0.0
      %669 = vmatpush2.msra.mxu0 0.0
      %670 = vmatprep.subr.mxu0 0.0
      %671 = vmatpush2.msra.mxu0 0.0
      %672 = vmatprep.subr.mxu0 0.0
      %673 = vmatpush2.msra.mxu0 0.0
      %674 = vmatprep.subr.mxu0 0.0
      %675 = vmatpush2.msra.mxu0 0.0
      %676 = vmatprep.subr.mxu0 0.0
      %677 = vmatpush2.msra.mxu0 0.0
      %678 = vmatprep.subr.mxu0 0.0
      %679 = vmatpush2.msra.mxu0 0.0
      %680 = vmatprep.mubr.f32.mxu0 0.0
      %681 = vmatmul.mubr.f32.gmra.mxu0 %v605
      %v682 = vpop.f32.mrf.mxu0
      %v683 = vadd.f32 %v587, %v682
      %v684 = vpop.f32.mrf.mxu0
      %685 = vmatprep.mubr.f32.mxu0 0.0
      %686 = vmatmul.mubr.f32.gmra.mxu0 %v608
      %v687 = vpop.f32.mrf.mxu0
      %v688 = vadd.f32 %v592, %v687
      %v689 = vpop.f32.mrf.mxu0
      %690 = vmatprep.mubr.f32.mxu0 0.0
      %691 = vmatmul.mubr.f32.gmra.mxu0 %v611
      %v692 = vpop.f32.mrf.mxu0
      %v693 = vadd.f32 %v597, %v692
      %v694 = vpop.f32.mrf.mxu0
      %695 = vmatprep.mubr.f32.mxu0 0.0
      %696 = vmatmul.mubr.f32.gmra.mxu0 %v614
      %v697 = vpop.f32.mrf.mxu0
      %v698 = vadd.f32 %v602, %v697
      %v699 = vpop.f32.mrf.mxu0
      %700 = vdwg.mxu0
      %v701 = vmax.f32 %v683, 0.0
      %v702 = vmax.f32 %v688, 0.0
      %v703 = vmax.f32 %v693, 0.0
      %v704 = vmax.f32 %v698, 0.0
      %vm705 = vcmask 113664
      %706 = vst.msk [vmem:[#allocation4] sm:$0xff] %vm705, 0.0
      %707 = vst.msk [vmem:[#allocation4 + $0x8] sm:$0xff] %vm705, 0.0
      %708 = vst.msk [vmem:[#allocation4 + $0x10] sm:$0xff] %vm705, 0.0
      %709 = vst.msk [vmem:[#allocation4 + $0x18] sm:$0xff] %vm705, 0.0
      %714 = vrot.lane.b32.xlu0 %v701, 3
      %v715 = vpop.permute.xlu0 %714
      %716 = vrot.lane.b32.xlu0 %v702, 3
      %v717 = vpop.permute.xlu0 %716
      %718 = vrot.lane.b32.xlu0 %v703, 3
      %v719 = vpop.permute.xlu0 %718
      %720 = vrot.lane.b32.xlu0 %v704, 3
      %v721 = vpop.permute.xlu0 %720
      %vm726 = vcmask 89112
      %727 = vst.msk [vmem:[#allocation4] sm:$0xff] %vm726, %v715
      %728 = vst.msk [vmem:[#allocation4 + $0x8] sm:$0xff] %vm726, %v717
      %729 = vst.msk [vmem:[#allocation4 + $0x10] sm:$0xff] %vm726, %v719
      %730 = vst.msk [vmem:[#allocation4 + $0x18] sm:$0xff] %vm726, %v721
      %v731 = vld [vmem:[#allocation4] sm:$0xff]
      %v732 = vld [vmem:[#allocation4 + $0x8] sm:$0xff]
      %v733 = vld [vmem:[#allocation4 + $0x10] sm:$0xff]
      %v734 = vld [vmem:[#allocation4 + $0x18] sm:$0xff]
      %vm735 = vcmask 64512
      %736 = vst.msk [vmem:[#allocation5] sm:$0xff] %vm735, %v731
      %737 = vst.msk [vmem:[#allocation5 + $0x8] sm:$0xff] %vm735, %v732
      %738 = vst.msk [vmem:[#allocation5 + $0x10] sm:$0xff] %vm735, %v733
      %739 = vst.msk [vmem:[#allocation5 + $0x18] sm:$0xff] %vm735, %v734
      %v740 = vld [vmem:[#allocation4] sm:$0xff]
      %v741 = vld [vmem:[#allocation4 + $0x8] sm:$0xff]
      %v742 = vld [vmem:[#allocation4 + $0x10] sm:$0xff]
      %v743 = vld [vmem:[#allocation4 + $0x18] sm:$0xff]
      %748 = vrot.lane.b32.xlu0 %v740, 127
      %v749 = vpop.permute.xlu0 %748
      %750 = vrot.lane.b32.xlu0 %v741, 127
      %v751 = vpop.permute.xlu0 %750
      %752 = vrot.lane.b32.xlu0 %v742, 127
      %v753 = vpop.permute.xlu0 %752
      %754 = vrot.lane.b32.xlu0 %v743, 127
      %v755 = vpop.permute.xlu0 %754
      %760 = vst.msk [vmem:[#allocation5 + $0x20] sm:$0xff] %vm735, %v749
      %761 = vst.msk [vmem:[#allocation5 + $0x28] sm:$0xff] %vm735, %v751
      %762 = vst.msk [vmem:[#allocation5 + $0x30] sm:$0xff] %vm735, %v753
      %763 = vst.msk [vmem:[#allocation5 + $0x38] sm:$0xff] %vm735, %v755
      %v764 = vld [vmem:[#allocation4] sm:$0xff]
      %v765 = vld [vmem:[#allocation4 + $0x8] sm:$0xff]
      %v766 = vld [vmem:[#allocation4 + $0x10] sm:$0xff]
      %v767 = vld [vmem:[#allocation4 + $0x18] sm:$0xff]
      %772 = vrot.lane.b32.xlu0 %v764, 126
      %v773 = vpop.permute.xlu0 %772
      %774 = vrot.lane.b32.xlu0 %v765, 126
      %v775 = vpop.permute.xlu0 %774
      %776 = vrot.lane.b32.xlu0 %v766, 126
      %v777 = vpop.permute.xlu0 %776
      %778 = vrot.lane.b32.xlu0 %v767, 126
      %v779 = vpop.permute.xlu0 %778
      %784 = vst.msk [vmem:[#allocation5 + $0x40] sm:$0xff] %vm735, %v773
      %785 = vst.msk [vmem:[#allocation5 + $0x48] sm:$0xff] %vm735, %v775
      %786 = vst.msk [vmem:[#allocation5 + $0x50] sm:$0xff] %vm735, %v777
      %787 = vst.msk [vmem:[#allocation5 + $0x58] sm:$0xff] %vm735, %v779
      %v788 = vld [vmem:[#allocation4] sm:$0xff]
      %v789 = vld [vmem:[#allocation4 + $0x8] sm:$0xff]
      %v790 = vld [vmem:[#allocation4 + $0x10] sm:$0xff]
      %v791 = vld [vmem:[#allocation4 + $0x18] sm:$0xff]
      %796 = vrot.lane.b32.xlu0 %v788, 125
      %v797 = vpop.permute.xlu0 %796
      %798 = vrot.lane.b32.xlu0 %v789, 125
      %v799 = vpop.permute.xlu0 %798
      %800 = vrot.lane.b32.xlu0 %v790, 125
      %v801 = vpop.permute.xlu0 %800
      %802 = vrot.lane.b32.xlu0 %v791, 125
      %v803 = vpop.permute.xlu0 %802
      %808 = vst.msk [vmem:[#allocation5 + $0x60] sm:$0xff] %vm735, %v797
      %809 = vst.msk [vmem:[#allocation5 + $0x68] sm:$0xff] %vm735, %v799
      %810 = vst.msk [vmem:[#allocation5 + $0x70] sm:$0xff] %vm735, %v801
      %811 = vst.msk [vmem:[#allocation5 + $0x78] sm:$0xff] %vm735, %v803
      %v812 = vld [vmem:[#allocation4] sm:$0xff]
      %v813 = vld [vmem:[#allocation4 + $0x8] sm:$0xff]
      %v814 = vld [vmem:[#allocation4 + $0x10] sm:$0xff]
      %v815 = vld [vmem:[#allocation4 + $0x18] sm:$0xff]
      %820 = vrot.lane.b32.xlu0 %v812, 124
      %v821 = vpop.permute.xlu0 %820
      %822 = vrot.lane.b32.xlu0 %v813, 124
      %v823 = vpop.permute.xlu0 %822
      %824 = vrot.lane.b32.xlu0 %v814, 124
      %v825 = vpop.permute.xlu0 %824
      %826 = vrot.lane.b32.xlu0 %v815, 124
      %v827 = vpop.permute.xlu0 %826
      %832 = vst.msk [vmem:[#allocation5 + $0x80] sm:$0xff] %vm735, %v821
      %833 = vst.msk [vmem:[#allocation5 + $0x88] sm:$0xff] %vm735, %v823
      %834 = vst.msk [vmem:[#allocation5 + $0x90] sm:$0xff] %vm735, %v825
      %835 = vst.msk [vmem:[#allocation5 + $0x98] sm:$0xff] %vm735, %v827
      %v836 = vld [vmem:[#allocation4] sm:$0xff]
      %v837 = vld [vmem:[#allocation4 + $0x8] sm:$0xff]
      %v838 = vld [vmem:[#allocation4 + $0x10] sm:$0xff]
      %v839 = vld [vmem:[#allocation4 + $0x18] sm:$0xff]
      %844 = vrot.lane.b32.xlu0 %v836, 123
      %v845 = vpop.permute.xlu0 %844
      %846 = vrot.lane.b32.xlu0 %v837, 123
      %v847 = vpop.permute.xlu0 %846
      %848 = vrot.lane.b32.xlu0 %v838, 123
      %v849 = vpop.permute.xlu0 %848
      %850 = vrot.lane.b32.xlu0 %v839, 123
      %v851 = vpop.permute.xlu0 %850
      %856 = vst.msk [vmem:[#allocation5 + $0xa0] sm:$0xff] %vm735, %v845
      %857 = vst.msk [vmem:[#allocation5 + $0xa8] sm:$0xff] %vm735, %v847
      %858 = vst.msk [vmem:[#allocation5 + $0xb0] sm:$0xff] %vm735, %v849
      %859 = vst.msk [vmem:[#allocation5 + $0xb8] sm:$0xff] %vm735, %v851
      %v860 = vld [vmem:[#allocation4] sm:$0xff]
      %v861 = vld [vmem:[#allocation4 + $0x8] sm:$0xff]
      %v862 = vld [vmem:[#allocation4 + $0x10] sm:$0xff]
      %v863 = vld [vmem:[#allocation4 + $0x18] sm:$0xff]
      %868 = vrot.lane.b32.xlu0 %v860, 122
      %v869 = vpop.permute.xlu0 %868
      %870 = vrot.lane.b32.xlu0 %v861, 122
      %v871 = vpop.permute.xlu0 %870
      %872 = vrot.lane.b32.xlu0 %v862, 122
      %v873 = vpop.permute.xlu0 %872
      %874 = vrot.lane.b32.xlu0 %v863, 122
      %v875 = vpop.permute.xlu0 %874
      %880 = vst.msk [vmem:[#allocation5 + $0xc0] sm:$0xff] %vm735, %v869
      %881 = vst.msk [vmem:[#allocation5 + $0xc8] sm:$0xff] %vm735, %v871
      %882 = vst.msk [vmem:[#allocation5 + $0xd0] sm:$0xff] %vm735, %v873
      %883 = vst.msk [vmem:[#allocation5 + $0xd8] sm:$0xff] %vm735, %v875
      %v884 = vld [vmem:[%s3] sm:$0xff]
      %v885 = vld [vmem:[%s3 + $0x8] sm:$0xff]
      %v886 = vld [vmem:[%s3 + $0x10] sm:$0xff]
      %v887 = vld [vmem:[%s3 + $0x18] sm:$0xff]
      %v888 = vld [vmem:[#allocation5] sm:$0xff]
      %v889 = vld [vmem:[#allocation5 + $0x8] sm:$0xff]
      %v890 = vld [vmem:[#allocation5 + $0x10] sm:$0xff]
      %v891 = vld [vmem:[#allocation5 + $0x18] sm:$0xff]
      %v892 = vld [vmem:[#allocation5 + $0x20] sm:$0xff]
      %v893 = vld [vmem:[#allocation5 + $0x28] sm:$0xff]
      %v894 = vld [vmem:[#allocation5 + $0x30] sm:$0xff]
      %v895 = vld [vmem:[#allocation5 + $0x38] sm:$0xff]
      %v896 = vld [vmem:[#allocation5 + $0x40] sm:$0xff]
      %v897 = vld [vmem:[#allocation5 + $0x48] sm:$0xff]
      %v898 = vld [vmem:[#allocation5 + $0x50] sm:$0xff]
      %v899 = vld [vmem:[#allocation5 + $0x58] sm:$0xff]
      %v900 = vld [vmem:[#allocation5 + $0x60] sm:$0xff]
      %v901 = vld [vmem:[#allocation5 + $0x68] sm:$0xff]
      %v902 = vld [vmem:[#allocation5 + $0x70] sm:$0xff]
      %v903 = vld [vmem:[#allocation5 + $0x78] sm:$0xff]
      %v904 = vld [vmem:[#allocation5 + $0x80] sm:$0xff]
      %v905 = vld [vmem:[#allocation5 + $0x88] sm:$0xff]
      %v906 = vld [vmem:[#allocation5 + $0x90] sm:$0xff]
      %v907 = vld [vmem:[#allocation5 + $0x98] sm:$0xff]
      %v908 = vld [vmem:[#allocation5 + $0xa0] sm:$0xff]
      %v909 = vld [vmem:[#allocation5 + $0xa8] sm:$0xff]
      %v910 = vld [vmem:[#allocation5 + $0xb0] sm:$0xff]
      %v911 = vld [vmem:[#allocation5 + $0xb8] sm:$0xff]
      %v912 = vld [vmem:[#allocation5 + $0xc0] sm:$0xff]
      %v913 = vld [vmem:[#allocation5 + $0xc8] sm:$0xff]
      %v914 = vld [vmem:[#allocation5 + $0xd0] sm:$0xff]
      %v915 = vld [vmem:[#allocation5 + $0xd8] sm:$0xff]
      %vm916 = vcmask 785408
      %v918 = vsel %vm916, %v885, 0
      %v921 = vsel %vm916, %v887, 0
      %923 = vmatprep.subr.mxu0 0.0
      %924 = vmatpush1.msra.mxu0 %v903
      %925 = vmatprep.subr.mxu0 0.0
      %926 = vmatpush1.msra.mxu0 %v902
      %927 = vmatprep.subr.mxu0 0.0
      %928 = vmatpush1.msra.mxu0 %v901
      %929 = vmatprep.subr.mxu0 0.0
      %930 = vmatpush1.msra.mxu0 %v900
      %931 = vmatprep.subr.mxu0 0.0
      %932 = vmatpush1.msra.mxu0 %v899
      %933 = vmatprep.subr.mxu0 0.0
      %934 = vmatpush1.msra.mxu0 %v898
      %935 = vmatprep.subr.mxu0 0.0
      %936 = vmatpush1.msra.mxu0 %v897
      %937 = vmatprep.subr.mxu0 0.0
      %938 = vmatpush1.msra.mxu0 %v896
      %939 = vmatprep.subr.mxu0 0.0
      %940 = vmatpush1.msra.mxu0 %v895
      %941 = vmatprep.subr.mxu0 0.0
      %942 = vmatpush1.msra.mxu0 %v894
      %943 = vmatprep.subr.mxu0 0.0
      %944 = vmatpush1.msra.mxu0 %v893
      %945 = vmatprep.subr.mxu0 0.0
      %946 = vmatpush1.msra.mxu0 %v892
      %947 = vmatprep.subr.mxu0 0.0
      %948 = vmatpush1.msra.mxu0 %v891
      %949 = vmatprep.subr.mxu0 0.0
      %950 = vmatpush1.msra.mxu0 %v890
      %951 = vmatprep.subr.mxu0 0.0
      %952 = vmatpush1.msra.mxu0 %v889
      %953 = vmatprep.subr.mxu0 0.0
      %954 = vmatpush1.msra.mxu0 %v888
      %955 = vmatprep.subr.mxu0 0.0
      %956 = vmatpush2.msra.mxu0 0.0
      %957 = vmatprep.subr.mxu0 0.0
      %958 = vmatpush2.msra.mxu0 0.0
      %959 = vmatprep.subr.mxu0 0.0
      %960 = vmatpush2.msra.mxu0 0.0
      %961 = vmatprep.subr.mxu0 0.0
      %962 = vmatpush2.msra.mxu0 0.0
      %963 = vmatprep.subr.mxu0 0.0
      %964 = vmatpush2.msra.mxu0 %v915
      %965 = vmatprep.subr.mxu0 0.0
      %966 = vmatpush2.msra.mxu0 %v914
      %967 = vmatprep.subr.mxu0 0.0
      %968 = vmatpush2.msra.mxu0 %v913
      %969 = vmatprep.subr.mxu0 0.0
      %970 = vmatpush2.msra.mxu0 %v912
      %971 = vmatprep.subr.mxu0 0.0
      %972 = vmatpush2.msra.mxu0 %v911
      %973 = vmatprep.subr.mxu0 0.0
      %974 = vmatpush2.msra.mxu0 %v910
      %975 = vmatprep.subr.mxu0 0.0
      %976 = vmatpush2.msra.mxu0 %v909
      %977 = vmatprep.subr.mxu0 0.0
      %978 = vmatpush2.msra.mxu0 %v908
      %979 = vmatprep.subr.mxu0 0.0
      %980 = vmatpush2.msra.mxu0 %v907
      %981 = vmatprep.subr.mxu0 0.0
      %982 = vmatpush2.msra.mxu0 %v906
      %983 = vmatprep.subr.mxu0 0.0
      %984 = vmatpush2.msra.mxu0 %v905
      %985 = vmatprep.subr.mxu0 0.0
      %986 = vmatpush2.msra.mxu0 %v904
      %987 = vmatprep.mubr.f32.mxu0 %v918
      %988 = vmatmul.mubr.f32.gmra.mxu0 %v884
      %v989 = vpop.f32.mrf.mxu0
      %v990 = vadd.f32 0.0, %v989
      %v991 = vpop.f32.mrf.mxu0
      %992 = vmatprep.mubr.f32.mxu0 %v921
      %993 = vmatmul.mubr.f32.gmra.mxu0 %v886
      %v994 = vpop.f32.mrf.mxu0
      %v995 = vadd.f32 0.0, %v994
      %v996 = vpop.f32.mrf.mxu0
      %997 = vdwg.mxu0
      %v998 = vld [vmem:[%s4] sm:$0xff]
      %v999 = vld [vmem:[%s4 + $0x8] sm:$0xff]
      %1001 = vset.pattern.permute.xlu0 0
      %1002 = vperm.xlu0 %1001, %v998
      %v1003 = vpop.permute.xlu0 %1002
      %1006 = vset.pattern.permute.xlu0 0
      %1007 = vperm.xlu0 %1006, %v999
      %v1008 = vpop.permute.xlu0 %1007
      %v1011 = vsel %vm735, %v990, 0
      %v1014 = vsel %vm735, %v995, 0
      %1016 = vmatprep.subr.mxu0 0.0
      %1017 = vmatpush1.msra.mxu0 0.0
      %1018 = vmatprep.subr.mxu0 0.0
      %1019 = vmatpush1.msra.mxu0 0.0
      %1020 = vmatprep.subr.mxu0 0.0
      %1021 = vmatpush1.msra.mxu0 0.0
      %1022 = vmatprep.subr.mxu0 0.0
      %1023 = vmatpush1.msra.mxu0 0.0
      %1024 = vmatprep.subr.mxu0 0.0
      %1025 = vmatpush1.msra.mxu0 0.0
      %1026 = vmatprep.subr.mxu0 0.0
      %1027 = vmatpush1.msra.mxu0 0.0
      %1028 = vmatprep.subr.mxu0 0.0
      %1029 = vmatpush1.msra.mxu0 0.0
      %1030 = vmatprep.subr.mxu0 0.0
      %1031 = vmatpush1.msra.mxu0 0.0
      %1032 = vmatprep.subr.mxu0 0.0
      %1033 = vmatpush1.msra.mxu0 0.0
      %1034 = vmatprep.subr.mxu0 0.0
      %1035 = vmatpush1.msra.mxu0 0.0
      %1036 = vmatprep.subr.mxu0 0.0
      %1037 = vmatpush1.msra.mxu0 0.0
      %1038 = vmatprep.subr.mxu0 0.0
      %1039 = vmatpush1.msra.mxu0 0.0
      %1040 = vmatprep.subr.mxu0 0.0
      %1041 = vmatpush1.msra.mxu0 0.0
      %1042 = vmatprep.subr.mxu0 0.0
      %1043 = vmatpush1.msra.mxu0 0.0
      %1044 = vmatprep.subr.mxu0 0.0
      %1045 = vmatpush1.msra.mxu0 0.0
      %1046 = vmatprep.subr.mxu0 0.0
      %1047 = vmatpush1.msra.mxu0 %v415
      %1048 = vmatprep.subr.mxu0 0.0
      %1049 = vmatpush2.msra.mxu0 0.0
      %1050 = vmatprep.subr.mxu0 0.0
      %1051 = vmatpush2.msra.mxu0 0.0
      %1052 = vmatprep.subr.mxu0 0.0
      %1053 = vmatpush2.msra.mxu0 0.0
      %1054 = vmatprep.subr.mxu0 0.0
      %1055 = vmatpush2.msra.mxu0 0.0
      %1056 = vmatprep.subr.mxu0 0.0
      %1057 = vmatpush2.msra.mxu0 0.0
      %1058 = vmatprep.subr.mxu0 0.0
      %1059 = vmatpush2.msra.mxu0 0.0
      %1060 = vmatprep.subr.mxu0 0.0
      %1061 = vmatpush2.msra.mxu0 0.0
      %1062 = vmatprep.subr.mxu0 0.0
      %1063 = vmatpush2.msra.mxu0 0.0
      %1064 = vmatprep.subr.mxu0 0.0
      %1065 = vmatpush2.msra.mxu0 0.0
      %1066 = vmatprep.subr.mxu0 0.0
      %1067 = vmatpush2.msra.mxu0 0.0
      %1068 = vmatprep.subr.mxu0 0.0
      %1069 = vmatpush2.msra.mxu0 0.0
      %1070 = vmatprep.subr.mxu0 0.0
      %1071 = vmatpush2.msra.mxu0 0.0
      %1072 = vmatprep.subr.mxu0 0.0
      %1073 = vmatpush2.msra.mxu0 0.0
      %1074 = vmatprep.subr.mxu0 0.0
      %1075 = vmatpush2.msra.mxu0 0.0
      %1076 = vmatprep.subr.mxu0 0.0
      %1077 = vmatpush2.msra.mxu0 0.0
      %1078 = vmatprep.subr.mxu0 0.0
      %1079 = vmatpush2.msra.mxu0 0.0
      %1080 = vmatprep.mubr.f32.mxu0 0.0
      %1081 = vmatmul.mubr.f32.gmra.mxu0 %v1011
      %v1082 = vpop.f32.mrf.mxu0
      %v1083 = vadd.f32 %v1003, %v1082
      %v1084 = vpop.f32.mrf.mxu0
      %1085 = vmatprep.mubr.f32.mxu0 0.0
      %1086 = vmatmul.mubr.f32.gmra.mxu0 %v1014
      %v1087 = vpop.f32.mrf.mxu0
      %v1088 = vadd.f32 %v1008, %v1087
      %v1089 = vpop.f32.mrf.mxu0
      %1090 = vdwg.mxu0
      %v1091 = vmax.f32 %v1083, 0.0
      %v1092 = vmax.f32 %v1088, 0.0
      %vm1093 = vcmask 31744
      %1094 = vst.msk [vmem:[%s396] sm:$0xff] %vm1093, %v1091
      %1095 = vst.msk [vmem:[%s396 + $0x8] sm:$0xff] %vm1093, %v1092
      %v1096 = vld [vmem:[%s5] sm:$0xff]
      %v1097 = vld [vmem:[%s5 + $0x8] sm:$0xff]
      %v1098 = vld [vmem:[%s6] sm:$0xff]
      %v1099 = vld [vmem:[%s6 + $0x8] sm:$0xff]
      %1101 = vset.pattern.permute.xlu0 0
      %1102 = vperm.xlu0 %1101, %v1098
      %v1103 = vpop.permute.xlu0 %1102
      %1106 = vset.pattern.permute.xlu0 0
      %1107 = vperm.xlu0 %1106, %v1099
      %v1108 = vpop.permute.xlu0 %1107
      %vm1110 = vcmask 261120
      %v1112 = vsel %vm1110, %v1096, 0
      %v1115 = vsel %vm1110, %v1097, 0
      %1117 = vmatprep.subr.mxu0 0.0
      %1118 = vmatpush1.msra.mxu0 0.0
      %1119 = vmatprep.subr.mxu0 0.0
      %1120 = vmatpush1.msra.mxu0 0.0
      %1121 = vmatprep.subr.mxu0 0.0
      %1122 = vmatpush1.msra.mxu0 0.0
      %1123 = vmatprep.subr.mxu0 0.0
      %1124 = vmatpush1.msra.mxu0 0.0
      %1125 = vmatprep.subr.mxu0 0.0
      %1126 = vmatpush1.msra.mxu0 0.0
      %1127 = vmatprep.subr.mxu0 0.0
      %1128 = vmatpush1.msra.mxu0 0.0
      %1129 = vmatprep.subr.mxu0 0.0
      %1130 = vmatpush1.msra.mxu0 0.0
      %1131 = vmatprep.subr.mxu0 0.0
      %1132 = vmatpush1.msra.mxu0 0.0
      %1133 = vmatprep.subr.mxu0 0.0
      %1134 = vmatpush1.msra.mxu0 0.0
      %1135 = vmatprep.subr.mxu0 0.0
      %1136 = vmatpush1.msra.mxu0 0.0
      %1137 = vmatprep.subr.mxu0 0.0
      %1138 = vmatpush1.msra.mxu0 0.0
      %1139 = vmatprep.subr.mxu0 0.0
      %1140 = vmatpush1.msra.mxu0 0.0
      %1141 = vmatprep.subr.mxu0 0.0
      %1142 = vmatpush1.msra.mxu0 %v704
      %1143 = vmatprep.subr.mxu0 0.0
      %1144 = vmatpush1.msra.mxu0 %v703
      %1145 = vmatprep.subr.mxu0 0.0
      %1146 = vmatpush1.msra.mxu0 %v702
      %1147 = vmatprep.subr.mxu0 0.0
      %1148 = vmatpush1.msra.mxu0 %v701
      %1149 = vmatprep.subr.mxu0 0.0
      %1150 = vmatpush2.msra.mxu0 0.0
      %1151 = vmatprep.subr.mxu0 0.0
      %1152 = vmatpush2.msra.mxu0 0.0
      %1153 = vmatprep.subr.mxu0 0.0
      %1154 = vmatpush2.msra.mxu0 0.0
      %1155 = vmatprep.subr.mxu0 0.0
      %1156 = vmatpush2.msra.mxu0 0.0
      %1157 = vmatprep.subr.mxu0 0.0
      %1158 = vmatpush2.msra.mxu0 0.0
      %1159 = vmatprep.subr.mxu0 0.0
      %1160 = vmatpush2.msra.mxu0 0.0
      %1161 = vmatprep.subr.mxu0 0.0
      %1162 = vmatpush2.msra.mxu0 0.0
      %1163 = vmatprep.subr.mxu0 0.0
      %1164 = vmatpush2.msra.mxu0 0.0
      %1165 = vmatprep.subr.mxu0 0.0
      %1166 = vmatpush2.msra.mxu0 0.0
      %1167 = vmatprep.subr.mxu0 0.0
      %1168 = vmatpush2.msra.mxu0 0.0
      %1169 = vmatprep.subr.mxu0 0.0
      %1170 = vmatpush2.msra.mxu0 0.0
      %1171 = vmatprep.subr.mxu0 0.0
      %1172 = vmatpush2.msra.mxu0 0.0
      %1173 = vmatprep.subr.mxu0 0.0
      %1174 = vmatpush2.msra.mxu0 0.0
      %1175 = vmatprep.subr.mxu0 0.0
      %1176 = vmatpush2.msra.mxu0 0.0
      %1177 = vmatprep.subr.mxu0 0.0
      %1178 = vmatpush2.msra.mxu0 0.0
      %1179 = vmatprep.subr.mxu0 0.0
      %1180 = vmatpush2.msra.mxu0 0.0
      %1181 = vmatprep.mubr.f32.mxu0 0.0
      %1182 = vmatmul.mubr.f32.gmra.mxu0 %v1112
      %v1183 = vpop.f32.mrf.mxu0
      %v1184 = vadd.f32 %v1103, %v1183
      %v1185 = vpop.f32.mrf.mxu0
      %1186 = vmatprep.mubr.f32.mxu0 0.0
      %1187 = vmatmul.mubr.f32.gmra.mxu0 %v1115
      %v1188 = vpop.f32.mrf.mxu0
      %v1189 = vadd.f32 %v1108, %v1188
      %v1190 = vpop.f32.mrf.mxu0
      %1191 = vdwg.mxu0
      %v1192 = vmax.f32 %v1184, 0.0
      %v1193 = vmax.f32 %v1189, 0.0
      %v1194 = vld [vmem:[%s7] sm:$0xff]
      %v1195 = vld [vmem:[%s7 + $0x8] sm:$0xff]
      %v1196 = vld [vmem:[%s8] sm:$0xff]
      %v1197 = vld [vmem:[%s8 + $0x8] sm:$0xff]
      %1199 = vset.pattern.permute.xlu0 0
      %1200 = vperm.xlu0 %1199, %v1196
      %v1201 = vpop.permute.xlu0 %1200
      %1204 = vset.pattern.permute.xlu0 0
      %1205 = vperm.xlu0 %1204, %v1197
      %v1206 = vpop.permute.xlu0 %1205
      %v1209 = vsel %vm433, %v1194, 0
      %v1212 = vsel %vm433, %v1195, 0
      %1214 = vmatprep.subr.mxu0 0.0
      %1215 = vmatpush1.msra.mxu0 0.0
      %1216 = vmatprep.subr.mxu0 0.0
      %1217 = vmatpush1.msra.mxu0 0.0
      %1218 = vmatprep.subr.mxu0 0.0
      %1219 = vmatpush1.msra.mxu0 0.0
      %1220 = vmatprep.subr.mxu0 0.0
      %1221 = vmatpush1.msra.mxu0 0.0
      %1222 = vmatprep.subr.mxu0 0.0
      %1223 = vmatpush1.msra.mxu0 0.0
      %1224 = vmatprep.subr.mxu0 0.0
      %1225 = vmatpush1.msra.mxu0 0.0
      %1226 = vmatprep.subr.mxu0 0.0
      %1227 = vmatpush1.msra.mxu0 0.0
      %1228 = vmatprep.subr.mxu0 0.0
      %1229 = vmatpush1.msra.mxu0 0.0
      %1230 = vmatprep.subr.mxu0 0.0
      %1231 = vmatpush1.msra.mxu0 0.0
      %1232 = vmatprep.subr.mxu0 0.0
      %1233 = vmatpush1.msra.mxu0 0.0
      %1234 = vmatprep.subr.mxu0 0.0
      %1235 = vmatpush1.msra.mxu0 0.0
      %1236 = vmatprep.subr.mxu0 0.0
      %1237 = vmatpush1.msra.mxu0 0.0
      %1238 = vmatprep.subr.mxu0 0.0
      %1239 = vmatpush1.msra.mxu0 0.0
      %1240 = vmatprep.subr.mxu0 0.0
      %1241 = vmatpush1.msra.mxu0 0.0
      %1242 = vmatprep.subr.mxu0 0.0
      %1243 = vmatpush1.msra.mxu0 %v1092
      %1244 = vmatprep.subr.mxu0 0.0
      %1245 = vmatpush1.msra.mxu0 %v1091
      %1246 = vmatprep.subr.mxu0 0.0
      %1247 = vmatpush2.msra.mxu0 0.0
      %1248 = vmatprep.subr.mxu0 0.0
      %1249 = vmatpush2.msra.mxu0 0.0
      %1250 = vmatprep.subr.mxu0 0.0
      %1251 = vmatpush2.msra.mxu0 0.0
      %1252 = vmatprep.subr.mxu0 0.0
      %1253 = vmatpush2.msra.mxu0 0.0
      %1254 = vmatprep.subr.mxu0 0.0
      %1255 = vmatpush2.msra.mxu0 0.0
      %1256 = vmatprep.subr.mxu0 0.0
      %1257 = vmatpush2.msra.mxu0 0.0
      %1258 = vmatprep.subr.mxu0 0.0
      %1259 = vmatpush2.msra.mxu0 0.0
      %1260 = vmatprep.subr.mxu0 0.0
      %1261 = vmatpush2.msra.mxu0 0.0
      %1262 = vmatprep.subr.mxu0 0.0
      %1263 = vmatpush2.msra.mxu0 0.0
      %1264 = vmatprep.subr.mxu0 0.0
      %1265 = vmatpush2.msra.mxu0 0.0
      %1266 = vmatprep.subr.mxu0 0.0
      %1267 = vmatpush2.msra.mxu0 0.0
      %1268 = vmatprep.subr.mxu0 0.0
      %1269 = vmatpush2.msra.mxu0 0.0
      %1270 = vmatprep.subr.mxu0 0.0
      %1271 = vmatpush2.msra.mxu0 0.0
      %1272 = vmatprep.subr.mxu0 0.0
      %1273 = vmatpush2.msra.mxu0 0.0
      %1274 = vmatprep.subr.mxu0 0.0
      %1275 = vmatpush2.msra.mxu0 0.0
      %1276 = vmatprep.subr.mxu0 0.0
      %1277 = vmatpush2.msra.mxu0 0.0
      %1278 = vmatprep.mubr.f32.mxu0 0.0
      %1279 = vmatmul.mubr.f32.gmra.mxu0 %v1209
      %v1280 = vpop.f32.mrf.mxu0
      %v1281 = vadd.f32 %v1201, %v1280
      %v1282 = vpop.f32.mrf.mxu0
      %1283 = vmatprep.mubr.f32.mxu0 0.0
      %1284 = vmatmul.mubr.f32.gmra.mxu0 %v1212
      %v1285 = vpop.f32.mrf.mxu0
      %v1286 = vadd.f32 %v1206, %v1285
      %v1287 = vpop.f32.mrf.mxu0
      %1288 = vdwg.mxu0
      %v1289 = vmax.f32 %v1281, 0.0
      %v1290 = vmax.f32 %v1286, 0.0
      %v1292 = vsel %vm1093, %v1289, 0
      %v1295 = vsel %vm1093, %v1290, 0
      %vm1297 = vcmask 1043456
      %v1299 = vsel %vm1297, %v422, 0
      %1301 = vmatprep.subr.mxu0 0.0
      %1302 = vmatpush1.msra.mxu0 0.0
      %1303 = vmatprep.subr.mxu0 0.0
      %1304 = vmatpush1.msra.mxu0 0.0
      %1305 = vmatprep.subr.mxu0 0.0
      %1306 = vmatpush1.msra.mxu0 0.0
      %1307 = vmatprep.subr.mxu0 0.0
      %1308 = vmatpush1.msra.mxu0 0.0
      %1309 = vmatprep.subr.mxu0 0.0
      %1310 = vmatpush1.msra.mxu0 0.0
      %1311 = vmatprep.subr.mxu0 0.0
      %1312 = vmatpush1.msra.mxu0 0.0
      %1313 = vmatprep.subr.mxu0 0.0
      %1314 = vmatpush1.msra.mxu0 0.0
      %1315 = vmatprep.subr.mxu0 0.0
      %1316 = vmatpush1.msra.mxu0 0.0
      %1317 = vmatprep.subr.mxu0 0.0
      %1318 = vmatpush1.msra.mxu0 0.0
      %1319 = vmatprep.subr.mxu0 0.0
      %1320 = vmatpush1.msra.mxu0 0.0
      %1321 = vmatprep.subr.mxu0 0.0
      %1322 = vmatpush1.msra.mxu0 0.0
      %1323 = vmatprep.subr.mxu0 0.0
      %1324 = vmatpush1.msra.mxu0 0.0
      %1325 = vmatprep.subr.mxu0 0.0
      %1326 = vmatpush1.msra.mxu0 0.0
      %1327 = vmatprep.subr.mxu0 0.0
      %1328 = vmatpush1.msra.mxu0 0.0
      %1329 = vmatprep.subr.mxu0 0.0
      %1330 = vmatpush1.msra.mxu0 0.0
      %1331 = vmatprep.subr.mxu0 0.0
      %1332 = vmatpush1.msra.mxu0 %v1299
      %1333 = vmatprep.subr.mxu0 0.0
      %1334 = vmatpush2.msra.mxu0 0.0
      %1335 = vmatprep.subr.mxu0 0.0
      %1336 = vmatpush2.msra.mxu0 0.0
      %1337 = vmatprep.subr.mxu0 0.0
      %1338 = vmatpush2.msra.mxu0 0.0
      %1339 = vmatprep.subr.mxu0 0.0
      %1340 = vmatpush2.msra.mxu0 0.0
      %1341 = vmatprep.subr.mxu0 0.0
      %1342 = vmatpush2.msra.mxu0 0.0
      %1343 = vmatprep.subr.mxu0 0.0
      %1344 = vmatpush2.msra.mxu0 0.0
      %1345 = vmatprep.subr.mxu0 0.0
      %1346 = vmatpush2.msra.mxu0 0.0
      %1347 = vmatprep.subr.mxu0 0.0
      %1348 = vmatpush2.msra.mxu0 0.0
      %1349 = vmatprep.subr.mxu0 0.0
      %1350 = vmatpush2.msra.mxu0 0.0
      %1351 = vmatprep.subr.mxu0 0.0
      %1352 = vmatpush2.msra.mxu0 0.0
      %1353 = vmatprep.subr.mxu0 0.0
      %1354 = vmatpush2.msra.mxu0 0.0
      %1355 = vmatprep.subr.mxu0 0.0
      %1356 = vmatpush2.msra.mxu0 0.0
      %1357 = vmatprep.subr.mxu0 0.0
      %1358 = vmatpush2.msra.mxu0 0.0
      %1359 = vmatprep.subr.mxu0 0.0
      %1360 = vmatpush2.msra.mxu0 0.0
      %1361 = vmatprep.subr.mxu0 0.0
      %1362 = vmatpush2.msra.mxu0 0.0
      %1363 = vmatprep.subr.mxu0 0.0
      %1364 = vmatpush2.msra.mxu0 0.0
      %1365 = vmatprep.mubr.f32.mxu0 0.0
      %1366 = vmatmul.mubr.f32.gmra.mxu0 %v1292
      %v1367 = vpop.f32.mrf.mxu0
      %v1368 = vadd.f32 0.0, %v1367
      %v1369 = vpop.f32.mrf.mxu0
      %1370 = vmatprep.mubr.f32.mxu0 0.0
      %1371 = vmatmul.mubr.f32.gmra.mxu0 %v1295
      %v1372 = vpop.f32.mrf.mxu0
      %v1373 = vadd.f32 0.0, %v1372
      %v1374 = vpop.f32.mrf.mxu0
      %1375 = vdwg.mxu0
      %v1377 = vsel %vm735, %v1192, 0
      %v1380 = vsel %vm735, %v1193, 0
      %1382 = vmatprep.subr.mxu0 0.0
      %1383 = vmatpush1.msra.mxu0 0.0
      %1384 = vmatprep.subr.mxu0 0.0
      %1385 = vmatpush1.msra.mxu0 0.0
      %1386 = vmatprep.subr.mxu0 0.0
      %1387 = vmatpush1.msra.mxu0 0.0
      %1388 = vmatprep.subr.mxu0 0.0
      %1389 = vmatpush1.msra.mxu0 0.0
      %1390 = vmatprep.subr.mxu0 0.0
      %1391 = vmatpush1.msra.mxu0 0.0
      %1392 = vmatprep.subr.mxu0 0.0
      %1393 = vmatpush1.msra.mxu0 0.0
      %1394 = vmatprep.subr.mxu0 0.0
      %1395 = vmatpush1.msra.mxu0 0.0
      %1396 = vmatprep.subr.mxu0 0.0
      %1397 = vmatpush1.msra.mxu0 0.0
      %1398 = vmatprep.subr.mxu0 0.0
      %1399 = vmatpush1.msra.mxu0 0.0
      %1400 = vmatprep.subr.mxu0 0.0
      %1401 = vmatpush1.msra.mxu0 0.0
      %1402 = vmatprep.subr.mxu0 0.0
      %1403 = vmatpush1.msra.mxu0 0.0
      %1404 = vmatprep.subr.mxu0 0.0
      %1405 = vmatpush1.msra.mxu0 0.0
      %1406 = vmatprep.subr.mxu0 0.0
      %1407 = vmatpush1.msra.mxu0 0.0
      %1408 = vmatprep.subr.mxu0 0.0
      %1409 = vmatpush1.msra.mxu0 0.0
      %1410 = vmatprep.subr.mxu0 0.0
      %1411 = vmatpush1.msra.mxu0 0.0
      %1412 = vmatprep.subr.mxu0 0.0
      %1413 = vmatpush1.msra.mxu0 %v419
      %1414 = vmatprep.subr.mxu0 0.0
      %1415 = vmatpush2.msra.mxu0 0.0
      %1416 = vmatprep.subr.mxu0 0.0
      %1417 = vmatpush2.msra.mxu0 0.0
      %1418 = vmatprep.subr.mxu0 0.0
      %1419 = vmatpush2.msra.mxu0 0.0
      %1420 = vmatprep.subr.mxu0 0.0
      %1421 = vmatpush2.msra.mxu0 0.0
      %1422 = vmatprep.subr.mxu0 0.0
      %1423 = vmatpush2.msra.mxu0 0.0
      %1424 = vmatprep.subr.mxu0 0.0
      %1425 = vmatpush2.msra.mxu0 0.0
      %1426 = vmatprep.subr.mxu0 0.0
      %1427 = vmatpush2.msra.mxu0 0.0
      %1428 = vmatprep.subr.mxu0 0.0
      %1429 = vmatpush2.msra.mxu0 0.0
      %1430 = vmatprep.subr.mxu0 0.0
      %1431 = vmatpush2.msra.mxu0 0.0
      %1432 = vmatprep.subr.mxu0 0.0
      %1433 = vmatpush2.msra.mxu0 0.0
      %1434 = vmatprep.subr.mxu0 0.0
      %1435 = vmatpush2.msra.mxu0 0.0
      %1436 = vmatprep.subr.mxu0 0.0
      %1437 = vmatpush2.msra.mxu0 0.0
      %1438 = vmatprep.subr.mxu0 0.0
      %1439 = vmatpush2.msra.mxu0 0.0
      %1440 = vmatprep.subr.mxu0 0.0
      %1441 = vmatpush2.msra.mxu0 0.0
      %1442 = vmatprep.subr.mxu0 0.0
      %1443 = vmatpush2.msra.mxu0 0.0
      %1444 = vmatprep.subr.mxu0 0.0
      %1445 = vmatpush2.msra.mxu0 0.0
      %1446 = vmatprep.mubr.f32.mxu0 0.0
      %1447 = vmatmul.mubr.f32.gmra.mxu0 %v1377
      %v1448 = vpop.f32.mrf.mxu0
      %v1449 = vadd.f32 %v1368, %v1448
      %v1450 = vpop.f32.mrf.mxu0
      %1451 = vmatprep.mubr.f32.mxu0 0.0
      %1452 = vmatmul.mubr.f32.gmra.mxu0 %v1380
      %v1453 = vpop.f32.mrf.mxu0
      %v1454 = vadd.f32 %v1373, %v1453
      %v1455 = vpop.f32.mrf.mxu0
      %1456 = vdwg.mxu0
      %vm1457 = vcmask 97280
      %1458 = vst.msk [vmem:[%s401] sm:$0xff] %vm1457, %v1449
      %1459 = vst.msk [vmem:[%s401 + $0x8] sm:$0xff] %vm1457, %v1454
      %1460 = vxpose.xlu0.b32.start [1/16] %v1449, 128
      %1461 = vxpose.xlu0.b32.cont [2/16] %v1454, 128
      %1462 = vxpose.xlu0.b32.cont [3/16] 0.0, 128
      %1463 = vxpose.xlu0.b32.cont [4/16] 0.0, 128
      %1464 = vxpose.xlu0.b32.cont [5/16] 0.0, 128
      %1465 = vxpose.xlu0.b32.cont [6/16] 0.0, 128
      %1466 = vxpose.xlu0.b32.cont [7/16] 0.0, 128
      %1467 = vxpose.xlu0.b32.cont [8/16] 0.0, 128
      %1468 = vxpose.xlu0.b32.cont [9/16] 0.0, 128
      %1469 = vxpose.xlu0.b32.cont [10/16] 0.0, 128
      %1470 = vxpose.xlu0.b32.cont [11/16] 0.0, 128
      %1471 = vxpose.xlu0.b32.cont [12/16] 0.0, 128
      %1472 = vxpose.xlu0.b32.cont [13/16] 0.0, 128
      %1473 = vxpose.xlu0.b32.cont [14/16] 0.0, 128
      %1474 = vxpose.xlu0.b32.cont [15/16] 0.0, 128
      %1475 = vxpose.xlu0.b32.end [16/16] 0.0, 128
      %v1476 = vpop.trf.xlu0
      %v1477 = vpop.trf.xlu0
      %v1478 = vpop.trf.xlu0
      %v1479 = vpop.trf.xlu0
      %v1480 = vpop.trf.xlu0
      %v1481 = vpop.trf.xlu0
      %v1482 = vpop.trf.xlu0
      %v1483 = vpop.trf.xlu0
      %v1484 = vpop.trf.xlu0
      %v1485 = vpop.trf.xlu0
      %v1486 = vpop.trf.xlu0
      %v1487 = vpop.trf.xlu0
      %v1488 = vpop.trf.xlu0
      %v1489 = vpop.trf.xlu0
      %v1490 = vpop.trf.xlu0
      %v1491 = vpop.trf.xlu0
      %v1493 = vsel %vm433, %v1476, 0
      %v1496 = vsel %vm433, %v1477, 0
      %1498 = vmatprep.subr.mxu0 0.0
      %1499 = vmatpush1.msra.mxu0 0.0
      %1500 = vmatprep.subr.mxu0 0.0
      %1501 = vmatpush1.msra.mxu0 0.0
      %1502 = vmatprep.subr.mxu0 0.0
      %1503 = vmatpush1.msra.mxu0 0.0
      %1504 = vmatprep.subr.mxu0 0.0
      %1505 = vmatpush1.msra.mxu0 0.0
      %1506 = vmatprep.subr.mxu0 0.0
      %1507 = vmatpush1.msra.mxu0 0.0
      %1508 = vmatprep.subr.mxu0 0.0
      %1509 = vmatpush1.msra.mxu0 0.0
      %1510 = vmatprep.subr.mxu0 0.0
      %1511 = vmatpush1.msra.mxu0 0.0
      %1512 = vmatprep.subr.mxu0 0.0
      %1513 = vmatpush1.msra.mxu0 0.0
      %1514 = vmatprep.subr.mxu0 0.0
      %1515 = vmatpush1.msra.mxu0 0.0
      %1516 = vmatprep.subr.mxu0 0.0
      %1517 = vmatpush1.msra.mxu0 0.0
      %1518 = vmatprep.subr.mxu0 0.0
      %1519 = vmatpush1.msra.mxu0 0.0
      %1520 = vmatprep.subr.mxu0 0.0
      %1521 = vmatpush1.msra.mxu0 0.0
      %1522 = vmatprep.subr.mxu0 0.0
      %1523 = vmatpush1.msra.mxu0 0.0
      %1524 = vmatprep.subr.mxu0 0.0
      %1525 = vmatpush1.msra.mxu0 0.0
      %1526 = vmatprep.subr.mxu0 0.0
      %1527 = vmatpush1.msra.mxu0 %v1454
      %1528 = vmatprep.subr.mxu0 0.0
      %1529 = vmatpush1.msra.mxu0 %v1449
      %1530 = vmatprep.subr.mxu0 0.0
      %1531 = vmatpush2.msra.mxu0 0.0
      %1532 = vmatprep.subr.mxu0 0.0
      %1533 = vmatpush2.msra.mxu0 0.0
      %1534 = vmatprep.subr.mxu0 0.0
      %1535 = vmatpush2.msra.mxu0 0.0
      %1536 = vmatprep.subr.mxu0 0.0
      %1537 = vmatpush2.msra.mxu0 0.0
      %1538 = vmatprep.subr.mxu0 0.0
      %1539 = vmatpush2.msra.mxu0 0.0
      %1540 = vmatprep.subr.mxu0 0.0
      %1541 = vmatpush2.msra.mxu0 0.0
      %1542 = vmatprep.subr.mxu0 0.0
      %1543 = vmatpush2.msra.mxu0 0.0
      %1544 = vmatprep.subr.mxu0 0.0
      %1545 = vmatpush2.msra.mxu0 0.0
      %1546 = vmatprep.subr.mxu0 0.0
      %1547 = vmatpush2.msra.mxu0 0.0
      %1548 = vmatprep.subr.mxu0 0.0
      %1549 = vmatpush2.msra.mxu0 0.0
      %1550 = vmatprep.subr.mxu0 0.0
      %1551 = vmatpush2.msra.mxu0 0.0
      %1552 = vmatprep.subr.mxu0 0.0
      %1553 = vmatpush2.msra.mxu0 0.0
      %1554 = vmatprep.subr.mxu0 0.0
      %1555 = vmatpush2.msra.mxu0 0.0
      %1556 = vmatprep.subr.mxu0 0.0
      %1557 = vmatpush2.msra.mxu0 0.0
      %1558 = vmatprep.subr.mxu0 0.0
      %1559 = vmatpush2.msra.mxu0 0.0
      %1560 = vmatprep.subr.mxu0 0.0
      %1561 = vmatpush2.msra.mxu0 0.0
      %1562 = vmatprep.mubr.f32.mxu0 0.0
      %1563 = vmatmul.mubr.f32.gmra.mxu0 %v1493
      %v1564 = vpop.f32.mrf.mxu0
      %v1565 = vadd.f32 0.0, %v1564
      %v1566 = vpop.f32.mrf.mxu0
      %1567 = vmatprep.mubr.f32.mxu0 0.0
      %1568 = vmatmul.mubr.f32.gmra.mxu0 %v1496
      %v1569 = vpop.f32.mrf.mxu0
      %v1570 = vadd.f32 0.0, %v1569
      %v1571 = vpop.f32.mrf.mxu0
      %1572 = vdwg.mxu0
      %v1573 = vsel %vm1457, %v1565, -inf
      %1574 = vmax.xlane.f32.xlu0 %v1573
      %v1575 = vpop.xlane.xlu0 %1574
      %vm1576 = vcmask 93184
      %v1577 = vsel %vm1576, %v1570, -inf
      %1578 = vmax.xlane.f32.xlu0 %v1577
      %v1579 = vpop.xlane.xlu0 %1578
      %v1580 = vsub.f32 %v1565, %v1575
      %v1581 = vsub.f32 %v1570, %v1579
      %v1582 = vmul.f32 %v1580, 1.442695
      %v1583 = vpow.pop %v1582
      %v1584 = vmul.f32 %v1581, 1.442695
      %v1585 = vpow.pop %v1584
      %v1586 = vsel %vm1457, %v1583, 0.0
      %1587 = vadd.xlane.f32.xlu0 %v1586
      %v1588 = vpop.xlane.xlu0 %1587
      %v1589 = vsel %vm1576, %v1585, 0.0
      %1590 = vadd.xlane.f32.xlu0 %v1589
      %v1591 = vpop.xlane.xlu0 %1590
      %v1592 = vrcp.pop %v1588
      %v1593 = vmul.f32 %v1583, %v1592
      %v1594 = vrcp.pop %v1591
      %v1595 = vmul.f32 %v1585, %v1594
      %v1596 = vsel %vm1457, %v1593, 0.0
      %v1597 = vsel %vm1576, %v1595, 0.0
      %v1598 = vadd.f32 %v1596, %v1597
      %v1599 = vrot.slane %v1598, 4
      %v1600 = vadd.f32 %v1598, %v1599
      %v1601 = vrot.slane %v1600, 2
      %v1602 = vadd.f32 %v1600, %v1601
      %v1603 = vrot.slane %v1602, 1
      %v1604 = vadd.f32 %v1602, %v1603
      %vm1605 = vcmask 90112
      %1606 = vst.msk [vmem:[%s404] sm:$0x1] %vm1605, %v1604
      %p1607 = scmp.lt.s32.totalorder %s23, 1
      %s1608 = scalar_select %p1607, %s23, 1
      %s1609 = smul.addr %s1608, 2
      %s1610 = smul.addr %s1609, 8
      %s1611 = scalar_lea.vmem %s9, %s1610
      %p1612 = scmp.lt.s32.totalorder %s23, 1
      %s1613 = scalar_select %p1612, %s23, 1
      %s1614 = smul.addr %s1613, 2
      %s1615 = smul.addr %s1614, 8
      %s1616 = scalar_lea.vmem %s10, %s1615
      %p1617 = scmp.lt.s32.totalorder %s23, 1
      %s1618 = scalar_select %p1617, %s23, 1
      %s1619 = scalar_lea.vmem %s11, %s1618
      // Predicated region
      $region57: #{convae_mtce_forward.2} parent=55 // pred_check
        %p1620 = pneg %p235
      $region58: #{convae_mtce_forward.2} parent=55 // pred_check_branch
        %1622 = sbr.rel (%p1620) target = $region60
      $region59: #{convae_mtce_forward.2} parent=55 // pred_region
        _
      $region60: #{convae_mtce_forward.2} parent=55 // pred_fallthru
        _
      // Predicated region
      $region61: #{convae_mtce_forward.2} parent=55 // pred_check
        %p1623 = pneg %p261
      $region62: #{convae_mtce_forward.2} parent=55 // pred_check_branch
        %1625 = sbr.rel (%p1623) target = $region64
      $region63: #{convae_mtce_forward.2} parent=55 // pred_region
        _
      $region64: #{convae_mtce_forward.2} parent=55 // pred_fallthru
        _
      // Predicated region
      $region65: #{convae_mtce_forward.2} parent=55 // pred_check
        %p1626 = pneg %p287
      $region66: #{convae_mtce_forward.2} parent=55 // pred_check_branch
        %1628 = sbr.rel (%p1626) target = $region68
      $region67: #{convae_mtce_forward.2} parent=55 // pred_region
        _
      $region68: #{convae_mtce_forward.2} parent=55 // pred_fallthru
        _
    $region56: #{convae_mtce_forward.2} parent=5 // pred_fallthru
      _
    %p1629 = scmp.le.s32.totalorder 2, %s18
    // Predicated region
    $region69: #{convae_mtce_forward.2} parent=5 // pred_check
      %p1630 = pneg %p1629
    $region70: #{convae_mtce_forward.2} parent=5 // pred_check_branch
      %1632 = sbr.rel (%p1630) target = $region72
    $region71: #{convae_mtce_forward.2} parent=5 // pred_region
      %s1633 = ssub.s32 %s18, 2
      // Predicated region
      $region73: #{convae_mtce_forward.2} parent=71 // pred_check
        %p1634 = pneg %p241
      $region74: #{convae_mtce_forward.2} parent=71 // pred_check_branch
        %1636 = sbr.rel (%p1634) target = $region76
      $region75: #{convae_mtce_forward.2} parent=71 // pred_region
        %p1637 = scmp.lt.s32.totalorder %s24, 1
        %s1638 = scalar_select %p1637, %s24, 1
        %s1639 = smul.addr %s1638, 2
        %s1640 = smul.addr %s1639, 8
        %s1641 = scalar_lea.vmem %s9, %s1640
      $region76: #{convae_mtce_forward.2} parent=71 // pred_fallthru
        _
      // Predicated region
      $region77: #{convae_mtce_forward.2} parent=71 // pred_check
        %p1642 = pneg %p267
      $region78: #{convae_mtce_forward.2} parent=71 // pred_check_branch
        %1644 = sbr.rel (%p1642) target = $region80
      $region79: #{convae_mtce_forward.2} parent=71 // pred_region
        %p1645 = scmp.lt.s32.totalorder %s24, 1
        %s1646 = scalar_select %p1645, %s24, 1
        %s1647 = smul.addr %s1646, 2
        %s1648 = smul.addr %s1647, 8
        %s1649 = scalar_lea.vmem %s10, %s1648
      $region80: #{convae_mtce_forward.2} parent=71 // pred_fallthru
        _
      // Predicated region
      $region81: #{convae_mtce_forward.2} parent=71 // pred_check
        %p1650 = pneg %p293
      $region82: #{convae_mtce_forward.2} parent=71 // pred_check_branch
        %1652 = sbr.rel (%p1650) target = $region84
      $region83: #{convae_mtce_forward.2} parent=71 // pred_region
        %p1653 = scmp.lt.s32.totalorder %s24, 1
        %s1654 = scalar_select %p1653, %s24, 1
        %s1655 = scalar_lea.vmem %s11, %s1654
      $region84: #{convae_mtce_forward.2} parent=71 // pred_fallthru
        _
    $region72: #{convae_mtce_forward.2} parent=5 // pred_fallthru
      _
  $region6: #{convae_mtce_forward.2} parent=0 // loop_footer
    %s22 = sadd.s32 1, %s18
  $region7: #{convae_mtce_forward.2} parent=0 // loop_footer_branch
    %17 = sbr.rel target = $region3
  $region8: #{convae_mtce_forward.2} parent=0 // loop_exit
    _

// kernel: convae_mtce_forward.3
$region0: #{convae_mtce_forward.3}
  #allocation0 [shape = 'u32[]', space=smem, size = 0x4, offset = 0x4, fixed_abs, tag = 'smem constant byte address 0x4 - core index']
  #allocation1 [shape = 'u32[144,128]{1,0:T(1,128)}', space=vmem, size = 0x12000, scoped, tag = 'internal scratch']
  #allocation2 [shape = 'f32[16,7]{1,0:T(8,128)}', space=vmem, size = 0x2000, scoped, tag = 'scratch operand']
  #allocation3 [shape = 'f32[64,4]{1,0:T(8,128)}', space=vmem, size = 0x8000, scoped, tag = 'scratch operand']
  #allocation4 [shape = 'f32[16,11]{1,0:T(8,128)}', space=vmem, size = 0x2000, scoped, tag = 'scratch operand']
  #allocation5 [shape = 'f32[64,8]{1,0:T(8,128)}', space=vmem, size = 0x8000, scoped, tag = 'scratch operand']
  #allocation6 [shape = 'f32[32,22]{1,0:T(8,128)}', space=vmem, size = 0x4000, scoped, tag = 'scratch operand']
  #allocation7 [shape = 'f32[224,16]{1,0:T(8,128)}', space=vmem, size = 0x1c000, scoped, tag = 'scratch operand']
  %s0 = inlined_call_operand.vmem [shape: f32[2,16,4], index: 0, kind: input, shape index: {}]
  %s1 = inlined_call_operand.vmem [shape: f32[2,16,12], index: 1, kind: input, shape index: {}]
  %s2 = inlined_call_operand.vmem [shape: f32[2,16,6], index: 2, kind: input, shape index: {}]
  %s3 = inlined_call_operand.vmem [shape: f32[16,16], index: 3, kind: input, shape index: {}]
  %s4 = inlined_call_operand.vmem [shape: f32[16,1], index: 4, kind: input, shape index: {}]
  %s5 = inlined_call_operand.vmem [shape: f32[16,48], index: 5, kind: input, shape index: {}]
  %s6 = inlined_call_operand.vmem [shape: f32[16,64], index: 6, kind: input, shape index: {}]
  %s7 = inlined_call_operand.vmem [shape: f32[16,1], index: 7, kind: input, shape index: {}]
  %s8 = inlined_call_operand.vmem [shape: f32[32,48], index: 8, kind: input, shape index: {}]
  %s9 = inlined_call_operand.vmem [shape: f32[32,64], index: 9, kind: input, shape index: {}]
  %s10 = inlined_call_operand.vmem [shape: f32[32,1], index: 10, kind: input, shape index: {}]
  %s11 = inlined_call_operand.vmem [shape: f32[8,224], index: 11, kind: input, shape index: {}]
  %s12 = inlined_call_operand.vmem [shape: f32[8,1], index: 12, kind: input, shape index: {}]
  %s13 = inlined_call_operand.hbm [shape: f32[2,8,16], index: 13, kind: output, shape index: {0}]
  %s14 = inlined_call_operand.hbm [shape: f32[2,8,16], index: 14, kind: output, shape index: {1}]
  %15 = xla_tuple %s13, %s14
  %s16 = sld [smem:[#allocation0]]
  $region93: #{convae_mtce_forward.3} parent=0
    _
  %s18 = ssub.s32 1, %s16
  %s19 = scalar_select 0, %s18, %s16
  $region1: #{convae_mtce_forward.3} parent=0
    #allocation8 [shape = 'u8[8192]{0}', space=vmem, size = 0x2000, scoped, tag = 'output window, operand 0']
    #allocation9 [shape = 's32[2]{0}', space=sflag, size = 0x8, scoped, tag = 'scoped memory for convae_mtce_forward.3']
    #allocation10 [shape = 'u8[8192]{0}', space=vmem, size = 0x2000, scoped, tag = 'output window, operand 1']
    #allocation11 [shape = 's32[2]{0}', space=sflag, size = 0x8, scoped, tag = 'scoped memory for convae_mtce_forward.3']
    %20 = vsyncpa [#allocation9], 0
    %s21 = scalar_lea.sflag [#allocation9], 1
    %22 = vsyncpa %s21, 0
    %23 = vsyncpa [#allocation11], 0
    %s24 = scalar_lea.sflag [#allocation11], 1
    %25 = vsyncpa %s24, 0
    loop: start=0, step=1, limit=4
    $region2: #{convae_mtce_forward.3} parent=1 // loop_pre_header
      _
    $region3: #{convae_mtce_forward.3} parent=1 // loop_header
      %s27 = sphi 0, %s31
      %p28 = scmp.ge.s32.totalorder %s27, 4
      %s37 = sphi 0, %s39
      %s40 = sphi 0, %s37
      %s41 = sphi 0, %s40
      %s57 = sphi 0, %s41
      %s63 = sphi 0, %s65
      %s66 = sphi 0, %s63
      %s67 = sphi 0, %s66
      %s83 = sphi 0, %s67
      %s89 = sphi 0, %s91
      %s92 = sphi 0, %s89
      %s93 = sphi 0, %s92
      %s109 = sphi 0, %s93
      %s113 = sphi 0, %s113
      %s115 = sphi 0, %s113
      %s116 = sphi 0, %s115
      %s130 = sphi 0, %s116
      %s134 = sphi 0, %s134
      %s136 = sphi 0, %s134
      %s137 = sphi 0, %s136
      %s151 = sphi 0, %s137
      %s155 = sphi 0, %s155
      %s157 = sphi 0, %s155
      %s158 = sphi 0, %s157
      %s172 = sphi 0, %s158
      %s176 = sphi 0, %s176
      %s178 = sphi 0, %s176
      %s179 = sphi 0, %s178
      %s193 = sphi 0, %s179
      %s197 = sphi 0, %s197
      %s199 = sphi 0, %s197
      %s200 = sphi 0, %s199
      %s214 = sphi 0, %s200
      %s218 = sphi 0, %s218
      %s220 = sphi 0, %s218
      %s221 = sphi 0, %s220
      %s235 = sphi 0, %s221
      %s239 = sphi 0, %s239
      %s241 = sphi 0, %s239
      %s242 = sphi 0, %s241
      %s256 = sphi 0, %s242
      %s260 = sphi 0, %s260
      %s262 = sphi 0, %s260
      %s263 = sphi 0, %s262
      %s277 = sphi 0, %s263
      %s281 = sphi 0, %s281
      %s283 = sphi 0, %s281
      %s284 = sphi 0, %s283
      %s298 = sphi 0, %s284
      %s302 = sphi 0, %s302
      %s304 = sphi 0, %s302
      %s305 = sphi 0, %s304
      %s319 = sphi 0, %s305
      %s325 = sphi 0, %s327
      %s328 = sphi 0, %s325
      %s329 = sphi 0, %s328
      %s345 = sphi 0, %s329
      %s351 = sphi 0, %s353
      %s354 = sphi 0, %s351
      %s355 = sphi 0, %s354
      %s371 = sphi 0, %s355
    $region4: #{convae_mtce_forward.3} parent=1 // loop_header_branch
      %30 = sbr.rel (%p28) target = $region8
    $region5: #{convae_mtce_forward.3} parent=1 // loop_body
      %s32 = ssub.s32 %s27, 1
      %s33 = ssub.s32 %s27, 2
      %s34 = sadd.s32 %s27, 1
      %s35 = ssub.s32 %s27, %s34
      %p36 = scmp.eq.s32.totalorder %s35, 0
      %s38 = sadd.s32 %s37, 1
      %s39 = scalar_select %p36, %s37, %s38
      %p42 = pneg %p36
      %p43 = scmp.eq.s32.totalorder %s27, 1
      %p44 = por %p42, %p43
      %p45 = scmp.ne.s32.totalorder %s37, %s40
      %p46 = scmp.eq.s32.totalorder %s27, 0
      %p47 = por %p45, %p46
      %p48 = scmp.ne.s32.totalorder %s37, %s40
      %p49 = scmp.eq.s32.totalorder %s32, 1
      %p50 = por %p48, %p49
      %p51 = scmp.ne.s32.totalorder %s40, %s41
      %p52 = scmp.eq.s32.totalorder %s32, 0
      %p53 = por %p51, %p52
      %p54 = scmp.ne.s32.totalorder %s40, %s41
      %p55 = scmp.eq.s32.totalorder %s33, 1
      %p56 = por %p54, %p55
      %p58 = scmp.ne.s32.totalorder %s41, %s57
      %p59 = scmp.eq.s32.totalorder %s33, 0
      %p60 = por %p58, %p59
      %s61 = ssub.s32 %s27, %s34
      %p62 = scmp.eq.s32.totalorder %s61, 0
      %s64 = sadd.s32 %s63, 1
      %s65 = scalar_select %p62, %s63, %s64
      %p68 = pneg %p62
      %p69 = scmp.eq.s32.totalorder %s27, 1
      %p70 = por %p68, %p69
      %p71 = scmp.ne.s32.totalorder %s63, %s66
      %p72 = scmp.eq.s32.totalorder %s27, 0
      %p73 = por %p71, %p72
      %p74 = scmp.ne.s32.totalorder %s63, %s66
      %p75 = scmp.eq.s32.totalorder %s32, 1
      %p76 = por %p74, %p75
      %p77 = scmp.ne.s32.totalorder %s66, %s67
      %p78 = scmp.eq.s32.totalorder %s32, 0
      %p79 = por %p77, %p78
      %p80 = scmp.ne.s32.totalorder %s66, %s67
      %p81 = scmp.eq.s32.totalorder %s33, 1
      %p82 = por %p80, %p81
      %p84 = scmp.ne.s32.totalorder %s67, %s83
      %p85 = scmp.eq.s32.totalorder %s33, 0
      %p86 = por %p84, %p85
      %s87 = ssub.s32 %s27, %s34
      %p88 = scmp.eq.s32.totalorder %s87, 0
      %s90 = sadd.s32 %s89, 1
      %s91 = scalar_select %p88, %s89, %s90
      %p94 = pneg %p88
      %p95 = scmp.eq.s32.totalorder %s27, 1
      %p96 = por %p94, %p95
      %p97 = scmp.ne.s32.totalorder %s89, %s92
      %p98 = scmp.eq.s32.totalorder %s27, 0
      %p99 = por %p97, %p98
      %p100 = scmp.ne.s32.totalorder %s89, %s92
      %p101 = scmp.eq.s32.totalorder %s32, 1
      %p102 = por %p100, %p101
      %p103 = scmp.ne.s32.totalorder %s92, %s93
      %p104 = scmp.eq.s32.totalorder %s32, 0
      %p105 = por %p103, %p104
      %p106 = scmp.ne.s32.totalorder %s92, %s93
      %p107 = scmp.eq.s32.totalorder %s33, 1
      %p108 = por %p106, %p107
      %p110 = scmp.ne.s32.totalorder %s93, %s109
      %p111 = scmp.eq.s32.totalorder %s33, 0
      %p112 = por %p110, %p111
      %s114 = sadd.s32 %s113, 1
      %p117 = scmp.eq.s32.totalorder %s27, 1
      %p118 = scmp.ne.s32.totalorder %s113, %s115
      %p119 = scmp.eq.s32.totalorder %s27, 0
      %p120 = por %p118, %p119
      %p121 = scmp.ne.s32.totalorder %s113, %s115
      %p122 = scmp.eq.s32.totalorder %s32, 1
      %p123 = por %p121, %p122
      %p124 = scmp.ne.s32.totalorder %s115, %s116
      %p125 = scmp.eq.s32.totalorder %s32, 0
      %p126 = por %p124, %p125
      %p127 = scmp.ne.s32.totalorder %s115, %s116
      %p128 = scmp.eq.s32.totalorder %s33, 1
      %p129 = por %p127, %p128
      %p131 = scmp.ne.s32.totalorder %s116, %s130
      %p132 = scmp.eq.s32.totalorder %s33, 0
      %p133 = por %p131, %p132
      %s135 = sadd.s32 %s134, 1
      %p138 = scmp.eq.s32.totalorder %s27, 1
      %p139 = scmp.ne.s32.totalorder %s134, %s136
      %p140 = scmp.eq.s32.totalorder %s27, 0
      %p141 = por %p139, %p140
      %p142 = scmp.ne.s32.totalorder %s134, %s136
      %p143 = scmp.eq.s32.totalorder %s32, 1
      %p144 = por %p142, %p143
      %p145 = scmp.ne.s32.totalorder %s136, %s137
      %p146 = scmp.eq.s32.totalorder %s32, 0
      %p147 = por %p145, %p146
      %p148 = scmp.ne.s32.totalorder %s136, %s137
      %p149 = scmp.eq.s32.totalorder %s33, 1
      %p150 = por %p148, %p149
      %p152 = scmp.ne.s32.totalorder %s137, %s151
      %p153 = scmp.eq.s32.totalorder %s33, 0
      %p154 = por %p152, %p153
      %s156 = sadd.s32 %s155, 1
      %p159 = scmp.eq.s32.totalorder %s27, 1
      %p160 = scmp.ne.s32.totalorder %s155, %s157
      %p161 = scmp.eq.s32.totalorder %s27, 0
      %p162 = por %p160, %p161
      %p163 = scmp.ne.s32.totalorder %s155, %s157
      %p164 = scmp.eq.s32.totalorder %s32, 1
      %p165 = por %p163, %p164
      %p166 = scmp.ne.s32.totalorder %s157, %s158
      %p167 = scmp.eq.s32.totalorder %s32, 0
      %p168 = por %p166, %p167
      %p169 = scmp.ne.s32.totalorder %s157, %s158
      %p170 = scmp.eq.s32.totalorder %s33, 1
      %p171 = por %p169, %p170
      %p173 = scmp.ne.s32.totalorder %s158, %s172
      %p174 = scmp.eq.s32.totalorder %s33, 0
      %p175 = por %p173, %p174
      %s177 = sadd.s32 %s176, 1
      %p180 = scmp.eq.s32.totalorder %s27, 1
      %p181 = scmp.ne.s32.totalorder %s176, %s178
      %p182 = scmp.eq.s32.totalorder %s27, 0
      %p183 = por %p181, %p182
      %p184 = scmp.ne.s32.totalorder %s176, %s178
      %p185 = scmp.eq.s32.totalorder %s32, 1
      %p186 = por %p184, %p185
      %p187 = scmp.ne.s32.totalorder %s178, %s179
      %p188 = scmp.eq.s32.totalorder %s32, 0
      %p189 = por %p187, %p188
      %p190 = scmp.ne.s32.totalorder %s178, %s179
      %p191 = scmp.eq.s32.totalorder %s33, 1
      %p192 = por %p190, %p191
      %p194 = scmp.ne.s32.totalorder %s179, %s193
      %p195 = scmp.eq.s32.totalorder %s33, 0
      %p196 = por %p194, %p195
      %s198 = sadd.s32 %s197, 1
      %p201 = scmp.eq.s32.totalorder %s27, 1
      %p202 = scmp.ne.s32.totalorder %s197, %s199
      %p203 = scmp.eq.s32.totalorder %s27, 0
      %p204 = por %p202, %p203
      %p205 = scmp.ne.s32.totalorder %s197, %s199
      %p206 = scmp.eq.s32.totalorder %s32, 1
      %p207 = por %p205, %p206
      %p208 = scmp.ne.s32.totalorder %s199, %s200
      %p209 = scmp.eq.s32.totalorder %s32, 0
      %p210 = por %p208, %p209
      %p211 = scmp.ne.s32.totalorder %s199, %s200
      %p212 = scmp.eq.s32.totalorder %s33, 1
      %p213 = por %p211, %p212
      %p215 = scmp.ne.s32.totalorder %s200, %s214
      %p216 = scmp.eq.s32.totalorder %s33, 0
      %p217 = por %p215, %p216
      %s219 = sadd.s32 %s218, 1
      %p222 = scmp.eq.s32.totalorder %s27, 1
      %p223 = scmp.ne.s32.totalorder %s218, %s220
      %p224 = scmp.eq.s32.totalorder %s27, 0
      %p225 = por %p223, %p224
      %p226 = scmp.ne.s32.totalorder %s218, %s220
      %p227 = scmp.eq.s32.totalorder %s32, 1
      %p228 = por %p226, %p227
      %p229 = scmp.ne.s32.totalorder %s220, %s221
      %p230 = scmp.eq.s32.totalorder %s32, 0
      %p231 = por %p229, %p230
      %p232 = scmp.ne.s32.totalorder %s220, %s221
      %p233 = scmp.eq.s32.totalorder %s33, 1
      %p234 = por %p232, %p233
      %p236 = scmp.ne.s32.totalorder %s221, %s235
      %p237 = scmp.eq.s32.totalorder %s33, 0
      %p238 = por %p236, %p237
      %s240 = sadd.s32 %s239, 1
      %p243 = scmp.eq.s32.totalorder %s27, 1
      %p244 = scmp.ne.s32.totalorder %s239, %s241
      %p245 = scmp.eq.s32.totalorder %s27, 0
      %p246 = por %p244, %p245
      %p247 = scmp.ne.s32.totalorder %s239, %s241
      %p248 = scmp.eq.s32.totalorder %s32, 1
      %p249 = por %p247, %p248
      %p250 = scmp.ne.s32.totalorder %s241, %s242
      %p251 = scmp.eq.s32.totalorder %s32, 0
      %p252 = por %p250, %p251
      %p253 = scmp.ne.s32.totalorder %s241, %s242
      %p254 = scmp.eq.s32.totalorder %s33, 1
      %p255 = por %p253, %p254
      %p257 = scmp.ne.s32.totalorder %s242, %s256
      %p258 = scmp.eq.s32.totalorder %s33, 0
      %p259 = por %p257, %p258
      %s261 = sadd.s32 %s260, 1
      %p264 = scmp.eq.s32.totalorder %s27, 1
      %p265 = scmp.ne.s32.totalorder %s260, %s262
      %p266 = scmp.eq.s32.totalorder %s27, 0
      %p267 = por %p265, %p266
      %p268 = scmp.ne.s32.totalorder %s260, %s262
      %p269 = scmp.eq.s32.totalorder %s32, 1
      %p270 = por %p268, %p269
      %p271 = scmp.ne.s32.totalorder %s262, %s263
      %p272 = scmp.eq.s32.totalorder %s32, 0
      %p273 = por %p271, %p272
      %p274 = scmp.ne.s32.totalorder %s262, %s263
      %p275 = scmp.eq.s32.totalorder %s33, 1
      %p276 = por %p274, %p275
      %p278 = scmp.ne.s32.totalorder %s263, %s277
      %p279 = scmp.eq.s32.totalorder %s33, 0
      %p280 = por %p278, %p279
      %s282 = sadd.s32 %s281, 1
      %p285 = scmp.eq.s32.totalorder %s27, 1
      %p286 = scmp.ne.s32.totalorder %s281, %s283
      %p287 = scmp.eq.s32.totalorder %s27, 0
      %p288 = por %p286, %p287
      %p289 = scmp.ne.s32.totalorder %s281, %s283
      %p290 = scmp.eq.s32.totalorder %s32, 1
      %p291 = por %p289, %p290
      %p292 = scmp.ne.s32.totalorder %s283, %s284
      %p293 = scmp.eq.s32.totalorder %s32, 0
      %p294 = por %p292, %p293
      %p295 = scmp.ne.s32.totalorder %s283, %s284
      %p296 = scmp.eq.s32.totalorder %s33, 1
      %p297 = por %p295, %p296
      %p299 = scmp.ne.s32.totalorder %s284, %s298
      %p300 = scmp.eq.s32.totalorder %s33, 0
      %p301 = por %p299, %p300
      %s303 = sadd.s32 %s302, 1
      %p306 = scmp.eq.s32.totalorder %s27, 1
      %p307 = scmp.ne.s32.totalorder %s302, %s304
      %p308 = scmp.eq.s32.totalorder %s27, 0
      %p309 = por %p307, %p308
      %p310 = scmp.ne.s32.totalorder %s302, %s304
      %p311 = scmp.eq.s32.totalorder %s32, 1
      %p312 = por %p310, %p311
      %p313 = scmp.ne.s32.totalorder %s304, %s305
      %p314 = scmp.eq.s32.totalorder %s32, 0
      %p315 = por %p313, %p314
      %p316 = scmp.ne.s32.totalorder %s304, %s305
      %p317 = scmp.eq.s32.totalorder %s33, 1
      %p318 = por %p316, %p317
      %p320 = scmp.ne.s32.totalorder %s305, %s319
      %p321 = scmp.eq.s32.totalorder %s33, 0
      %p322 = por %p320, %p321
      %s323 = ssub.s32 %s27, %s34
      %p324 = scmp.eq.s32.totalorder %s323, 0
      %s326 = sadd.s32 %s325, 1
      %s327 = scalar_select %p324, %s325, %s326
      %p330 = pneg %p324
      %p331 = scmp.eq.s32.totalorder %s27, 1
      %p332 = por %p330, %p331
      %p333 = scmp.ne.s32.totalorder %s325, %s328
      %p334 = scmp.eq.s32.totalorder %s27, 0
      %p335 = por %p333, %p334
      %p336 = scmp.ne.s32.totalorder %s325, %s328
      %p337 = scmp.eq.s32.totalorder %s32, 1
      %p338 = por %p336, %p337
      %p339 = scmp.ne.s32.totalorder %s328, %s329
      %p340 = scmp.eq.s32.totalorder %s32, 0
      %p341 = por %p339, %p340
      %p342 = scmp.ne.s32.totalorder %s328, %s329
      %p343 = scmp.eq.s32.totalorder %s33, 1
      %p344 = por %p342, %p343
      %p346 = scmp.ne.s32.totalorder %s329, %s345
      %p347 = scmp.eq.s32.totalorder %s33, 0
      %p348 = por %p346, %p347
      %s349 = ssub.s32 %s27, %s34
      %p350 = scmp.eq.s32.totalorder %s349, 0
      %s352 = sadd.s32 %s351, 1
      %s353 = scalar_select %p350, %s351, %s352
      %p356 = pneg %p350
      %p357 = scmp.eq.s32.totalorder %s27, 1
      %p358 = por %p356, %p357
      %p359 = scmp.ne.s32.totalorder %s351, %s354
      %p360 = scmp.eq.s32.totalorder %s27, 0
      %p361 = por %p359, %p360
      %p362 = scmp.ne.s32.totalorder %s351, %s354
      %p363 = scmp.eq.s32.totalorder %s32, 1
      %p364 = por %p362, %p363
      %p365 = scmp.ne.s32.totalorder %s354, %s355
      %p366 = scmp.eq.s32.totalorder %s32, 0
      %p367 = por %p365, %p366
      %p368 = scmp.ne.s32.totalorder %s354, %s355
      %p369 = scmp.eq.s32.totalorder %s33, 1
      %p370 = por %p368, %p369
      %p372 = scmp.ne.s32.totalorder %s355, %s371
      %p373 = scmp.eq.s32.totalorder %s33, 0
      %p374 = por %p372, %p373
      %p375 = scmp.le.s32.totalorder 1, %s27
      %p376 = scmp.lt.s32.totalorder %s27, 3
      %p377 = pnand %p375, %p376
      %p378 = pneg %p377
      // Predicated region
      $region9: #{convae_mtce_forward.3} parent=5 // pred_check
        _
      $region10: #{convae_mtce_forward.3} parent=5 // pred_check_branch
        %380 = sbr.rel (%p377) target = $region12
      $region11: #{convae_mtce_forward.3} parent=5 // pred_region
        %s381 = ssub.s32 %s27, 1
        // Predicated region
        $region13: #{convae_mtce_forward.3} parent=11 // pred_check
          %p382 = pneg %p126
        $region14: #{convae_mtce_forward.3} parent=11 // pred_check_branch
          %384 = sbr.rel (%p382) target = $region16
        $region15: #{convae_mtce_forward.3} parent=11 // pred_region
          _
        $region16: #{convae_mtce_forward.3} parent=11 // pred_fallthru
          _
        // Predicated region
        $region17: #{convae_mtce_forward.3} parent=11 // pred_check
          %p385 = pneg %p147
        $region18: #{convae_mtce_forward.3} parent=11 // pred_check_branch
          %387 = sbr.rel (%p385) target = $region20
        $region19: #{convae_mtce_forward.3} parent=11 // pred_region
          _
        $region20: #{convae_mtce_forward.3} parent=11 // pred_fallthru
          _
        // Predicated region
        $region21: #{convae_mtce_forward.3} parent=11 // pred_check
          %p388 = pneg %p168
        $region22: #{convae_mtce_forward.3} parent=11 // pred_check_branch
          %390 = sbr.rel (%p388) target = $region24
        $region23: #{convae_mtce_forward.3} parent=11 // pred_region
          _
        $region24: #{convae_mtce_forward.3} parent=11 // pred_fallthru
          _
        // Predicated region
        $region25: #{convae_mtce_forward.3} parent=11 // pred_check
          %p391 = pneg %p189
        $region26: #{convae_mtce_forward.3} parent=11 // pred_check_branch
          %393 = sbr.rel (%p391) target = $region28
        $region27: #{convae_mtce_forward.3} parent=11 // pred_region
          _
        $region28: #{convae_mtce_forward.3} parent=11 // pred_fallthru
          _
        // Predicated region
        $region29: #{convae_mtce_forward.3} parent=11 // pred_check
          %p394 = pneg %p210
        $region30: #{convae_mtce_forward.3} parent=11 // pred_check_branch
          %396 = sbr.rel (%p394) target = $region32
        $region31: #{convae_mtce_forward.3} parent=11 // pred_region
          _
        $region32: #{convae_mtce_forward.3} parent=11 // pred_fallthru
          _
        // Predicated region
        $region33: #{convae_mtce_forward.3} parent=11 // pred_check
          %p397 = pneg %p231
        $region34: #{convae_mtce_forward.3} parent=11 // pred_check_branch
          %399 = sbr.rel (%p397) target = $region36
        $region35: #{convae_mtce_forward.3} parent=11 // pred_region
          _
        $region36: #{convae_mtce_forward.3} parent=11 // pred_fallthru
          _
        // Predicated region
        $region37: #{convae_mtce_forward.3} parent=11 // pred_check
          %p400 = pneg %p252
        $region38: #{convae_mtce_forward.3} parent=11 // pred_check_branch
          %402 = sbr.rel (%p400) target = $region40
        $region39: #{convae_mtce_forward.3} parent=11 // pred_region
          _
        $region40: #{convae_mtce_forward.3} parent=11 // pred_fallthru
          _
        // Predicated region
        $region41: #{convae_mtce_forward.3} parent=11 // pred_check
          %p403 = pneg %p273
        $region42: #{convae_mtce_forward.3} parent=11 // pred_check_branch
          %405 = sbr.rel (%p403) target = $region44
        $region43: #{convae_mtce_forward.3} parent=11 // pred_region
          _
        $region44: #{convae_mtce_forward.3} parent=11 // pred_fallthru
          _
        // Predicated region
        $region45: #{convae_mtce_forward.3} parent=11 // pred_check
          %p406 = pneg %p294
        $region46: #{convae_mtce_forward.3} parent=11 // pred_check_branch
          %408 = sbr.rel (%p406) target = $region48
        $region47: #{convae_mtce_forward.3} parent=11 // pred_region
          _
        $region48: #{convae_mtce_forward.3} parent=11 // pred_fallthru
          _
        // Predicated region
        $region49: #{convae_mtce_forward.3} parent=11 // pred_check
          %p409 = pneg %p315
        $region50: #{convae_mtce_forward.3} parent=11 // pred_check_branch
          %411 = sbr.rel (%p409) target = $region52
        $region51: #{convae_mtce_forward.3} parent=11 // pred_region
          _
        $region52: #{convae_mtce_forward.3} parent=11 // pred_fallthru
          _
      $region12: #{convae_mtce_forward.3} parent=5 // pred_fallthru
        _
      %p412 = scmp.lt.s32.totalorder %s27, 2
      // Predicated region
      $region53: #{convae_mtce_forward.3} parent=5 // pred_check
        %p413 = pneg %p412
      $region54: #{convae_mtce_forward.3} parent=5 // pred_check_branch
        %415 = sbr.rel (%p413) target = $region56
      $region55: #{convae_mtce_forward.3} parent=5 // pred_region
        // Predicated region
        $region57: #{convae_mtce_forward.3} parent=55 // pred_check
          %p416 = pneg %p47
        $region58: #{convae_mtce_forward.3} parent=55 // pred_check_branch
          %418 = sbr.rel (%p416) target = $region60
        $region59: #{convae_mtce_forward.3} parent=55 // pred_region
          %p419 = scmp.lt.s32.totalorder %s27, 1
          %s420 = scalar_select %p419, %s27, 1
          %s421 = smul.addr %s420, 2
          %s422 = smul.addr %s421, 8
          %s423 = scalar_lea.vmem %s0, %s422
        $region60: #{convae_mtce_forward.3} parent=55 // pred_fallthru
          _
        // Predicated region
        $region61: #{convae_mtce_forward.3} parent=55 // pred_check
          %p424 = pneg %p73
        $region62: #{convae_mtce_forward.3} parent=55 // pred_check_branch
          %426 = sbr.rel (%p424) target = $region64
        $region63: #{convae_mtce_forward.3} parent=55 // pred_region
          %p427 = scmp.lt.s32.totalorder %s27, 1
          %s428 = scalar_select %p427, %s27, 1
          %s429 = smul.addr %s428, 2
          %s430 = smul.addr %s429, 8
          %s431 = scalar_lea.vmem %s1, %s430
        $region64: #{convae_mtce_forward.3} parent=55 // pred_fallthru
          _
        // Predicated region
        $region65: #{convae_mtce_forward.3} parent=55 // pred_check
          %p432 = pneg %p99
        $region66: #{convae_mtce_forward.3} parent=55 // pred_check_branch
          %434 = sbr.rel (%p432) target = $region68
        $region67: #{convae_mtce_forward.3} parent=55 // pred_region
          %p435 = scmp.lt.s32.totalorder %s27, 1
          %s436 = scalar_select %p435, %s27, 1
          %s437 = smul.addr %s436, 2
          %s438 = smul.addr %s437, 8
          %s439 = scalar_lea.vmem %s2, %s438
        $region68: #{convae_mtce_forward.3} parent=55 // pred_fallthru
          _
      $region56: #{convae_mtce_forward.3} parent=5 // pred_fallthru
        _
      %p440 = scmp.le.s32.totalorder 1, %s27
      %p441 = scmp.lt.s32.totalorder %s27, 3
      %p442 = pnand %p440, %p441
      %p443 = pneg %p442
      // Predicated region
      $region69: #{convae_mtce_forward.3} parent=5 // pred_check
        _
      $region70: #{convae_mtce_forward.3} parent=5 // pred_check_branch
        %445 = sbr.rel (%p442) target = $region72
      $region71: #{convae_mtce_forward.3} parent=5 // pred_region
        %s446 = ssub.s32 %s27, 1
        %p447 = scmp.lt.s32.totalorder %s32, 1
        %s448 = scalar_select %p447, %s32, 1
        %s449 = smul.addr %s448, 2
        %s450 = smul.addr %s449, 8
        %s451 = scalar_lea.vmem %s0, %s450
        %p452 = pneg %p53
        %p453 = pneg %p50
        %p454 = scmp.lt.s32.totalorder %s32, 1
        %s455 = scalar_select %p454, %s32, 1
        %s456 = smul.addr %s455, 2
        %s457 = smul.addr %s456, 8
        %s458 = scalar_lea.vmem %s1, %s457
        %p459 = pneg %p79
        %p460 = pneg %p76
        %p461 = scmp.lt.s32.totalorder %s32, 1
        %s462 = scalar_select %p461, %s32, 1
        %s463 = smul.addr %s462, 2
        %s464 = smul.addr %s463, 8
        %s465 = scalar_lea.vmem %s2, %s464
        %p466 = pneg %p105
        %p467 = pneg %p102
        %p468 = pneg %p126
        %p469 = pneg %p123
        %p470 = pneg %p147
        %p471 = pneg %p144
        %p472 = pneg %p168
        %p473 = pneg %p165
        %p474 = pneg %p189
        %p475 = pneg %p186
        %p476 = pneg %p210
        %p477 = pneg %p207
        %p478 = pneg %p231
        %p479 = pneg %p228
        %p480 = pneg %p252
        %p481 = pneg %p249
        %p482 = pneg %p273
        %p483 = pneg %p270
        %p484 = pneg %p294
        %p485 = pneg %p291
        %p486 = pneg %p315
        %p487 = pneg %p312
        %p488 = pneg %p341
        %p489 = pneg %p338
        %s490 = sand.u32 %s328, 1
        %s491 = scalar_lea.sflag [#allocation9], %s490
        %s492 = sand.u32 %s328, 1
        %s493 = smul.addr %s492, 8
        %s494 = scalar_lea.vmem [#allocation8], %s493
        %p495 = pneg %p367
        %p496 = pneg %p364
        %s497 = sand.u32 %s354, 1
        %s498 = scalar_lea.sflag [#allocation11], %s497
        %s499 = sand.u32 %s354, 1
        %s500 = smul.addr %s499, 8
        %s501 = scalar_lea.vmem [#allocation10], %s500
        %p502 = scmp.lt.s32.totalorder %s32, 1
        %s503 = scalar_select %p502, %s32, 1
        %s504 = smul.addr %s503, 2
        %s505 = smul.addr %s504, 8
        %s506 = scalar_lea.vmem %s0, %s505
        %p507 = scmp.lt.s32.totalorder %s32, 1
        %s508 = scalar_select %p507, %s32, 1
        %s509 = smul.addr %s508, 2
        %s510 = smul.addr %s509, 8
        %s511 = scalar_lea.vmem %s1, %s510
        %p512 = scmp.lt.s32.totalorder %s32, 1
        %s513 = scalar_select %p512, %s32, 1
        %s514 = smul.addr %s513, 2
        %s515 = smul.addr %s514, 8
        %s516 = scalar_lea.vmem %s2, %s515
        %v517 = vlaneseq
        %v518 = vshrl.u32 %v517, 7
        %v519 = vlaneseq
        %v520 = vand.u32 %v519, 127
        %v521 = vmul.u32 %v518, 2
        %vm522 = vcmp.eq.s32.totalorder %v520, %v521
        %v523 = vsel %vm522, 1, 0
        %v524 = vcvt.s32.f32 %v523
        %v525 = vadd.s32 %v521, 1
        %vm526 = vcmp.eq.s32.totalorder %v520, %v525
        %v527 = vsel %vm526, 1, 0
        %v528 = vcvt.s32.f32 %v527
        %v529 = vld [vmem:[%s511] sm:$0xff]
        %v530 = vld [vmem:[%s511 + $0x8] sm:$0xff]
        %v531 = vld [vmem:[%s516] sm:$0xff]
        %v532 = vld [vmem:[%s516 + $0x8] sm:$0xff]
        %535 = vrot.lane.b32.xlu0 %v529, 120
        %v536 = vpop.permute.xlu0 %535
        %537 = vrot.lane.b32.xlu0 %v530, 120
        %v538 = vpop.permute.xlu0 %537
        %541 = vxpose.xlu0.b32.start [1/16] %v536, 128
        %542 = vxpose.xlu0.b32.cont [2/16] %v538, 128
        %543 = vxpose.xlu0.b32.cont [3/16] 0.0, 128
        %544 = vxpose.xlu0.b32.cont [4/16] 0.0, 128
        %545 = vxpose.xlu0.b32.cont [5/16] 0.0, 128
        %546 = vxpose.xlu0.b32.cont [6/16] 0.0, 128
        %547 = vxpose.xlu0.b32.cont [7/16] 0.0, 128
        %548 = vxpose.xlu0.b32.cont [8/16] 0.0, 128
        %549 = vxpose.xlu0.b32.cont [9/16] 0.0, 128
        %550 = vxpose.xlu0.b32.cont [10/16] 0.0, 128
        %551 = vxpose.xlu0.b32.cont [11/16] 0.0, 128
        %552 = vxpose.xlu0.b32.cont [12/16] 0.0, 128
        %553 = vxpose.xlu0.b32.cont [13/16] 0.0, 128
        %554 = vxpose.xlu0.b32.cont [14/16] 0.0, 128
        %555 = vxpose.xlu0.b32.cont [15/16] 0.0, 128
        %556 = vxpose.xlu0.b32.end [16/16] 0.0, 128
        %v557 = vpop.trf.xlu0
        %v558 = vpop.trf.xlu0
        %v559 = vpop.trf.xlu0
        %v560 = vpop.trf.xlu0
        %v561 = vpop.trf.xlu0
        %v562 = vpop.trf.xlu0
        %v563 = vpop.trf.xlu0
        %v564 = vpop.trf.xlu0
        %v565 = vpop.trf.xlu0
        %v566 = vpop.trf.xlu0
        %v567 = vpop.trf.xlu0
        %v568 = vpop.trf.xlu0
        %v569 = vpop.trf.xlu0
        %v570 = vpop.trf.xlu0
        %v571 = vpop.trf.xlu0
        %v572 = vpop.trf.xlu0
        %vm573 = vcmask 130048
        %v575 = vsel %vm573, %v557, 0
        %577 = vmatprep.subr.mxu0 0.0
        %578 = vmatpush1.msra.mxu0 0.0
        %579 = vmatprep.subr.mxu0 0.0
        %580 = vmatpush1.msra.mxu0 0.0
        %581 = vmatprep.subr.mxu0 0.0
        %582 = vmatpush1.msra.mxu0 0.0
        %583 = vmatprep.subr.mxu0 0.0
        %584 = vmatpush1.msra.mxu0 0.0
        %585 = vmatprep.subr.mxu0 0.0
        %586 = vmatpush1.msra.mxu0 0.0
        %587 = vmatprep.subr.mxu0 0.0
        %588 = vmatpush1.msra.mxu0 0.0
        %589 = vmatprep.subr.mxu0 0.0
        %590 = vmatpush1.msra.mxu0 0.0
        %591 = vmatprep.subr.mxu0 0.0
        %592 = vmatpush1.msra.mxu0 0.0
        %593 = vmatprep.subr.mxu0 0.0
        %594 = vmatpush1.msra.mxu0 0.0
        %595 = vmatprep.subr.mxu0 0.0
        %596 = vmatpush1.msra.mxu0 0.0
        %597 = vmatprep.subr.mxu0 0.0
        %598 = vmatpush1.msra.mxu0 0.0
        %599 = vmatprep.subr.mxu0 0.0
        %600 = vmatpush1.msra.mxu0 0.0
        %601 = vmatprep.subr.mxu0 0.0
        %602 = vmatpush1.msra.mxu0 0.0
        %603 = vmatprep.subr.mxu0 0.0
        %604 = vmatpush1.msra.mxu0 0.0
        %605 = vmatprep.subr.mxu0 0.0
        %606 = vmatpush1.msra.mxu0 %v532
        %607 = vmatprep.subr.mxu0 0.0
        %608 = vmatpush1.msra.mxu0 %v531
        %609 = vmatprep.subr.mxu0 0.0
        %610 = vmatpush2.msra.mxu0 0.0
        %611 = vmatprep.subr.mxu0 0.0
        %612 = vmatpush2.msra.mxu0 0.0
        %613 = vmatprep.subr.mxu0 0.0
        %614 = vmatpush2.msra.mxu0 0.0
        %615 = vmatprep.subr.mxu0 0.0
        %616 = vmatpush2.msra.mxu0 0.0
        %617 = vmatprep.subr.mxu0 0.0
        %618 = vmatpush2.msra.mxu0 0.0
        %619 = vmatprep.subr.mxu0 0.0
        %620 = vmatpush2.msra.mxu0 0.0
        %621 = vmatprep.subr.mxu0 0.0
        %622 = vmatpush2.msra.mxu0 0.0
        %623 = vmatprep.subr.mxu0 0.0
        %624 = vmatpush2.msra.mxu0 0.0
        %625 = vmatprep.subr.mxu0 0.0
        %626 = vmatpush2.msra.mxu0 0.0
        %627 = vmatprep.subr.mxu0 0.0
        %628 = vmatpush2.msra.mxu0 0.0
        %629 = vmatprep.subr.mxu0 0.0
        %630 = vmatpush2.msra.mxu0 0.0
        %631 = vmatprep.subr.mxu0 0.0
        %632 = vmatpush2.msra.mxu0 0.0
        %633 = vmatprep.subr.mxu0 0.0
        %634 = vmatpush2.msra.mxu0 0.0
        %635 = vmatprep.subr.mxu0 0.0
        %636 = vmatpush2.msra.mxu0 0.0
        %637 = vmatprep.subr.mxu0 0.0
        %638 = vmatpush2.msra.mxu0 0.0
        %639 = vmatprep.subr.mxu0 0.0
        %640 = vmatpush2.msra.mxu0 0.0
        %641 = vmatprep.mubr.f32.mxu0 0.0
        %642 = vmatmul.mubr.f32.gmra.mxu0 %v575
        %v643 = vpop.f32.mrf.mxu0
        %v644 = vadd.f32 0.0, %v643
        %v645 = vpop.f32.mrf.mxu0
        %646 = vdwg.mxu0
        %vm647 = vcmask 44032
        %v648 = vsel %vm647, %v644, -inf
        %649 = vmax.xlane.f32.xlu0 %v648
        %v650 = vpop.xlane.xlu0 %649
        %v651 = vsub.f32 %v644, %v650
        %v652 = vmul.f32 %v651, 1.442695
        %v653 = vpow.pop %v652
        %v654 = vsel %vm647, %v653, 0.0
        %655 = vadd.xlane.f32.xlu0 %v654
        %v656 = vpop.xlane.xlu0 %655
        %v657 = vrcp.pop %v656
        %v658 = vmul.f32 %v653, %v657
        %v659 = vsel %vm647, %v658, 0.0
        %v660 = vrot.slane %v659, 4
        %v661 = vadd.f32 %v659, %v660
        %v662 = vrot.slane %v661, 2
        %v663 = vadd.f32 %v661, %v662
        %v664 = vrot.slane %v663, 1
        %v665 = vadd.f32 %v663, %v664
        %v666 = vadd.f32 %v665, 1e-06
        %v667 = vrcp.pop %v666
        %v668 = vmul.f32 %v658, %v667
        %vm669 = vcmask 48128
        %v671 = vsel %vm669, %v531, 0
        %v674 = vsel %vm669, %v532, 0
        %v677 = vsel %vm669, %v668, 0
        %679 = vmatprep.subr.mxu0 0.0
        %680 = vmatpush1.xpose.msra.mxu0 0.0
        %681 = vmatprep.subr.mxu0 0.0
        %682 = vmatpush1.xpose.msra.mxu0 0.0
        %683 = vmatprep.subr.mxu0 0.0
        %684 = vmatpush1.xpose.msra.mxu0 0.0
        %685 = vmatprep.subr.mxu0 0.0
        %686 = vmatpush1.xpose.msra.mxu0 0.0
        %687 = vmatprep.subr.mxu0 0.0
        %688 = vmatpush1.xpose.msra.mxu0 0.0
        %689 = vmatprep.subr.mxu0 0.0
        %690 = vmatpush1.xpose.msra.mxu0 0.0
        %691 = vmatprep.subr.mxu0 0.0
        %692 = vmatpush1.xpose.msra.mxu0 0.0
        %693 = vmatprep.subr.mxu0 0.0
        %694 = vmatpush1.xpose.msra.mxu0 0.0
        %695 = vmatprep.subr.mxu0 0.0
        %696 = vmatpush1.xpose.msra.mxu0 0.0
        %697 = vmatprep.subr.mxu0 0.0
        %698 = vmatpush1.xpose.msra.mxu0 0.0
        %699 = vmatprep.subr.mxu0 0.0
        %700 = vmatpush1.xpose.msra.mxu0 0.0
        %701 = vmatprep.subr.mxu0 0.0
        %702 = vmatpush1.xpose.msra.mxu0 0.0
        %703 = vmatprep.subr.mxu0 0.0
        %704 = vmatpush1.xpose.msra.mxu0 0.0
        %705 = vmatprep.subr.mxu0 0.0
        %706 = vmatpush1.xpose.msra.mxu0 0.0
        %707 = vmatprep.subr.mxu0 0.0
        %708 = vmatpush1.xpose.msra.mxu0 0.0
        %709 = vmatprep.subr.mxu0 0.0
        %710 = vmatpush1.xpose.msra.mxu0 %v677
        %711 = vmatprep.subr.mxu0 0.0
        %712 = vmatpush2.xpose.msra.mxu0 0.0
        %713 = vmatprep.subr.mxu0 0.0
        %714 = vmatpush2.xpose.msra.mxu0 0.0
        %715 = vmatprep.subr.mxu0 0.0
        %716 = vmatpush2.xpose.msra.mxu0 0.0
        %717 = vmatprep.subr.mxu0 0.0
        %718 = vmatpush2.xpose.msra.mxu0 0.0
        %719 = vmatprep.subr.mxu0 0.0
        %720 = vmatpush2.xpose.msra.mxu0 0.0
        %721 = vmatprep.subr.mxu0 0.0
        %722 = vmatpush2.xpose.msra.mxu0 0.0
        %723 = vmatprep.subr.mxu0 0.0
        %724 = vmatpush2.xpose.msra.mxu0 0.0
        %725 = vmatprep.subr.mxu0 0.0
        %726 = vmatpush2.xpose.msra.mxu0 0.0
        %727 = vmatprep.subr.mxu0 0.0
        %728 = vmatpush2.xpose.msra.mxu0 0.0
        %729 = vmatprep.subr.mxu0 0.0
        %730 = vmatpush2.xpose.msra.mxu0 0.0
        %731 = vmatprep.subr.mxu0 0.0
        %732 = vmatpush2.xpose.msra.mxu0 0.0
        %733 = vmatprep.subr.mxu0 0.0
        %734 = vmatpush2.xpose.msra.mxu0 0.0
        %735 = vmatprep.subr.mxu0 0.0
        %736 = vmatpush2.xpose.msra.mxu0 0.0
        %737 = vmatprep.subr.mxu0 0.0
        %738 = vmatpush2.xpose.msra.mxu0 0.0
        %739 = vmatprep.subr.mxu0 0.0
        %740 = vmatpush2.xpose.msra.mxu0 0.0
        %741 = vmatprep.subr.mxu0 0.0
        %742 = vmatpush2.xpose.msra.mxu0 0.0
        %743 = vmatprep.mubr.f32.mxu0 0.0
        %744 = vmatmul.mubr.f32.gmra.mxu0 %v671
        %v745 = vpop.f32.mrf.mxu0
        %v746 = vadd.f32 0.0, %v745
        %v747 = vpop.f32.mrf.mxu0
        %748 = vmatprep.mubr.f32.mxu0 0.0
        %749 = vmatmul.mubr.f32.gmra.mxu0 %v674
        %v750 = vpop.f32.mrf.mxu0
        %v751 = vadd.f32 0.0, %v750
        %v752 = vpop.f32.mrf.mxu0
        %753 = vdwg.mxu0
        %v754 = vld [vmem:[%s3] sm:$0xff]
        %v755 = vld [vmem:[%s3 + $0x8] sm:$0xff]
        %v756 = vld [vmem:[%s4] sm:$0xff]
        %v757 = vld [vmem:[%s4 + $0x8] sm:$0xff]
        %759 = vset.pattern.permute.xlu0 0
        %760 = vperm.xlu0 %759, %v756
        %v761 = vpop.permute.xlu0 %760
        %764 = vset.pattern.permute.xlu0 0
        %765 = vperm.xlu0 %764, %v757
        %v766 = vpop.permute.xlu0 %765
        %v769 = vsel %vm573, %v754, 0
        %v772 = vsel %vm573, %v755, 0
        %774 = vmatprep.subr.mxu0 0.0
        %775 = vmatpush1.msra.mxu0 0.0
        %776 = vmatprep.subr.mxu0 0.0
        %777 = vmatpush1.msra.mxu0 0.0
        %778 = vmatprep.subr.mxu0 0.0
        %779 = vmatpush1.msra.mxu0 0.0
        %780 = vmatprep.subr.mxu0 0.0
        %781 = vmatpush1.msra.mxu0 0.0
        %782 = vmatprep.subr.mxu0 0.0
        %783 = vmatpush1.msra.mxu0 0.0
        %784 = vmatprep.subr.mxu0 0.0
        %785 = vmatpush1.msra.mxu0 0.0
        %786 = vmatprep.subr.mxu0 0.0
        %787 = vmatpush1.msra.mxu0 0.0
        %788 = vmatprep.subr.mxu0 0.0
        %789 = vmatpush1.msra.mxu0 0.0
        %790 = vmatprep.subr.mxu0 0.0
        %791 = vmatpush1.msra.mxu0 0.0
        %792 = vmatprep.subr.mxu0 0.0
        %793 = vmatpush1.msra.mxu0 0.0
        %794 = vmatprep.subr.mxu0 0.0
        %795 = vmatpush1.msra.mxu0 0.0
        %796 = vmatprep.subr.mxu0 0.0
        %797 = vmatpush1.msra.mxu0 0.0
        %798 = vmatprep.subr.mxu0 0.0
        %799 = vmatpush1.msra.mxu0 0.0
        %800 = vmatprep.subr.mxu0 0.0
        %801 = vmatpush1.msra.mxu0 0.0
        %802 = vmatprep.subr.mxu0 0.0
        %803 = vmatpush1.msra.mxu0 %v751
        %804 = vmatprep.subr.mxu0 0.0
        %805 = vmatpush1.msra.mxu0 %v746
        %806 = vmatprep.subr.mxu0 0.0
        %807 = vmatpush2.msra.mxu0 0.0
        %808 = vmatprep.subr.mxu0 0.0
        %809 = vmatpush2.msra.mxu0 0.0
        %810 = vmatprep.subr.mxu0 0.0
        %811 = vmatpush2.msra.mxu0 0.0
        %812 = vmatprep.subr.mxu0 0.0
        %813 = vmatpush2.msra.mxu0 0.0
        %814 = vmatprep.subr.mxu0 0.0
        %815 = vmatpush2.msra.mxu0 0.0
        %816 = vmatprep.subr.mxu0 0.0
        %817 = vmatpush2.msra.mxu0 0.0
        %818 = vmatprep.subr.mxu0 0.0
        %819 = vmatpush2.msra.mxu0 0.0
        %820 = vmatprep.subr.mxu0 0.0
        %821 = vmatpush2.msra.mxu0 0.0
        %822 = vmatprep.subr.mxu0 0.0
        %823 = vmatpush2.msra.mxu0 0.0
        %824 = vmatprep.subr.mxu0 0.0
        %825 = vmatpush2.msra.mxu0 0.0
        %826 = vmatprep.subr.mxu0 0.0
        %827 = vmatpush2.msra.mxu0 0.0
        %828 = vmatprep.subr.mxu0 0.0
        %829 = vmatpush2.msra.mxu0 0.0
        %830 = vmatprep.subr.mxu0 0.0
        %831 = vmatpush2.msra.mxu0 0.0
        %832 = vmatprep.subr.mxu0 0.0
        %833 = vmatpush2.msra.mxu0 0.0
        %834 = vmatprep.subr.mxu0 0.0
        %835 = vmatpush2.msra.mxu0 0.0
        %836 = vmatprep.subr.mxu0 0.0
        %837 = vmatpush2.msra.mxu0 0.0
        %838 = vmatprep.mubr.f32.mxu0 0.0
        %839 = vmatmul.mubr.f32.gmra.mxu0 %v769
        %v840 = vpop.f32.mrf.mxu0
        %v841 = vadd.f32 %v761, %v840
        %v842 = vpop.f32.mrf.mxu0
        %843 = vmatprep.mubr.f32.mxu0 0.0
        %844 = vmatmul.mubr.f32.gmra.mxu0 %v772
        %v845 = vpop.f32.mrf.mxu0
        %v846 = vadd.f32 %v766, %v845
        %v847 = vpop.f32.mrf.mxu0
        %848 = vdwg.mxu0
        %v849 = vmax.f32 %v841, 0.0
        %v850 = vmax.f32 %v846, 0.0
        %v851 = vadd.f32 %v849, %v536
        %v852 = vadd.f32 %v850, %v538
        %v853 = vld [vmem:[%s506] sm:$0xff]
        %v854 = vld [vmem:[%s506 + $0x8] sm:$0xff]
        %vm855 = vcmask 56320
        %856 = vst.msk [vmem:[#allocation2] sm:$0xff] %vm855, 0.0
        %857 = vst.msk [vmem:[#allocation2 + $0x8] sm:$0xff] %vm855, 0.0
        %860 = vrot.lane.b32.xlu0 %v853, 1
        %v861 = vpop.permute.xlu0 %860
        %862 = vrot.lane.b32.xlu0 %v854, 1
        %v863 = vpop.permute.xlu0 %862
        %vm866 = vcmask 39944
        %867 = vst.msk [vmem:[#allocation2] sm:$0xff] %vm866, %v861
        %868 = vst.msk [vmem:[#allocation2 + $0x8] sm:$0xff] %vm866, %v863
        %v869 = vld [vmem:[#allocation2] sm:$0xff]
        %v870 = vld [vmem:[#allocation2 + $0x8] sm:$0xff]
        %vm871 = vcmask 31744
        %872 = vst.msk [vmem:[#allocation3] sm:$0xff] %vm871, %v869
        %873 = vst.msk [vmem:[#allocation3 + $0x8] sm:$0xff] %vm871, %v870
        %v874 = vld [vmem:[#allocation2] sm:$0xff]
        %v875 = vld [vmem:[#allocation2 + $0x8] sm:$0xff]
        %878 = vrot.lane.b32.xlu0 %v874, 127
        %v879 = vpop.permute.xlu0 %878
        %880 = vrot.lane.b32.xlu0 %v875, 127
        %v881 = vpop.permute.xlu0 %880
        %884 = vst.msk [vmem:[#allocation3 + $0x10] sm:$0xff] %vm871, %v879
        %885 = vst.msk [vmem:[#allocation3 + $0x18] sm:$0xff] %vm871, %v881
        %v886 = vld [vmem:[#allocation2] sm:$0xff]
        %v887 = vld [vmem:[#allocation2 + $0x8] sm:$0xff]
        %890 = vrot.lane.b32.xlu0 %v886, 126
        %v891 = vpop.permute.xlu0 %890
        %892 = vrot.lane.b32.xlu0 %v887, 126
        %v893 = vpop.permute.xlu0 %892
        %896 = vst.msk [vmem:[#allocation3 + $0x20] sm:$0xff] %vm871, %v891
        %897 = vst.msk [vmem:[#allocation3 + $0x28] sm:$0xff] %vm871, %v893
        %v898 = vld [vmem:[#allocation2] sm:$0xff]
        %v899 = vld [vmem:[#allocation2 + $0x8] sm:$0xff]
        %902 = vrot.lane.b32.xlu0 %v898, 125
        %v903 = vpop.permute.xlu0 %902
        %904 = vrot.lane.b32.xlu0 %v899, 125
        %v905 = vpop.permute.xlu0 %904
        %908 = vst.msk [vmem:[#allocation3 + $0x30] sm:$0xff] %vm871, %v903
        %909 = vst.msk [vmem:[#allocation3 + $0x38] sm:$0xff] %vm871, %v905
        %v910 = vld [vmem:[%s5] sm:$0xff]
        %v911 = vld [vmem:[%s5 + $0x8] sm:$0xff]
        %v912 = vld [vmem:[#allocation3] sm:$0xff]
        %v913 = vld [vmem:[#allocation3 + $0x8] sm:$0xff]
        %v914 = vld [vmem:[#allocation3 + $0x10] sm:$0xff]
        %v915 = vld [vmem:[#allocation3 + $0x18] sm:$0xff]
        %v916 = vld [vmem:[#allocation3 + $0x20] sm:$0xff]
        %v917 = vld [vmem:[#allocation3 + $0x28] sm:$0xff]
        %v918 = vld [vmem:[%s6] sm:$0xff]
        %v919 = vld [vmem:[%s6 + $0x8] sm:$0xff]
        %v920 = vld [vmem:[#allocation3 + $0x30] sm:$0xff]
        %v921 = vld [vmem:[#allocation3 + $0x38] sm:$0xff]
        %v922 = vld [vmem:[%s7] sm:$0xff]
        %v923 = vld [vmem:[%s7 + $0x8] sm:$0xff]
        %925 = vset.pattern.permute.xlu0 0
        %926 = vperm.xlu0 %925, %v922
        %v927 = vpop.permute.xlu0 %926
        %930 = vset.pattern.permute.xlu0 0
        %931 = vperm.xlu0 %930, %v923
        %v932 = vpop.permute.xlu0 %931
        %vm934 = vcmask 392192
        %v936 = vsel %vm934, %v910, 0
        %v939 = vsel %vm934, %v911, 0
        %941 = vmatprep.subr.mxu0 0.0
        %942 = vmatpush1.msra.mxu0 0.0
        %943 = vmatprep.subr.mxu0 0.0
        %944 = vmatpush1.msra.mxu0 0.0
        %945 = vmatprep.subr.mxu0 0.0
        %946 = vmatpush1.msra.mxu0 0.0
        %947 = vmatprep.subr.mxu0 0.0
        %948 = vmatpush1.msra.mxu0 0.0
        %949 = vmatprep.subr.mxu0 0.0
        %950 = vmatpush1.msra.mxu0 0.0
        %951 = vmatprep.subr.mxu0 0.0
        %952 = vmatpush1.msra.mxu0 0.0
        %953 = vmatprep.subr.mxu0 0.0
        %954 = vmatpush1.msra.mxu0 0.0
        %955 = vmatprep.subr.mxu0 0.0
        %956 = vmatpush1.msra.mxu0 0.0
        %957 = vmatprep.subr.mxu0 0.0
        %958 = vmatpush1.msra.mxu0 0.0
        %959 = vmatprep.subr.mxu0 0.0
        %960 = vmatpush1.msra.mxu0 0.0
        %961 = vmatprep.subr.mxu0 0.0
        %962 = vmatpush1.msra.mxu0 %v917
        %963 = vmatprep.subr.mxu0 0.0
        %964 = vmatpush1.msra.mxu0 %v916
        %965 = vmatprep.subr.mxu0 0.0
        %966 = vmatpush1.msra.mxu0 %v915
        %967 = vmatprep.subr.mxu0 0.0
        %968 = vmatpush1.msra.mxu0 %v914
        %969 = vmatprep.subr.mxu0 0.0
        %970 = vmatpush1.msra.mxu0 %v913
        %971 = vmatprep.subr.mxu0 0.0
        %972 = vmatpush1.msra.mxu0 %v912
        %973 = vmatprep.subr.mxu0 0.0
        %974 = vmatpush2.msra.mxu0 0.0
        %975 = vmatprep.subr.mxu0 0.0
        %976 = vmatpush2.msra.mxu0 0.0
        %977 = vmatprep.subr.mxu0 0.0
        %978 = vmatpush2.msra.mxu0 0.0
        %979 = vmatprep.subr.mxu0 0.0
        %980 = vmatpush2.msra.mxu0 0.0
        %981 = vmatprep.subr.mxu0 0.0
        %982 = vmatpush2.msra.mxu0 0.0
        %983 = vmatprep.subr.mxu0 0.0
        %984 = vmatpush2.msra.mxu0 0.0
        %985 = vmatprep.subr.mxu0 0.0
        %986 = vmatpush2.msra.mxu0 0.0
        %987 = vmatprep.subr.mxu0 0.0
        %988 = vmatpush2.msra.mxu0 0.0
        %989 = vmatprep.subr.mxu0 0.0
        %990 = vmatpush2.msra.mxu0 0.0
        %991 = vmatprep.subr.mxu0 0.0
        %992 = vmatpush2.msra.mxu0 0.0
        %993 = vmatprep.subr.mxu0 0.0
        %994 = vmatpush2.msra.mxu0 0.0
        %995 = vmatprep.subr.mxu0 0.0
        %996 = vmatpush2.msra.mxu0 0.0
        %997 = vmatprep.subr.mxu0 0.0
        %998 = vmatpush2.msra.mxu0 0.0
        %999 = vmatprep.subr.mxu0 0.0
        %1000 = vmatpush2.msra.mxu0 0.0
        %1001 = vmatprep.subr.mxu0 0.0
        %1002 = vmatpush2.msra.mxu0 0.0
        %1003 = vmatprep.subr.mxu0 0.0
        %1004 = vmatpush2.msra.mxu0 0.0
        %1005 = vmatprep.mubr.f32.mxu0 0.0
        %1006 = vmatmul.mubr.f32.gmra.mxu0 %v936
        %v1007 = vpop.f32.mrf.mxu0
        %v1008 = vadd.f32 %v927, %v1007
        %v1009 = vpop.f32.mrf.mxu0
        %1010 = vmatprep.mubr.f32.mxu0 0.0
        %1011 = vmatmul.mubr.f32.gmra.mxu0 %v939
        %v1012 = vpop.f32.mrf.mxu0
        %v1013 = vadd.f32 %v932, %v1012
        %v1014 = vpop.f32.mrf.mxu0
        %1015 = vdwg.mxu0
        %v1016 = vmax.f32 %v1008, 0.0
        %v1017 = vmax.f32 %v1013, 0.0
        %vm1018 = vcmask 523264
        %v1020 = vsel %vm1018, %v918, 0
        %v1023 = vsel %vm1018, %v919, 0
        %1025 = vmatprep.subr.mxu0 0.0
        %1026 = vmatpush1.msra.mxu0 0.0
        %1027 = vmatprep.subr.mxu0 0.0
        %1028 = vmatpush1.msra.mxu0 0.0
        %1029 = vmatprep.subr.mxu0 0.0
        %1030 = vmatpush1.msra.mxu0 0.0
        %1031 = vmatprep.subr.mxu0 0.0
        %1032 = vmatpush1.msra.mxu0 0.0
        %1033 = vmatprep.subr.mxu0 0.0
        %1034 = vmatpush1.msra.mxu0 0.0
        %1035 = vmatprep.subr.mxu0 0.0
        %1036 = vmatpush1.msra.mxu0 0.0
        %1037 = vmatprep.subr.mxu0 0.0
        %1038 = vmatpush1.msra.mxu0 0.0
        %1039 = vmatprep.subr.mxu0 0.0
        %1040 = vmatpush1.msra.mxu0 0.0
        %1041 = vmatprep.subr.mxu0 0.0
        %1042 = vmatpush1.msra.mxu0 %v921
        %1043 = vmatprep.subr.mxu0 0.0
        %1044 = vmatpush1.msra.mxu0 %v920
        %1045 = vmatprep.subr.mxu0 0.0
        %1046 = vmatpush1.msra.mxu0 %v917
        %1047 = vmatprep.subr.mxu0 0.0
        %1048 = vmatpush1.msra.mxu0 %v916
        %1049 = vmatprep.subr.mxu0 0.0
        %1050 = vmatpush1.msra.mxu0 %v915
        %1051 = vmatprep.subr.mxu0 0.0
        %1052 = vmatpush1.msra.mxu0 %v914
        %1053 = vmatprep.subr.mxu0 0.0
        %1054 = vmatpush1.msra.mxu0 %v913
        %1055 = vmatprep.subr.mxu0 0.0
        %1056 = vmatpush1.msra.mxu0 %v912
        %1057 = vmatprep.subr.mxu0 0.0
        %1058 = vmatpush2.msra.mxu0 0.0
        %1059 = vmatprep.subr.mxu0 0.0
        %1060 = vmatpush2.msra.mxu0 0.0
        %1061 = vmatprep.subr.mxu0 0.0
        %1062 = vmatpush2.msra.mxu0 0.0
        %1063 = vmatprep.subr.mxu0 0.0
        %1064 = vmatpush2.msra.mxu0 0.0
        %1065 = vmatprep.subr.mxu0 0.0
        %1066 = vmatpush2.msra.mxu0 0.0
        %1067 = vmatprep.subr.mxu0 0.0
        %1068 = vmatpush2.msra.mxu0 0.0
        %1069 = vmatprep.subr.mxu0 0.0
        %1070 = vmatpush2.msra.mxu0 0.0
        %1071 = vmatprep.subr.mxu0 0.0
        %1072 = vmatpush2.msra.mxu0 0.0
        %1073 = vmatprep.subr.mxu0 0.0
        %1074 = vmatpush2.msra.mxu0 0.0
        %1075 = vmatprep.subr.mxu0 0.0
        %1076 = vmatpush2.msra.mxu0 0.0
        %1077 = vmatprep.subr.mxu0 0.0
        %1078 = vmatpush2.msra.mxu0 0.0
        %1079 = vmatprep.subr.mxu0 0.0
        %1080 = vmatpush2.msra.mxu0 0.0
        %1081 = vmatprep.subr.mxu0 0.0
        %1082 = vmatpush2.msra.mxu0 0.0
        %1083 = vmatprep.subr.mxu0 0.0
        %1084 = vmatpush2.msra.mxu0 0.0
        %1085 = vmatprep.subr.mxu0 0.0
        %1086 = vmatpush2.msra.mxu0 0.0
        %1087 = vmatprep.subr.mxu0 0.0
        %1088 = vmatpush2.msra.mxu0 0.0
        %1089 = vmatprep.mubr.f32.mxu0 0.0
        %1090 = vmatmul.mubr.f32.gmra.mxu0 %v1020
        %v1091 = vpop.f32.mrf.mxu0
        %v1092 = vadd.f32 %v927, %v1091
        %v1093 = vpop.f32.mrf.mxu0
        %1094 = vmatprep.mubr.f32.mxu0 0.0
        %1095 = vmatmul.mubr.f32.gmra.mxu0 %v1023
        %v1096 = vpop.f32.mrf.mxu0
        %v1097 = vadd.f32 %v932, %v1096
        %v1098 = vpop.f32.mrf.mxu0
        %1099 = vdwg.mxu0
        %v1100 = vmax.f32 %v1092, 0.0
        %v1101 = vmax.f32 %v1097, 0.0
        %v1103 = vsel %vm871, %v1100, 0
        %v1106 = vsel %vm871, %v1101, 0
        %vm1108 = vcmask 1043456
        %v1110 = vsel %vm1108, %v528, 0
        %1112 = vmatprep.subr.mxu0 0.0
        %1113 = vmatpush1.msra.mxu0 0.0
        %1114 = vmatprep.subr.mxu0 0.0
        %1115 = vmatpush1.msra.mxu0 0.0
        %1116 = vmatprep.subr.mxu0 0.0
        %1117 = vmatpush1.msra.mxu0 0.0
        %1118 = vmatprep.subr.mxu0 0.0
        %1119 = vmatpush1.msra.mxu0 0.0
        %1120 = vmatprep.subr.mxu0 0.0
        %1121 = vmatpush1.msra.mxu0 0.0
        %1122 = vmatprep.subr.mxu0 0.0
        %1123 = vmatpush1.msra.mxu0 0.0
        %1124 = vmatprep.subr.mxu0 0.0
        %1125 = vmatpush1.msra.mxu0 0.0
        %1126 = vmatprep.subr.mxu0 0.0
        %1127 = vmatpush1.msra.mxu0 0.0
        %1128 = vmatprep.subr.mxu0 0.0
        %1129 = vmatpush1.msra.mxu0 0.0
        %1130 = vmatprep.subr.mxu0 0.0
        %1131 = vmatpush1.msra.mxu0 0.0
        %1132 = vmatprep.subr.mxu0 0.0
        %1133 = vmatpush1.msra.mxu0 0.0
        %1134 = vmatprep.subr.mxu0 0.0
        %1135 = vmatpush1.msra.mxu0 0.0
        %1136 = vmatprep.subr.mxu0 0.0
        %1137 = vmatpush1.msra.mxu0 0.0
        %1138 = vmatprep.subr.mxu0 0.0
        %1139 = vmatpush1.msra.mxu0 0.0
        %1140 = vmatprep.subr.mxu0 0.0
        %1141 = vmatpush1.msra.mxu0 0.0
        %1142 = vmatprep.subr.mxu0 0.0
        %1143 = vmatpush1.msra.mxu0 %v1110
        %1144 = vmatprep.subr.mxu0 0.0
        %1145 = vmatpush2.msra.mxu0 0.0
        %1146 = vmatprep.subr.mxu0 0.0
        %1147 = vmatpush2.msra.mxu0 0.0
        %1148 = vmatprep.subr.mxu0 0.0
        %1149 = vmatpush2.msra.mxu0 0.0
        %1150 = vmatprep.subr.mxu0 0.0
        %1151 = vmatpush2.msra.mxu0 0.0
        %1152 = vmatprep.subr.mxu0 0.0
        %1153 = vmatpush2.msra.mxu0 0.0
        %1154 = vmatprep.subr.mxu0 0.0
        %1155 = vmatpush2.msra.mxu0 0.0
        %1156 = vmatprep.subr.mxu0 0.0
        %1157 = vmatpush2.msra.mxu0 0.0
        %1158 = vmatprep.subr.mxu0 0.0
        %1159 = vmatpush2.msra.mxu0 0.0
        %1160 = vmatprep.subr.mxu0 0.0
        %1161 = vmatpush2.msra.mxu0 0.0
        %1162 = vmatprep.subr.mxu0 0.0
        %1163 = vmatpush2.msra.mxu0 0.0
        %1164 = vmatprep.subr.mxu0 0.0
        %1165 = vmatpush2.msra.mxu0 0.0
        %1166 = vmatprep.subr.mxu0 0.0
        %1167 = vmatpush2.msra.mxu0 0.0
        %1168 = vmatprep.subr.mxu0 0.0
        %1169 = vmatpush2.msra.mxu0 0.0
        %1170 = vmatprep.subr.mxu0 0.0
        %1171 = vmatpush2.msra.mxu0 0.0
        %1172 = vmatprep.subr.mxu0 0.0
        %1173 = vmatpush2.msra.mxu0 0.0
        %1174 = vmatprep.subr.mxu0 0.0
        %1175 = vmatpush2.msra.mxu0 0.0
        %1176 = vmatprep.mubr.f32.mxu0 0.0
        %1177 = vmatmul.mubr.f32.gmra.mxu0 %v1103
        %v1178 = vpop.f32.mrf.mxu0
        %v1179 = vadd.f32 0.0, %v1178
        %v1180 = vpop.f32.mrf.mxu0
        %1181 = vmatprep.mubr.f32.mxu0 0.0
        %1182 = vmatmul.mubr.f32.gmra.mxu0 %v1106
        %v1183 = vpop.f32.mrf.mxu0
        %v1184 = vadd.f32 0.0, %v1183
        %v1185 = vpop.f32.mrf.mxu0
        %1186 = vdwg.mxu0
        %v1188 = vsel %vm871, %v1016, 0
        %v1191 = vsel %vm871, %v1017, 0
        %v1194 = vsel %vm1108, %v524, 0
        %1196 = vmatprep.subr.mxu0 0.0
        %1197 = vmatpush1.msra.mxu0 0.0
        %1198 = vmatprep.subr.mxu0 0.0
        %1199 = vmatpush1.msra.mxu0 0.0
        %1200 = vmatprep.subr.mxu0 0.0
        %1201 = vmatpush1.msra.mxu0 0.0
        %1202 = vmatprep.subr.mxu0 0.0
        %1203 = vmatpush1.msra.mxu0 0.0
        %1204 = vmatprep.subr.mxu0 0.0
        %1205 = vmatpush1.msra.mxu0 0.0
        %1206 = vmatprep.subr.mxu0 0.0
        %1207 = vmatpush1.msra.mxu0 0.0
        %1208 = vmatprep.subr.mxu0 0.0
        %1209 = vmatpush1.msra.mxu0 0.0
        %1210 = vmatprep.subr.mxu0 0.0
        %1211 = vmatpush1.msra.mxu0 0.0
        %1212 = vmatprep.subr.mxu0 0.0
        %1213 = vmatpush1.msra.mxu0 0.0
        %1214 = vmatprep.subr.mxu0 0.0
        %1215 = vmatpush1.msra.mxu0 0.0
        %1216 = vmatprep.subr.mxu0 0.0
        %1217 = vmatpush1.msra.mxu0 0.0
        %1218 = vmatprep.subr.mxu0 0.0
        %1219 = vmatpush1.msra.mxu0 0.0
        %1220 = vmatprep.subr.mxu0 0.0
        %1221 = vmatpush1.msra.mxu0 0.0
        %1222 = vmatprep.subr.mxu0 0.0
        %1223 = vmatpush1.msra.mxu0 0.0
        %1224 = vmatprep.subr.mxu0 0.0
        %1225 = vmatpush1.msra.mxu0 0.0
        %1226 = vmatprep.subr.mxu0 0.0
        %1227 = vmatpush1.msra.mxu0 %v1194
        %1228 = vmatprep.subr.mxu0 0.0
        %1229 = vmatpush2.msra.mxu0 0.0
        %1230 = vmatprep.subr.mxu0 0.0
        %1231 = vmatpush2.msra.mxu0 0.0
        %1232 = vmatprep.subr.mxu0 0.0
        %1233 = vmatpush2.msra.mxu0 0.0
        %1234 = vmatprep.subr.mxu0 0.0
        %1235 = vmatpush2.msra.mxu0 0.0
        %1236 = vmatprep.subr.mxu0 0.0
        %1237 = vmatpush2.msra.mxu0 0.0
        %1238 = vmatprep.subr.mxu0 0.0
        %1239 = vmatpush2.msra.mxu0 0.0
        %1240 = vmatprep.subr.mxu0 0.0
        %1241 = vmatpush2.msra.mxu0 0.0
        %1242 = vmatprep.subr.mxu0 0.0
        %1243 = vmatpush2.msra.mxu0 0.0
        %1244 = vmatprep.subr.mxu0 0.0
        %1245 = vmatpush2.msra.mxu0 0.0
        %1246 = vmatprep.subr.mxu0 0.0
        %1247 = vmatpush2.msra.mxu0 0.0
        %1248 = vmatprep.subr.mxu0 0.0
        %1249 = vmatpush2.msra.mxu0 0.0
        %1250 = vmatprep.subr.mxu0 0.0
        %1251 = vmatpush2.msra.mxu0 0.0
        %1252 = vmatprep.subr.mxu0 0.0
        %1253 = vmatpush2.msra.mxu0 0.0
        %1254 = vmatprep.subr.mxu0 0.0
        %1255 = vmatpush2.msra.mxu0 0.0
        %1256 = vmatprep.subr.mxu0 0.0
        %1257 = vmatpush2.msra.mxu0 0.0
        %1258 = vmatprep.subr.mxu0 0.0
        %1259 = vmatpush2.msra.mxu0 0.0
        %1260 = vmatprep.mubr.f32.mxu0 0.0
        %1261 = vmatmul.mubr.f32.gmra.mxu0 %v1188
        %v1262 = vpop.f32.mrf.mxu0
        %v1263 = vadd.f32 %v1179, %v1262
        %v1264 = vpop.f32.mrf.mxu0
        %1265 = vmatprep.mubr.f32.mxu0 0.0
        %1266 = vmatmul.mubr.f32.gmra.mxu0 %v1191
        %v1267 = vpop.f32.mrf.mxu0
        %v1268 = vadd.f32 %v1184, %v1267
        %v1269 = vpop.f32.mrf.mxu0
        %1270 = vdwg.mxu0
        %vm1271 = vcmask 89088
        %1272 = vst.msk [vmem:[#allocation4] sm:$0xff] %vm1271, 0.0
        %1273 = vst.msk [vmem:[#allocation4 + $0x8] sm:$0xff] %vm1271, 0.0
        %1276 = vrot.lane.b32.xlu0 %v1263, 1
        %v1277 = vpop.permute.xlu0 %1276
        %1278 = vrot.lane.b32.xlu0 %v1268, 1
        %v1279 = vpop.permute.xlu0 %1278
        %vm1282 = vcmask 72712
        %1283 = vst.msk [vmem:[#allocation4] sm:$0xff] %vm1282, %v1277
        %1284 = vst.msk [vmem:[#allocation4 + $0x8] sm:$0xff] %vm1282, %v1279
        %v1285 = vld [vmem:[#allocation4] sm:$0xff]
        %v1286 = vld [vmem:[#allocation4 + $0x8] sm:$0xff]
        %vm1287 = vcmask 64512
        %1288 = vst.msk [vmem:[#allocation5] sm:$0xff] %vm1287, %v1285
        %1289 = vst.msk [vmem:[#allocation5 + $0x8] sm:$0xff] %vm1287, %v1286
        %v1290 = vld [vmem:[#allocation4] sm:$0xff]
        %v1291 = vld [vmem:[#allocation4 + $0x8] sm:$0xff]
        %1294 = vrot.lane.b32.xlu0 %v1290, 127
        %v1295 = vpop.permute.xlu0 %1294
        %1296 = vrot.lane.b32.xlu0 %v1291, 127
        %v1297 = vpop.permute.xlu0 %1296
        %1300 = vst.msk [vmem:[#allocation5 + $0x10] sm:$0xff] %vm1287, %v1295
        %1301 = vst.msk [vmem:[#allocation5 + $0x18] sm:$0xff] %vm1287, %v1297
        %v1302 = vld [vmem:[#allocation4] sm:$0xff]
        %v1303 = vld [vmem:[#allocation4 + $0x8] sm:$0xff]
        %1306 = vrot.lane.b32.xlu0 %v1302, 126
        %v1307 = vpop.permute.xlu0 %1306
        %1308 = vrot.lane.b32.xlu0 %v1303, 126
        %v1309 = vpop.permute.xlu0 %1308
        %1312 = vst.msk [vmem:[#allocation5 + $0x20] sm:$0xff] %vm1287, %v1307
        %1313 = vst.msk [vmem:[#allocation5 + $0x28] sm:$0xff] %vm1287, %v1309
        %v1314 = vld [vmem:[#allocation4] sm:$0xff]
        %v1315 = vld [vmem:[#allocation4 + $0x8] sm:$0xff]
        %1318 = vrot.lane.b32.xlu0 %v1314, 125
        %v1319 = vpop.permute.xlu0 %1318
        %1320 = vrot.lane.b32.xlu0 %v1315, 125
        %v1321 = vpop.permute.xlu0 %1320
        %1324 = vst.msk [vmem:[#allocation5 + $0x30] sm:$0xff] %vm1287, %v1319
        %1325 = vst.msk [vmem:[#allocation5 + $0x38] sm:$0xff] %vm1287, %v1321
        %v1326 = vld [vmem:[%s8] sm:$0xff]
        %v1327 = vld [vmem:[%s8 + $0x8] sm:$0xff]
        %v1328 = vld [vmem:[%s8 + $0x10] sm:$0xff]
        %v1329 = vld [vmem:[%s8 + $0x18] sm:$0xff]
        %v1330 = vld [vmem:[#allocation5] sm:$0xff]
        %v1331 = vld [vmem:[#allocation5 + $0x8] sm:$0xff]
        %v1332 = vld [vmem:[#allocation5 + $0x10] sm:$0xff]
        %v1333 = vld [vmem:[#allocation5 + $0x18] sm:$0xff]
        %v1334 = vld [vmem:[#allocation5 + $0x20] sm:$0xff]
        %v1335 = vld [vmem:[#allocation5 + $0x28] sm:$0xff]
        %v1336 = vld [vmem:[%s9] sm:$0xff]
        %v1337 = vld [vmem:[%s9 + $0x8] sm:$0xff]
        %v1338 = vld [vmem:[%s9 + $0x10] sm:$0xff]
        %v1339 = vld [vmem:[%s9 + $0x18] sm:$0xff]
        %v1340 = vld [vmem:[#allocation5 + $0x30] sm:$0xff]
        %v1341 = vld [vmem:[#allocation5 + $0x38] sm:$0xff]
        %v1342 = vld [vmem:[%s10] sm:$0xff]
        %v1343 = vld [vmem:[%s10 + $0x8] sm:$0xff]
        %v1344 = vld [vmem:[%s10 + $0x10] sm:$0xff]
        %v1345 = vld [vmem:[%s10 + $0x18] sm:$0xff]
        %1347 = vset.pattern.permute.xlu0 0
        %1348 = vperm.xlu0 %1347, %v1342
        %v1349 = vpop.permute.xlu0 %1348
        %1352 = vset.pattern.permute.xlu0 0
        %1353 = vperm.xlu0 %1352, %v1343
        %v1354 = vpop.permute.xlu0 %1353
        %1357 = vset.pattern.permute.xlu0 0
        %1358 = vperm.xlu0 %1357, %v1344
        %v1359 = vpop.permute.xlu0 %1358
        %1362 = vset.pattern.permute.xlu0 0
        %1363 = vperm.xlu0 %1362, %v1345
        %v1364 = vpop.permute.xlu0 %1363
        %v1367 = vsel %vm934, %v1326, 0
        %v1370 = vsel %vm934, %v1327, 0
        %v1373 = vsel %vm934, %v1328, 0
        %v1376 = vsel %vm934, %v1329, 0
        %1378 = vmatprep.subr.mxu0 0.0
        %1379 = vmatpush1.msra.mxu0 0.0
        %1380 = vmatprep.subr.mxu0 0.0
        %1381 = vmatpush1.msra.mxu0 0.0
        %1382 = vmatprep.subr.mxu0 0.0
        %1383 = vmatpush1.msra.mxu0 0.0
        %1384 = vmatprep.subr.mxu0 0.0
        %1385 = vmatpush1.msra.mxu0 0.0
        %1386 = vmatprep.subr.mxu0 0.0
        %1387 = vmatpush1.msra.mxu0 0.0
        %1388 = vmatprep.subr.mxu0 0.0
        %1389 = vmatpush1.msra.mxu0 0.0
        %1390 = vmatprep.subr.mxu0 0.0
        %1391 = vmatpush1.msra.mxu0 0.0
        %1392 = vmatprep.subr.mxu0 0.0
        %1393 = vmatpush1.msra.mxu0 0.0
        %1394 = vmatprep.subr.mxu0 0.0
        %1395 = vmatpush1.msra.mxu0 0.0
        %1396 = vmatprep.subr.mxu0 0.0
        %1397 = vmatpush1.msra.mxu0 0.0
        %1398 = vmatprep.subr.mxu0 0.0
        %1399 = vmatpush1.msra.mxu0 %v1335
        %1400 = vmatprep.subr.mxu0 0.0
        %1401 = vmatpush1.msra.mxu0 %v1334
        %1402 = vmatprep.subr.mxu0 0.0
        %1403 = vmatpush1.msra.mxu0 %v1333
        %1404 = vmatprep.subr.mxu0 0.0
        %1405 = vmatpush1.msra.mxu0 %v1332
        %1406 = vmatprep.subr.mxu0 0.0
        %1407 = vmatpush1.msra.mxu0 %v1331
        %1408 = vmatprep.subr.mxu0 0.0
        %1409 = vmatpush1.msra.mxu0 %v1330
        %1410 = vmatprep.subr.mxu0 0.0
        %1411 = vmatpush2.msra.mxu0 0.0
        %1412 = vmatprep.subr.mxu0 0.0
        %1413 = vmatpush2.msra.mxu0 0.0
        %1414 = vmatprep.subr.mxu0 0.0
        %1415 = vmatpush2.msra.mxu0 0.0
        %1416 = vmatprep.subr.mxu0 0.0
        %1417 = vmatpush2.msra.mxu0 0.0
        %1418 = vmatprep.subr.mxu0 0.0
        %1419 = vmatpush2.msra.mxu0 0.0
        %1420 = vmatprep.subr.mxu0 0.0
        %1421 = vmatpush2.msra.mxu0 0.0
        %1422 = vmatprep.subr.mxu0 0.0
        %1423 = vmatpush2.msra.mxu0 0.0
        %1424 = vmatprep.subr.mxu0 0.0
        %1425 = vmatpush2.msra.mxu0 0.0
        %1426 = vmatprep.subr.mxu0 0.0
        %1427 = vmatpush2.msra.mxu0 0.0
        %1428 = vmatprep.subr.mxu0 0.0
        %1429 = vmatpush2.msra.mxu0 0.0
        %1430 = vmatprep.subr.mxu0 0.0
        %1431 = vmatpush2.msra.mxu0 0.0
        %1432 = vmatprep.subr.mxu0 0.0
        %1433 = vmatpush2.msra.mxu0 0.0
        %1434 = vmatprep.subr.mxu0 0.0
        %1435 = vmatpush2.msra.mxu0 0.0
        %1436 = vmatprep.subr.mxu0 0.0
        %1437 = vmatpush2.msra.mxu0 0.0
        %1438 = vmatprep.subr.mxu0 0.0
        %1439 = vmatpush2.msra.mxu0 0.0
        %1440 = vmatprep.subr.mxu0 0.0
        %1441 = vmatpush2.msra.mxu0 0.0
        %1442 = vmatprep.mubr.f32.mxu0 0.0
        %1443 = vmatmul.mubr.f32.gmra.mxu0 %v1367
        %v1444 = vpop.f32.mrf.mxu0
        %v1445 = vadd.f32 %v1349, %v1444
        %v1446 = vpop.f32.mrf.mxu0
        %1447 = vmatprep.mubr.f32.mxu0 0.0
        %1448 = vmatmul.mubr.f32.gmra.mxu0 %v1370
        %v1449 = vpop.f32.mrf.mxu0
        %v1450 = vadd.f32 %v1354, %v1449
        %v1451 = vpop.f32.mrf.mxu0
        %1452 = vmatprep.mubr.f32.mxu0 0.0
        %1453 = vmatmul.mubr.f32.gmra.mxu0 %v1373
        %v1454 = vpop.f32.mrf.mxu0
        %v1455 = vadd.f32 %v1359, %v1454
        %v1456 = vpop.f32.mrf.mxu0
        %1457 = vmatprep.mubr.f32.mxu0 0.0
        %1458 = vmatmul.mubr.f32.gmra.mxu0 %v1376
        %v1459 = vpop.f32.mrf.mxu0
        %v1460 = vadd.f32 %v1364, %v1459
        %v1461 = vpop.f32.mrf.mxu0
        %1462 = vdwg.mxu0
        %v1463 = vmax.f32 %v1445, 0.0
        %v1464 = vmax.f32 %v1450, 0.0
        %v1465 = vmax.f32 %v1455, 0.0
        %v1466 = vmax.f32 %v1460, 0.0
        %v1468 = vsel %vm1018, %v1336, 0
        %v1471 = vsel %vm1018, %v1337, 0
        %v1474 = vsel %vm1018, %v1338, 0
        %v1477 = vsel %vm1018, %v1339, 0
        %1479 = vmatprep.subr.mxu0 0.0
        %1480 = vmatpush1.msra.mxu0 0.0
        %1481 = vmatprep.subr.mxu0 0.0
        %1482 = vmatpush1.msra.mxu0 0.0
        %1483 = vmatprep.subr.mxu0 0.0
        %1484 = vmatpush1.msra.mxu0 0.0
        %1485 = vmatprep.subr.mxu0 0.0
        %1486 = vmatpush1.msra.mxu0 0.0
        %1487 = vmatprep.subr.mxu0 0.0
        %1488 = vmatpush1.msra.mxu0 0.0
        %1489 = vmatprep.subr.mxu0 0.0
        %1490 = vmatpush1.msra.mxu0 0.0
        %1491 = vmatprep.subr.mxu0 0.0
        %1492 = vmatpush1.msra.mxu0 0.0
        %1493 = vmatprep.subr.mxu0 0.0
        %1494 = vmatpush1.msra.mxu0 0.0
        %1495 = vmatprep.subr.mxu0 0.0
        %1496 = vmatpush1.msra.mxu0 %v1341
        %1497 = vmatprep.subr.mxu0 0.0
        %1498 = vmatpush1.msra.mxu0 %v1340
        %1499 = vmatprep.subr.mxu0 0.0
        %1500 = vmatpush1.msra.mxu0 %v1335
        %1501 = vmatprep.subr.mxu0 0.0
        %1502 = vmatpush1.msra.mxu0 %v1334
        %1503 = vmatprep.subr.mxu0 0.0
        %1504 = vmatpush1.msra.mxu0 %v1333
        %1505 = vmatprep.subr.mxu0 0.0
        %1506 = vmatpush1.msra.mxu0 %v1332
        %1507 = vmatprep.subr.mxu0 0.0
        %1508 = vmatpush1.msra.mxu0 %v1331
        %1509 = vmatprep.subr.mxu0 0.0
        %1510 = vmatpush1.msra.mxu0 %v1330
        %1511 = vmatprep.subr.mxu0 0.0
        %1512 = vmatpush2.msra.mxu0 0.0
        %1513 = vmatprep.subr.mxu0 0.0
        %1514 = vmatpush2.msra.mxu0 0.0
        %1515 = vmatprep.subr.mxu0 0.0
        %1516 = vmatpush2.msra.mxu0 0.0
        %1517 = vmatprep.subr.mxu0 0.0
        %1518 = vmatpush2.msra.mxu0 0.0
        %1519 = vmatprep.subr.mxu0 0.0
        %1520 = vmatpush2.msra.mxu0 0.0
        %1521 = vmatprep.subr.mxu0 0.0
        %1522 = vmatpush2.msra.mxu0 0.0
        %1523 = vmatprep.subr.mxu0 0.0
        %1524 = vmatpush2.msra.mxu0 0.0
        %1525 = vmatprep.subr.mxu0 0.0
        %1526 = vmatpush2.msra.mxu0 0.0
        %1527 = vmatprep.subr.mxu0 0.0
        %1528 = vmatpush2.msra.mxu0 0.0
        %1529 = vmatprep.subr.mxu0 0.0
        %1530 = vmatpush2.msra.mxu0 0.0
        %1531 = vmatprep.subr.mxu0 0.0
        %1532 = vmatpush2.msra.mxu0 0.0
        %1533 = vmatprep.subr.mxu0 0.0
        %1534 = vmatpush2.msra.mxu0 0.0
        %1535 = vmatprep.subr.mxu0 0.0
        %1536 = vmatpush2.msra.mxu0 0.0
        %1537 = vmatprep.subr.mxu0 0.0
        %1538 = vmatpush2.msra.mxu0 0.0
        %1539 = vmatprep.subr.mxu0 0.0
        %1540 = vmatpush2.msra.mxu0 0.0
        %1541 = vmatprep.subr.mxu0 0.0
        %1542 = vmatpush2.msra.mxu0 0.0
        %1543 = vmatprep.mubr.f32.mxu0 0.0
        %1544 = vmatmul.mubr.f32.gmra.mxu0 %v1468
        %v1545 = vpop.f32.mrf.mxu0
        %v1546 = vadd.f32 %v1349, %v1545
        %v1547 = vpop.f32.mrf.mxu0
        %1548 = vmatprep.mubr.f32.mxu0 0.0
        %1549 = vmatmul.mubr.f32.gmra.mxu0 %v1471
        %v1550 = vpop.f32.mrf.mxu0
        %v1551 = vadd.f32 %v1354, %v1550
        %v1552 = vpop.f32.mrf.mxu0
        %1553 = vmatprep.mubr.f32.mxu0 0.0
        %1554 = vmatmul.mubr.f32.gmra.mxu0 %v1474
        %v1555 = vpop.f32.mrf.mxu0
        %v1556 = vadd.f32 %v1359, %v1555
        %v1557 = vpop.f32.mrf.mxu0
        %1558 = vmatprep.mubr.f32.mxu0 0.0
        %1559 = vmatmul.mubr.f32.gmra.mxu0 %v1477
        %v1560 = vpop.f32.mrf.mxu0
        %v1561 = vadd.f32 %v1364, %v1560
        %v1562 = vpop.f32.mrf.mxu0
        %1563 = vdwg.mxu0
        %v1564 = vmax.f32 %v1546, 0.0
        %v1565 = vmax.f32 %v1551, 0.0
        %v1566 = vmax.f32 %v1556, 0.0
        %v1567 = vmax.f32 %v1561, 0.0
        %v1569 = vsel %vm1287, %v1564, 0
        %v1572 = vsel %vm1287, %v1565, 0
        %v1575 = vsel %vm1287, %v1566, 0
        %v1578 = vsel %vm1287, %v1567, 0
        %1580 = vmatprep.subr.mxu0 0.0
        %1581 = vmatpush1.msra.mxu0 0.0
        %1582 = vmatprep.subr.mxu0 0.0
        %1583 = vmatpush1.msra.mxu0 0.0
        %1584 = vmatprep.subr.mxu0 0.0
        %1585 = vmatpush1.msra.mxu0 0.0
        %1586 = vmatprep.subr.mxu0 0.0
        %1587 = vmatpush1.msra.mxu0 0.0
        %1588 = vmatprep.subr.mxu0 0.0
        %1589 = vmatpush1.msra.mxu0 0.0
        %1590 = vmatprep.subr.mxu0 0.0
        %1591 = vmatpush1.msra.mxu0 0.0
        %1592 = vmatprep.subr.mxu0 0.0
        %1593 = vmatpush1.msra.mxu0 0.0
        %1594 = vmatprep.subr.mxu0 0.0
        %1595 = vmatpush1.msra.mxu0 0.0
        %1596 = vmatprep.subr.mxu0 0.0
        %1597 = vmatpush1.msra.mxu0 0.0
        %1598 = vmatprep.subr.mxu0 0.0
        %1599 = vmatpush1.msra.mxu0 0.0
        %1600 = vmatprep.subr.mxu0 0.0
        %1601 = vmatpush1.msra.mxu0 0.0
        %1602 = vmatprep.subr.mxu0 0.0
        %1603 = vmatpush1.msra.mxu0 0.0
        %1604 = vmatprep.subr.mxu0 0.0
        %1605 = vmatpush1.msra.mxu0 0.0
        %1606 = vmatprep.subr.mxu0 0.0
        %1607 = vmatpush1.msra.mxu0 0.0
        %1608 = vmatprep.subr.mxu0 0.0
        %1609 = vmatpush1.msra.mxu0 0.0
        %1610 = vmatprep.subr.mxu0 0.0
        %1611 = vmatpush1.msra.mxu0 %v528
        %1612 = vmatprep.subr.mxu0 0.0
        %1613 = vmatpush2.msra.mxu0 0.0
        %1614 = vmatprep.subr.mxu0 0.0
        %1615 = vmatpush2.msra.mxu0 0.0
        %1616 = vmatprep.subr.mxu0 0.0
        %1617 = vmatpush2.msra.mxu0 0.0
        %1618 = vmatprep.subr.mxu0 0.0
        %1619 = vmatpush2.msra.mxu0 0.0
        %1620 = vmatprep.subr.mxu0 0.0
        %1621 = vmatpush2.msra.mxu0 0.0
        %1622 = vmatprep.subr.mxu0 0.0
        %1623 = vmatpush2.msra.mxu0 0.0
        %1624 = vmatprep.subr.mxu0 0.0
        %1625 = vmatpush2.msra.mxu0 0.0
        %1626 = vmatprep.subr.mxu0 0.0
        %1627 = vmatpush2.msra.mxu0 0.0
        %1628 = vmatprep.subr.mxu0 0.0
        %1629 = vmatpush2.msra.mxu0 0.0
        %1630 = vmatprep.subr.mxu0 0.0
        %1631 = vmatpush2.msra.mxu0 0.0
        %1632 = vmatprep.subr.mxu0 0.0
        %1633 = vmatpush2.msra.mxu0 0.0
        %1634 = vmatprep.subr.mxu0 0.0
        %1635 = vmatpush2.msra.mxu0 0.0
        %1636 = vmatprep.subr.mxu0 0.0
        %1637 = vmatpush2.msra.mxu0 0.0
        %1638 = vmatprep.subr.mxu0 0.0
        %1639 = vmatpush2.msra.mxu0 0.0
        %1640 = vmatprep.subr.mxu0 0.0
        %1641 = vmatpush2.msra.mxu0 0.0
        %1642 = vmatprep.subr.mxu0 0.0
        %1643 = vmatpush2.msra.mxu0 0.0
        %1644 = vmatprep.mubr.f32.mxu0 0.0
        %1645 = vmatmul.mubr.f32.gmra.mxu0 %v1569
        %v1646 = vpop.f32.mrf.mxu0
        %v1647 = vadd.f32 0.0, %v1646
        %v1648 = vpop.f32.mrf.mxu0
        %1649 = vmatprep.mubr.f32.mxu0 0.0
        %1650 = vmatmul.mubr.f32.gmra.mxu0 %v1572
        %v1651 = vpop.f32.mrf.mxu0
        %v1652 = vadd.f32 0.0, %v1651
        %v1653 = vpop.f32.mrf.mxu0
        %1654 = vmatprep.mubr.f32.mxu0 0.0
        %1655 = vmatmul.mubr.f32.gmra.mxu0 %v1575
        %v1656 = vpop.f32.mrf.mxu0
        %v1657 = vadd.f32 0.0, %v1656
        %v1658 = vpop.f32.mrf.mxu0
        %1659 = vmatprep.mubr.f32.mxu0 0.0
        %1660 = vmatmul.mubr.f32.gmra.mxu0 %v1578
        %v1661 = vpop.f32.mrf.mxu0
        %v1662 = vadd.f32 0.0, %v1661
        %v1663 = vpop.f32.mrf.mxu0
        %1664 = vdwg.mxu0
        %v1666 = vsel %vm1287, %v1463, 0
        %v1669 = vsel %vm1287, %v1464, 0
        %v1672 = vsel %vm1287, %v1465, 0
        %v1675 = vsel %vm1287, %v1466, 0
        %1677 = vmatprep.subr.mxu0 0.0
        %1678 = vmatpush1.msra.mxu0 0.0
        %1679 = vmatprep.subr.mxu0 0.0
        %1680 = vmatpush1.msra.mxu0 0.0
        %1681 = vmatprep.subr.mxu0 0.0
        %1682 = vmatpush1.msra.mxu0 0.0
        %1683 = vmatprep.subr.mxu0 0.0
        %1684 = vmatpush1.msra.mxu0 0.0
        %1685 = vmatprep.subr.mxu0 0.0
        %1686 = vmatpush1.msra.mxu0 0.0
        %1687 = vmatprep.subr.mxu0 0.0
        %1688 = vmatpush1.msra.mxu0 0.0
        %1689 = vmatprep.subr.mxu0 0.0
        %1690 = vmatpush1.msra.mxu0 0.0
        %1691 = vmatprep.subr.mxu0 0.0
        %1692 = vmatpush1.msra.mxu0 0.0
        %1693 = vmatprep.subr.mxu0 0.0
        %1694 = vmatpush1.msra.mxu0 0.0
        %1695 = vmatprep.subr.mxu0 0.0
        %1696 = vmatpush1.msra.mxu0 0.0
        %1697 = vmatprep.subr.mxu0 0.0
        %1698 = vmatpush1.msra.mxu0 0.0
        %1699 = vmatprep.subr.mxu0 0.0
        %1700 = vmatpush1.msra.mxu0 0.0
        %1701 = vmatprep.subr.mxu0 0.0
        %1702 = vmatpush1.msra.mxu0 0.0
        %1703 = vmatprep.subr.mxu0 0.0
        %1704 = vmatpush1.msra.mxu0 0.0
        %1705 = vmatprep.subr.mxu0 0.0
        %1706 = vmatpush1.msra.mxu0 0.0
        %1707 = vmatprep.subr.mxu0 0.0
        %1708 = vmatpush1.msra.mxu0 %v524
        %1709 = vmatprep.subr.mxu0 0.0
        %1710 = vmatpush2.msra.mxu0 0.0
        %1711 = vmatprep.subr.mxu0 0.0
        %1712 = vmatpush2.msra.mxu0 0.0
        %1713 = vmatprep.subr.mxu0 0.0
        %1714 = vmatpush2.msra.mxu0 0.0
        %1715 = vmatprep.subr.mxu0 0.0
        %1716 = vmatpush2.msra.mxu0 0.0
        %1717 = vmatprep.subr.mxu0 0.0
        %1718 = vmatpush2.msra.mxu0 0.0
        %1719 = vmatprep.subr.mxu0 0.0
        %1720 = vmatpush2.msra.mxu0 0.0
        %1721 = vmatprep.subr.mxu0 0.0
        %1722 = vmatpush2.msra.mxu0 0.0
        %1723 = vmatprep.subr.mxu0 0.0
        %1724 = vmatpush2.msra.mxu0 0.0
        %1725 = vmatprep.subr.mxu0 0.0
        %1726 = vmatpush2.msra.mxu0 0.0
        %1727 = vmatprep.subr.mxu0 0.0
        %1728 = vmatpush2.msra.mxu0 0.0
        %1729 = vmatprep.subr.mxu0 0.0
        %1730 = vmatpush2.msra.mxu0 0.0
        %1731 = vmatprep.subr.mxu0 0.0
        %1732 = vmatpush2.msra.mxu0 0.0
        %1733 = vmatprep.subr.mxu0 0.0
        %1734 = vmatpush2.msra.mxu0 0.0
        %1735 = vmatprep.subr.mxu0 0.0
        %1736 = vmatpush2.msra.mxu0 0.0
        %1737 = vmatprep.subr.mxu0 0.0
        %1738 = vmatpush2.msra.mxu0 0.0
        %1739 = vmatprep.subr.mxu0 0.0
        %1740 = vmatpush2.msra.mxu0 0.0
        %1741 = vmatprep.mubr.f32.mxu0 0.0
        %1742 = vmatmul.mubr.f32.gmra.mxu0 %v1666
        %v1743 = vpop.f32.mrf.mxu0
        %v1744 = vadd.f32 %v1647, %v1743
        %v1745 = vpop.f32.mrf.mxu0
        %1746 = vmatprep.mubr.f32.mxu0 0.0
        %1747 = vmatmul.mubr.f32.gmra.mxu0 %v1669
        %v1748 = vpop.f32.mrf.mxu0
        %v1749 = vadd.f32 %v1652, %v1748
        %v1750 = vpop.f32.mrf.mxu0
        %1751 = vmatprep.mubr.f32.mxu0 0.0
        %1752 = vmatmul.mubr.f32.gmra.mxu0 %v1672
        %v1753 = vpop.f32.mrf.mxu0
        %v1754 = vadd.f32 %v1657, %v1753
        %v1755 = vpop.f32.mrf.mxu0
        %1756 = vmatprep.mubr.f32.mxu0 0.0
        %1757 = vmatmul.mubr.f32.gmra.mxu0 %v1675
        %v1758 = vpop.f32.mrf.mxu0
        %v1759 = vadd.f32 %v1662, %v1758
        %v1760 = vpop.f32.mrf.mxu0
        %1761 = vdwg.mxu0
        %vm1762 = vcmask 179200
        %1763 = vst.msk [vmem:[#allocation6] sm:$0xff] %vm1762, 0.0
        %1764 = vst.msk [vmem:[#allocation6 + $0x8] sm:$0xff] %vm1762, 0.0
        %1765 = vst.msk [vmem:[#allocation6 + $0x10] sm:$0xff] %vm1762, 0.0
        %1766 = vst.msk [vmem:[#allocation6 + $0x18] sm:$0xff] %vm1762, 0.0
        %1771 = vrot.lane.b32.xlu0 %v1744, 3
        %v1772 = vpop.permute.xlu0 %1771
        %1773 = vrot.lane.b32.xlu0 %v1749, 3
        %v1774 = vpop.permute.xlu0 %1773
        %1775 = vrot.lane.b32.xlu0 %v1754, 3
        %v1776 = vpop.permute.xlu0 %1775
        %1777 = vrot.lane.b32.xlu0 %v1759, 3
        %v1778 = vpop.permute.xlu0 %1777
        %vm1783 = vcmask 154648
        %1784 = vst.msk [vmem:[#allocation6] sm:$0xff] %vm1783, %v1772
        %1785 = vst.msk [vmem:[#allocation6 + $0x8] sm:$0xff] %vm1783, %v1774
        %1786 = vst.msk [vmem:[#allocation6 + $0x10] sm:$0xff] %vm1783, %v1776
        %1787 = vst.msk [vmem:[#allocation6 + $0x18] sm:$0xff] %vm1783, %v1778
        %v1788 = vld [vmem:[#allocation6] sm:$0xff]
        %v1789 = vld [vmem:[#allocation6 + $0x8] sm:$0xff]
        %v1790 = vld [vmem:[#allocation6 + $0x10] sm:$0xff]
        %v1791 = vld [vmem:[#allocation6 + $0x18] sm:$0xff]
        %1792 = vst.msk [vmem:[#allocation7] sm:$0xff] %vm573, %v1788
        %1793 = vst.msk [vmem:[#allocation7 + $0x8] sm:$0xff] %vm573, %v1789
        %1794 = vst.msk [vmem:[#allocation7 + $0x10] sm:$0xff] %vm573, %v1790
        %1795 = vst.msk [vmem:[#allocation7 + $0x18] sm:$0xff] %vm573, %v1791
        %v1796 = vld [vmem:[#allocation6] sm:$0xff]
        %v1797 = vld [vmem:[#allocation6 + $0x8] sm:$0xff]
        %v1798 = vld [vmem:[#allocation6 + $0x10] sm:$0xff]
        %v1799 = vld [vmem:[#allocation6 + $0x18] sm:$0xff]
        %1804 = vrot.lane.b32.xlu0 %v1796, 127
        %v1805 = vpop.permute.xlu0 %1804
        %1806 = vrot.lane.b32.xlu0 %v1797, 127
        %v1807 = vpop.permute.xlu0 %1806
        %1808 = vrot.lane.b32.xlu0 %v1798, 127
        %v1809 = vpop.permute.xlu0 %1808
        %1810 = vrot.lane.b32.xlu0 %v1799, 127
        %v1811 = vpop.permute.xlu0 %1810
        %1816 = vst.msk [vmem:[#allocation7 + $0x20] sm:$0xff] %vm573, %v1805
        %1817 = vst.msk [vmem:[#allocation7 + $0x28] sm:$0xff] %vm573, %v1807
        %1818 = vst.msk [vmem:[#allocation7 + $0x30] sm:$0xff] %vm573, %v1809
        %1819 = vst.msk [vmem:[#allocation7 + $0x38] sm:$0xff] %vm573, %v1811
        %v1820 = vld [vmem:[#allocation6] sm:$0xff]
        %v1821 = vld [vmem:[#allocation6 + $0x8] sm:$0xff]
        %v1822 = vld [vmem:[#allocation6 + $0x10] sm:$0xff]
        %v1823 = vld [vmem:[#allocation6 + $0x18] sm:$0xff]
        %1828 = vrot.lane.b32.xlu0 %v1820, 126
        %v1829 = vpop.permute.xlu0 %1828
        %1830 = vrot.lane.b32.xlu0 %v1821, 126
        %v1831 = vpop.permute.xlu0 %1830
        %1832 = vrot.lane.b32.xlu0 %v1822, 126
        %v1833 = vpop.permute.xlu0 %1832
        %1834 = vrot.lane.b32.xlu0 %v1823, 126
        %v1835 = vpop.permute.xlu0 %1834
        %1840 = vst.msk [vmem:[#allocation7 + $0x40] sm:$0xff] %vm573, %v1829
        %1841 = vst.msk [vmem:[#allocation7 + $0x48] sm:$0xff] %vm573, %v1831
        %1842 = vst.msk [vmem:[#allocation7 + $0x50] sm:$0xff] %vm573, %v1833
        %1843 = vst.msk [vmem:[#allocation7 + $0x58] sm:$0xff] %vm573, %v1835
        %v1844 = vld [vmem:[#allocation6] sm:$0xff]
        %v1845 = vld [vmem:[#allocation6 + $0x8] sm:$0xff]
        %v1846 = vld [vmem:[#allocation6 + $0x10] sm:$0xff]
        %v1847 = vld [vmem:[#allocation6 + $0x18] sm:$0xff]
        %1852 = vrot.lane.b32.xlu0 %v1844, 125
        %v1853 = vpop.permute.xlu0 %1852
        %1854 = vrot.lane.b32.xlu0 %v1845, 125
        %v1855 = vpop.permute.xlu0 %1854
        %1856 = vrot.lane.b32.xlu0 %v1846, 125
        %v1857 = vpop.permute.xlu0 %1856
        %1858 = vrot.lane.b32.xlu0 %v1847, 125
        %v1859 = vpop.permute.xlu0 %1858
        %1864 = vst.msk [vmem:[#allocation7 + $0x60] sm:$0xff] %vm573, %v1853
        %1865 = vst.msk [vmem:[#allocation7 + $0x68] sm:$0xff] %vm573, %v1855
        %1866 = vst.msk [vmem:[#allocation7 + $0x70] sm:$0xff] %vm573, %v1857
        %1867 = vst.msk [vmem:[#allocation7 + $0x78] sm:$0xff] %vm573, %v1859
        %v1868 = vld [vmem:[#allocation6] sm:$0xff]
        %v1869 = vld [vmem:[#allocation6 + $0x8] sm:$0xff]
        %v1870 = vld [vmem:[#allocation6 + $0x10] sm:$0xff]
        %v1871 = vld [vmem:[#allocation6 + $0x18] sm:$0xff]
        %1876 = vrot.lane.b32.xlu0 %v1868, 124
        %v1877 = vpop.permute.xlu0 %1876
        %1878 = vrot.lane.b32.xlu0 %v1869, 124
        %v1879 = vpop.permute.xlu0 %1878
        %1880 = vrot.lane.b32.xlu0 %v1870, 124
        %v1881 = vpop.permute.xlu0 %1880
        %1882 = vrot.lane.b32.xlu0 %v1871, 124
        %v1883 = vpop.permute.xlu0 %1882
        %1888 = vst.msk [vmem:[#allocation7 + $0x80] sm:$0xff] %vm573, %v1877
        %1889 = vst.msk [vmem:[#allocation7 + $0x88] sm:$0xff] %vm573, %v1879
        %1890 = vst.msk [vmem:[#allocation7 + $0x90] sm:$0xff] %vm573, %v1881
        %1891 = vst.msk [vmem:[#allocation7 + $0x98] sm:$0xff] %vm573, %v1883
        %v1892 = vld [vmem:[#allocation6] sm:$0xff]
        %v1893 = vld [vmem:[#allocation6 + $0x8] sm:$0xff]
        %v1894 = vld [vmem:[#allocation6 + $0x10] sm:$0xff]
        %v1895 = vld [vmem:[#allocation6 + $0x18] sm:$0xff]
        %1900 = vrot.lane.b32.xlu0 %v1892, 123
        %v1901 = vpop.permute.xlu0 %1900
        %1902 = vrot.lane.b32.xlu0 %v1893, 123
        %v1903 = vpop.permute.xlu0 %1902
        %1904 = vrot.lane.b32.xlu0 %v1894, 123
        %v1905 = vpop.permute.xlu0 %1904
        %1906 = vrot.lane.b32.xlu0 %v1895, 123
        %v1907 = vpop.permute.xlu0 %1906
        %1912 = vst.msk [vmem:[#allocation7 + $0xa0] sm:$0xff] %vm573, %v1901
        %1913 = vst.msk [vmem:[#allocation7 + $0xa8] sm:$0xff] %vm573, %v1903
        %1914 = vst.msk [vmem:[#allocation7 + $0xb0] sm:$0xff] %vm573, %v1905
        %1915 = vst.msk [vmem:[#allocation7 + $0xb8] sm:$0xff] %vm573, %v1907
        %v1916 = vld [vmem:[#allocation6] sm:$0xff]
        %v1917 = vld [vmem:[#allocation6 + $0x8] sm:$0xff]
        %v1918 = vld [vmem:[#allocation6 + $0x10] sm:$0xff]
        %v1919 = vld [vmem:[#allocation6 + $0x18] sm:$0xff]
        %1924 = vrot.lane.b32.xlu0 %v1916, 122
        %v1925 = vpop.permute.xlu0 %1924
        %1926 = vrot.lane.b32.xlu0 %v1917, 122
        %v1927 = vpop.permute.xlu0 %1926
        %1928 = vrot.lane.b32.xlu0 %v1918, 122
        %v1929 = vpop.permute.xlu0 %1928
        %1930 = vrot.lane.b32.xlu0 %v1919, 122
        %v1931 = vpop.permute.xlu0 %1930
        %1936 = vst.msk [vmem:[#allocation7 + $0xc0] sm:$0xff] %vm573, %v1925
        %1937 = vst.msk [vmem:[#allocation7 + $0xc8] sm:$0xff] %vm573, %v1927
        %1938 = vst.msk [vmem:[#allocation7 + $0xd0] sm:$0xff] %vm573, %v1929
        %1939 = vst.msk [vmem:[#allocation7 + $0xd8] sm:$0xff] %vm573, %v1931
        %v1940 = vld [vmem:[%s11] sm:$0xff]
        %v1941 = vld [vmem:[%s11 + $0x8] sm:$0xff]
        %v1942 = vld [vmem:[#allocation7] sm:$0xff]
        %v1943 = vld [vmem:[#allocation7 + $0x8] sm:$0xff]
        %v1944 = vld [vmem:[#allocation7 + $0x10] sm:$0xff]
        %v1945 = vld [vmem:[#allocation7 + $0x18] sm:$0xff]
        %v1946 = vld [vmem:[#allocation7 + $0x20] sm:$0xff]
        %v1947 = vld [vmem:[#allocation7 + $0x28] sm:$0xff]
        %v1948 = vld [vmem:[#allocation7 + $0x30] sm:$0xff]
        %v1949 = vld [vmem:[#allocation7 + $0x38] sm:$0xff]
        %v1950 = vld [vmem:[#allocation7 + $0x40] sm:$0xff]
        %v1951 = vld [vmem:[#allocation7 + $0x48] sm:$0xff]
        %v1952 = vld [vmem:[#allocation7 + $0x50] sm:$0xff]
        %v1953 = vld [vmem:[#allocation7 + $0x58] sm:$0xff]
        %v1954 = vld [vmem:[#allocation7 + $0x60] sm:$0xff]
        %v1955 = vld [vmem:[#allocation7 + $0x68] sm:$0xff]
        %v1956 = vld [vmem:[#allocation7 + $0x70] sm:$0xff]
        %v1957 = vld [vmem:[#allocation7 + $0x78] sm:$0xff]
        %v1958 = vld [vmem:[#allocation7 + $0x80] sm:$0xff]
        %v1959 = vld [vmem:[#allocation7 + $0x88] sm:$0xff]
        %v1960 = vld [vmem:[#allocation7 + $0x90] sm:$0xff]
        %v1961 = vld [vmem:[#allocation7 + $0x98] sm:$0xff]
        %v1962 = vld [vmem:[#allocation7 + $0xa0] sm:$0xff]
        %v1963 = vld [vmem:[#allocation7 + $0xa8] sm:$0xff]
        %v1964 = vld [vmem:[#allocation7 + $0xb0] sm:$0xff]
        %v1965 = vld [vmem:[#allocation7 + $0xb8] sm:$0xff]
        %v1966 = vld [vmem:[#allocation7 + $0xc0] sm:$0xff]
        %v1967 = vld [vmem:[#allocation7 + $0xc8] sm:$0xff]
        %v1968 = vld [vmem:[#allocation7 + $0xd0] sm:$0xff]
        %v1969 = vld [vmem:[#allocation7 + $0xd8] sm:$0xff]
        %v1970 = vld [vmem:[%s12] sm:$0xff]
        %1972 = vset.pattern.permute.xlu0 0
        %1973 = vperm.xlu0 %1972, %v1970
        %v1974 = vpop.permute.xlu0 %1973
        %vm1976 = vcmask 785408
        %v1978 = vsel %vm1976, %v1941, 0
        %1980 = vmatprep.subr.mxu0 0.0
        %1981 = vmatpush1.msra.mxu0 %v1957
        %1982 = vmatprep.subr.mxu0 0.0
        %1983 = vmatpush1.msra.mxu0 %v1956
        %1984 = vmatprep.subr.mxu0 0.0
        %1985 = vmatpush1.msra.mxu0 %v1955
        %1986 = vmatprep.subr.mxu0 0.0
        %1987 = vmatpush1.msra.mxu0 %v1954
        %1988 = vmatprep.subr.mxu0 0.0
        %1989 = vmatpush1.msra.mxu0 %v1953
        %1990 = vmatprep.subr.mxu0 0.0
        %1991 = vmatpush1.msra.mxu0 %v1952
        %1992 = vmatprep.subr.mxu0 0.0
        %1993 = vmatpush1.msra.mxu0 %v1951
        %1994 = vmatprep.subr.mxu0 0.0
        %1995 = vmatpush1.msra.mxu0 %v1950
        %1996 = vmatprep.subr.mxu0 0.0
        %1997 = vmatpush1.msra.mxu0 %v1949
        %1998 = vmatprep.subr.mxu0 0.0
        %1999 = vmatpush1.msra.mxu0 %v1948
        %2000 = vmatprep.subr.mxu0 0.0
        %2001 = vmatpush1.msra.mxu0 %v1947
        %2002 = vmatprep.subr.mxu0 0.0
        %2003 = vmatpush1.msra.mxu0 %v1946
        %2004 = vmatprep.subr.mxu0 0.0
        %2005 = vmatpush1.msra.mxu0 %v1945
        %2006 = vmatprep.subr.mxu0 0.0
        %2007 = vmatpush1.msra.mxu0 %v1944
        %2008 = vmatprep.subr.mxu0 0.0
        %2009 = vmatpush1.msra.mxu0 %v1943
        %2010 = vmatprep.subr.mxu0 0.0
        %2011 = vmatpush1.msra.mxu0 %v1942
        %2012 = vmatprep.subr.mxu0 0.0
        %2013 = vmatpush2.msra.mxu0 0.0
        %2014 = vmatprep.subr.mxu0 0.0
        %2015 = vmatpush2.msra.mxu0 0.0
        %2016 = vmatprep.subr.mxu0 0.0
        %2017 = vmatpush2.msra.mxu0 0.0
        %2018 = vmatprep.subr.mxu0 0.0
        %2019 = vmatpush2.msra.mxu0 0.0
        %2020 = vmatprep.subr.mxu0 0.0
        %2021 = vmatpush2.msra.mxu0 %v1969
        %2022 = vmatprep.subr.mxu0 0.0
        %2023 = vmatpush2.msra.mxu0 %v1968
        %2024 = vmatprep.subr.mxu0 0.0
        %2025 = vmatpush2.msra.mxu0 %v1967
        %2026 = vmatprep.subr.mxu0 0.0
        %2027 = vmatpush2.msra.mxu0 %v1966
        %2028 = vmatprep.subr.mxu0 0.0
        %2029 = vmatpush2.msra.mxu0 %v1965
        %2030 = vmatprep.subr.mxu0 0.0
        %2031 = vmatpush2.msra.mxu0 %v1964
        %2032 = vmatprep.subr.mxu0 0.0
        %2033 = vmatpush2.msra.mxu0 %v1963
        %2034 = vmatprep.subr.mxu0 0.0
        %2035 = vmatpush2.msra.mxu0 %v1962
        %2036 = vmatprep.subr.mxu0 0.0
        %2037 = vmatpush2.msra.mxu0 %v1961
        %2038 = vmatprep.subr.mxu0 0.0
        %2039 = vmatpush2.msra.mxu0 %v1960
        %2040 = vmatprep.subr.mxu0 0.0
        %2041 = vmatpush2.msra.mxu0 %v1959
        %2042 = vmatprep.subr.mxu0 0.0
        %2043 = vmatpush2.msra.mxu0 %v1958
        %2044 = vmatprep.mubr.f32.mxu0 %v1978
        %2045 = vmatmul.mubr.f32.gmra.mxu0 %v1940
        %v2046 = vpop.f32.mrf.mxu0
        %v2047 = vadd.f32 %v1974, %v2046
        %v2048 = vpop.f32.mrf.mxu0
        %2049 = vdwg.mxu0
        %2050 = vst.msk [vmem:[%s494] sm:$0xff] %vm573, %v2047
        %2051 = vst.msk [vmem:[#allocation2] sm:$0xff] %vm855, 0.0
        %2052 = vst.msk [vmem:[#allocation2 + $0x8] sm:$0xff] %vm855, 0.0
        %2055 = vrot.lane.b32.xlu0 %v851, 1
        %v2056 = vpop.permute.xlu0 %2055
        %2057 = vrot.lane.b32.xlu0 %v852, 1
        %v2058 = vpop.permute.xlu0 %2057
        %2061 = vst.msk [vmem:[#allocation2] sm:$0xff] %vm866, %v2056
        %2062 = vst.msk [vmem:[#allocation2 + $0x8] sm:$0xff] %vm866, %v2058
        %v2063 = vld [vmem:[#allocation2] sm:$0xff]
        %v2064 = vld [vmem:[#allocation2 + $0x8] sm:$0xff]
        %2065 = vst.msk [vmem:[#allocation3] sm:$0xff] %vm871, %v2063
        %2066 = vst.msk [vmem:[#allocation3 + $0x8] sm:$0xff] %vm871, %v2064
        %v2067 = vld [vmem:[#allocation2] sm:$0xff]
        %v2068 = vld [vmem:[#allocation2 + $0x8] sm:$0xff]
        %2071 = vrot.lane.b32.xlu0 %v2067, 127
        %v2072 = vpop.permute.xlu0 %2071
        %2073 = vrot.lane.b32.xlu0 %v2068, 127
        %v2074 = vpop.permute.xlu0 %2073
        %2077 = vst.msk [vmem:[#allocation3 + $0x10] sm:$0xff] %vm871, %v2072
        %2078 = vst.msk [vmem:[#allocation3 + $0x18] sm:$0xff] %vm871, %v2074
        %v2079 = vld [vmem:[#allocation2] sm:$0xff]
        %v2080 = vld [vmem:[#allocation2 + $0x8] sm:$0xff]
        %2083 = vrot.lane.b32.xlu0 %v2079, 126
        %v2084 = vpop.permute.xlu0 %2083
        %2085 = vrot.lane.b32.xlu0 %v2080, 126
        %v2086 = vpop.permute.xlu0 %2085
        %2089 = vst.msk [vmem:[#allocation3 + $0x20] sm:$0xff] %vm871, %v2084
        %2090 = vst.msk [vmem:[#allocation3 + $0x28] sm:$0xff] %vm871, %v2086
        %v2091 = vld [vmem:[#allocation2] sm:$0xff]
        %v2092 = vld [vmem:[#allocation2 + $0x8] sm:$0xff]
        %2095 = vrot.lane.b32.xlu0 %v2091, 125
        %v2096 = vpop.permute.xlu0 %2095
        %2097 = vrot.lane.b32.xlu0 %v2092, 125
        %v2098 = vpop.permute.xlu0 %2097
        %2101 = vst.msk [vmem:[#allocation3 + $0x30] sm:$0xff] %vm871, %v2096
        %2102 = vst.msk [vmem:[#allocation3 + $0x38] sm:$0xff] %vm871, %v2098
        %v2103 = vld [vmem:[%s5] sm:$0xff]
        %v2104 = vld [vmem:[%s5 + $0x8] sm:$0xff]
        %v2105 = vld [vmem:[#allocation3] sm:$0xff]
        %v2106 = vld [vmem:[#allocation3 + $0x8] sm:$0xff]
        %v2107 = vld [vmem:[#allocation3 + $0x10] sm:$0xff]
        %v2108 = vld [vmem:[#allocation3 + $0x18] sm:$0xff]
        %v2109 = vld [vmem:[#allocation3 + $0x20] sm:$0xff]
        %v2110 = vld [vmem:[#allocation3 + $0x28] sm:$0xff]
        %v2111 = vld [vmem:[%s6] sm:$0xff]
        %v2112 = vld [vmem:[%s6 + $0x8] sm:$0xff]
        %v2113 = vld [vmem:[#allocation3 + $0x30] sm:$0xff]
        %v2114 = vld [vmem:[#allocation3 + $0x38] sm:$0xff]
        %v2115 = vld [vmem:[%s7] sm:$0xff]
        %v2116 = vld [vmem:[%s7 + $0x8] sm:$0xff]
        %2118 = vset.pattern.permute.xlu0 0
        %2119 = vperm.xlu0 %2118, %v2115
        %v2120 = vpop.permute.xlu0 %2119
        %2123 = vset.pattern.permute.xlu0 0
        %2124 = vperm.xlu0 %2123, %v2116
        %v2125 = vpop.permute.xlu0 %2124
        %v2128 = vsel %vm934, %v2103, 0
        %v2131 = vsel %vm934, %v2104, 0
        %2133 = vmatprep.subr.mxu0 0.0
        %2134 = vmatpush1.msra.mxu0 0.0
        %2135 = vmatprep.subr.mxu0 0.0
        %2136 = vmatpush1.msra.mxu0 0.0
        %2137 = vmatprep.subr.mxu0 0.0
        %2138 = vmatpush1.msra.mxu0 0.0
        %2139 = vmatprep.subr.mxu0 0.0
        %2140 = vmatpush1.msra.mxu0 0.0
        %2141 = vmatprep.subr.mxu0 0.0
        %2142 = vmatpush1.msra.mxu0 0.0
        %2143 = vmatprep.subr.mxu0 0.0
        %2144 = vmatpush1.msra.mxu0 0.0
        %2145 = vmatprep.subr.mxu0 0.0
        %2146 = vmatpush1.msra.mxu0 0.0
        %2147 = vmatprep.subr.mxu0 0.0
        %2148 = vmatpush1.msra.mxu0 0.0
        %2149 = vmatprep.subr.mxu0 0.0
        %2150 = vmatpush1.msra.mxu0 0.0
        %2151 = vmatprep.subr.mxu0 0.0
        %2152 = vmatpush1.msra.mxu0 0.0
        %2153 = vmatprep.subr.mxu0 0.0
        %2154 = vmatpush1.msra.mxu0 %v2110
        %2155 = vmatprep.subr.mxu0 0.0
        %2156 = vmatpush1.msra.mxu0 %v2109
        %2157 = vmatprep.subr.mxu0 0.0
        %2158 = vmatpush1.msra.mxu0 %v2108
        %2159 = vmatprep.subr.mxu0 0.0
        %2160 = vmatpush1.msra.mxu0 %v2107
        %2161 = vmatprep.subr.mxu0 0.0
        %2162 = vmatpush1.msra.mxu0 %v2106
        %2163 = vmatprep.subr.mxu0 0.0
        %2164 = vmatpush1.msra.mxu0 %v2105
        %2165 = vmatprep.subr.mxu0 0.0
        %2166 = vmatpush2.msra.mxu0 0.0
        %2167 = vmatprep.subr.mxu0 0.0
        %2168 = vmatpush2.msra.mxu0 0.0
        %2169 = vmatprep.subr.mxu0 0.0
        %2170 = vmatpush2.msra.mxu0 0.0
        %2171 = vmatprep.subr.mxu0 0.0
        %2172 = vmatpush2.msra.mxu0 0.0
        %2173 = vmatprep.subr.mxu0 0.0
        %2174 = vmatpush2.msra.mxu0 0.0
        %2175 = vmatprep.subr.mxu0 0.0
        %2176 = vmatpush2.msra.mxu0 0.0
        %2177 = vmatprep.subr.mxu0 0.0
        %2178 = vmatpush2.msra.mxu0 0.0
        %2179 = vmatprep.subr.mxu0 0.0
        %2180 = vmatpush2.msra.mxu0 0.0
        %2181 = vmatprep.subr.mxu0 0.0
        %2182 = vmatpush2.msra.mxu0 0.0
        %2183 = vmatprep.subr.mxu0 0.0
        %2184 = vmatpush2.msra.mxu0 0.0
        %2185 = vmatprep.subr.mxu0 0.0
        %2186 = vmatpush2.msra.mxu0 0.0
        %2187 = vmatprep.subr.mxu0 0.0
        %2188 = vmatpush2.msra.mxu0 0.0
        %2189 = vmatprep.subr.mxu0 0.0
        %2190 = vmatpush2.msra.mxu0 0.0
        %2191 = vmatprep.subr.mxu0 0.0
        %2192 = vmatpush2.msra.mxu0 0.0
        %2193 = vmatprep.subr.mxu0 0.0
        %2194 = vmatpush2.msra.mxu0 0.0
        %2195 = vmatprep.subr.mxu0 0.0
        %2196 = vmatpush2.msra.mxu0 0.0
        %2197 = vmatprep.mubr.f32.mxu0 0.0
        %2198 = vmatmul.mubr.f32.gmra.mxu0 %v2128
        %v2199 = vpop.f32.mrf.mxu0
        %v2200 = vadd.f32 %v2120, %v2199
        %v2201 = vpop.f32.mrf.mxu0
        %2202 = vmatprep.mubr.f32.mxu0 0.0
        %2203 = vmatmul.mubr.f32.gmra.mxu0 %v2131
        %v2204 = vpop.f32.mrf.mxu0
        %v2205 = vadd.f32 %v2125, %v2204
        %v2206 = vpop.f32.mrf.mxu0
        %2207 = vdwg.mxu0
        %v2208 = vmax.f32 %v2200, 0.0
        %v2209 = vmax.f32 %v2205, 0.0
        %v2211 = vsel %vm1018, %v2111, 0
        %v2214 = vsel %vm1018, %v2112, 0
        %2216 = vmatprep.subr.mxu0 0.0
        %2217 = vmatpush1.msra.mxu0 0.0
        %2218 = vmatprep.subr.mxu0 0.0
        %2219 = vmatpush1.msra.mxu0 0.0
        %2220 = vmatprep.subr.mxu0 0.0
        %2221 = vmatpush1.msra.mxu0 0.0
        %2222 = vmatprep.subr.mxu0 0.0
        %2223 = vmatpush1.msra.mxu0 0.0
        %2224 = vmatprep.subr.mxu0 0.0
        %2225 = vmatpush1.msra.mxu0 0.0
        %2226 = vmatprep.subr.mxu0 0.0
        %2227 = vmatpush1.msra.mxu0 0.0
        %2228 = vmatprep.subr.mxu0 0.0
        %2229 = vmatpush1.msra.mxu0 0.0
        %2230 = vmatprep.subr.mxu0 0.0
        %2231 = vmatpush1.msra.mxu0 0.0
        %2232 = vmatprep.subr.mxu0 0.0
        %2233 = vmatpush1.msra.mxu0 %v2114
        %2234 = vmatprep.subr.mxu0 0.0
        %2235 = vmatpush1.msra.mxu0 %v2113
        %2236 = vmatprep.subr.mxu0 0.0
        %2237 = vmatpush1.msra.mxu0 %v2110
        %2238 = vmatprep.subr.mxu0 0.0
        %2239 = vmatpush1.msra.mxu0 %v2109
        %2240 = vmatprep.subr.mxu0 0.0
        %2241 = vmatpush1.msra.mxu0 %v2108
        %2242 = vmatprep.subr.mxu0 0.0
        %2243 = vmatpush1.msra.mxu0 %v2107
        %2244 = vmatprep.subr.mxu0 0.0
        %2245 = vmatpush1.msra.mxu0 %v2106
        %2246 = vmatprep.subr.mxu0 0.0
        %2247 = vmatpush1.msra.mxu0 %v2105
        %2248 = vmatprep.subr.mxu0 0.0
        %2249 = vmatpush2.msra.mxu0 0.0
        %2250 = vmatprep.subr.mxu0 0.0
        %2251 = vmatpush2.msra.mxu0 0.0
        %2252 = vmatprep.subr.mxu0 0.0
        %2253 = vmatpush2.msra.mxu0 0.0
        %2254 = vmatprep.subr.mxu0 0.0
        %2255 = vmatpush2.msra.mxu0 0.0
        %2256 = vmatprep.subr.mxu0 0.0
        %2257 = vmatpush2.msra.mxu0 0.0
        %2258 = vmatprep.subr.mxu0 0.0
        %2259 = vmatpush2.msra.mxu0 0.0
        %2260 = vmatprep.subr.mxu0 0.0
        %2261 = vmatpush2.msra.mxu0 0.0
        %2262 = vmatprep.subr.mxu0 0.0
        %2263 = vmatpush2.msra.mxu0 0.0
        %2264 = vmatprep.subr.mxu0 0.0
        %2265 = vmatpush2.msra.mxu0 0.0
        %2266 = vmatprep.subr.mxu0 0.0
        %2267 = vmatpush2.msra.mxu0 0.0
        %2268 = vmatprep.subr.mxu0 0.0
        %2269 = vmatpush2.msra.mxu0 0.0
        %2270 = vmatprep.subr.mxu0 0.0
        %2271 = vmatpush2.msra.mxu0 0.0
        %2272 = vmatprep.subr.mxu0 0.0
        %2273 = vmatpush2.msra.mxu0 0.0
        %2274 = vmatprep.subr.mxu0 0.0
        %2275 = vmatpush2.msra.mxu0 0.0
        %2276 = vmatprep.subr.mxu0 0.0
        %2277 = vmatpush2.msra.mxu0 0.0
        %2278 = vmatprep.subr.mxu0 0.0
        %2279 = vmatpush2.msra.mxu0 0.0
        %2280 = vmatprep.mubr.f32.mxu0 0.0
        %2281 = vmatmul.mubr.f32.gmra.mxu0 %v2211
        %v2282 = vpop.f32.mrf.mxu0
        %v2283 = vadd.f32 %v2120, %v2282
        %v2284 = vpop.f32.mrf.mxu0
        %2285 = vmatprep.mubr.f32.mxu0 0.0
        %2286 = vmatmul.mubr.f32.gmra.mxu0 %v2214
        %v2287 = vpop.f32.mrf.mxu0
        %v2288 = vadd.f32 %v2125, %v2287
        %v2289 = vpop.f32.mrf.mxu0
        %2290 = vdwg.mxu0
        %v2291 = vmax.f32 %v2283, 0.0
        %v2292 = vmax.f32 %v2288, 0.0
        %v2294 = vsel %vm871, %v2291, 0
        %v2297 = vsel %vm871, %v2292, 0
        %2299 = vmatprep.subr.mxu0 0.0
        %2300 = vmatpush1.msra.mxu0 0.0
        %2301 = vmatprep.subr.mxu0 0.0
        %2302 = vmatpush1.msra.mxu0 0.0
        %2303 = vmatprep.subr.mxu0 0.0
        %2304 = vmatpush1.msra.mxu0 0.0
        %2305 = vmatprep.subr.mxu0 0.0
        %2306 = vmatpush1.msra.mxu0 0.0
        %2307 = vmatprep.subr.mxu0 0.0
        %2308 = vmatpush1.msra.mxu0 0.0
        %2309 = vmatprep.subr.mxu0 0.0
        %2310 = vmatpush1.msra.mxu0 0.0
        %2311 = vmatprep.subr.mxu0 0.0
        %2312 = vmatpush1.msra.mxu0 0.0
        %2313 = vmatprep.subr.mxu0 0.0
        %2314 = vmatpush1.msra.mxu0 0.0
        %2315 = vmatprep.subr.mxu0 0.0
        %2316 = vmatpush1.msra.mxu0 0.0
        %2317 = vmatprep.subr.mxu0 0.0
        %2318 = vmatpush1.msra.mxu0 0.0
        %2319 = vmatprep.subr.mxu0 0.0
        %2320 = vmatpush1.msra.mxu0 0.0
        %2321 = vmatprep.subr.mxu0 0.0
        %2322 = vmatpush1.msra.mxu0 0.0
        %2323 = vmatprep.subr.mxu0 0.0
        %2324 = vmatpush1.msra.mxu0 0.0
        %2325 = vmatprep.subr.mxu0 0.0
        %2326 = vmatpush1.msra.mxu0 0.0
        %2327 = vmatprep.subr.mxu0 0.0
        %2328 = vmatpush1.msra.mxu0 0.0
        %2329 = vmatprep.subr.mxu0 0.0
        %2330 = vmatpush1.msra.mxu0 %v1110
        %2331 = vmatprep.subr.mxu0 0.0
        %2332 = vmatpush2.msra.mxu0 0.0
        %2333 = vmatprep.subr.mxu0 0.0
        %2334 = vmatpush2.msra.mxu0 0.0
        %2335 = vmatprep.subr.mxu0 0.0
        %2336 = vmatpush2.msra.mxu0 0.0
        %2337 = vmatprep.subr.mxu0 0.0
        %2338 = vmatpush2.msra.mxu0 0.0
        %2339 = vmatprep.subr.mxu0 0.0
        %2340 = vmatpush2.msra.mxu0 0.0
        %2341 = vmatprep.subr.mxu0 0.0
        %2342 = vmatpush2.msra.mxu0 0.0
        %2343 = vmatprep.subr.mxu0 0.0
        %2344 = vmatpush2.msra.mxu0 0.0
        %2345 = vmatprep.subr.mxu0 0.0
        %2346 = vmatpush2.msra.mxu0 0.0
        %2347 = vmatprep.subr.mxu0 0.0
        %2348 = vmatpush2.msra.mxu0 0.0
        %2349 = vmatprep.subr.mxu0 0.0
        %2350 = vmatpush2.msra.mxu0 0.0
        %2351 = vmatprep.subr.mxu0 0.0
        %2352 = vmatpush2.msra.mxu0 0.0
        %2353 = vmatprep.subr.mxu0 0.0
        %2354 = vmatpush2.msra.mxu0 0.0
        %2355 = vmatprep.subr.mxu0 0.0
        %2356 = vmatpush2.msra.mxu0 0.0
        %2357 = vmatprep.subr.mxu0 0.0
        %2358 = vmatpush2.msra.mxu0 0.0
        %2359 = vmatprep.subr.mxu0 0.0
        %2360 = vmatpush2.msra.mxu0 0.0
        %2361 = vmatprep.subr.mxu0 0.0
        %2362 = vmatpush2.msra.mxu0 0.0
        %2363 = vmatprep.mubr.f32.mxu0 0.0
        %2364 = vmatmul.mubr.f32.gmra.mxu0 %v2294
        %v2365 = vpop.f32.mrf.mxu0
        %v2366 = vadd.f32 0.0, %v2365
        %v2367 = vpop.f32.mrf.mxu0
        %2368 = vmatprep.mubr.f32.mxu0 0.0
        %2369 = vmatmul.mubr.f32.gmra.mxu0 %v2297
        %v2370 = vpop.f32.mrf.mxu0
        %v2371 = vadd.f32 0.0, %v2370
        %v2372 = vpop.f32.mrf.mxu0
        %2373 = vdwg.mxu0
        %v2375 = vsel %vm871, %v2208, 0
        %v2378 = vsel %vm871, %v2209, 0
        %2380 = vmatprep.subr.mxu0 0.0
        %2381 = vmatpush1.msra.mxu0 0.0
        %2382 = vmatprep.subr.mxu0 0.0
        %2383 = vmatpush1.msra.mxu0 0.0
        %2384 = vmatprep.subr.mxu0 0.0
        %2385 = vmatpush1.msra.mxu0 0.0
        %2386 = vmatprep.subr.mxu0 0.0
        %2387 = vmatpush1.msra.mxu0 0.0
        %2388 = vmatprep.subr.mxu0 0.0
        %2389 = vmatpush1.msra.mxu0 0.0
        %2390 = vmatprep.subr.mxu0 0.0
        %2391 = vmatpush1.msra.mxu0 0.0
        %2392 = vmatprep.subr.mxu0 0.0
        %2393 = vmatpush1.msra.mxu0 0.0
        %2394 = vmatprep.subr.mxu0 0.0
        %2395 = vmatpush1.msra.mxu0 0.0
        %2396 = vmatprep.subr.mxu0 0.0
        %2397 = vmatpush1.msra.mxu0 0.0
        %2398 = vmatprep.subr.mxu0 0.0
        %2399 = vmatpush1.msra.mxu0 0.0
        %2400 = vmatprep.subr.mxu0 0.0
        %2401 = vmatpush1.msra.mxu0 0.0
        %2402 = vmatprep.subr.mxu0 0.0
        %2403 = vmatpush1.msra.mxu0 0.0
        %2404 = vmatprep.subr.mxu0 0.0
        %2405 = vmatpush1.msra.mxu0 0.0
        %2406 = vmatprep.subr.mxu0 0.0
        %2407 = vmatpush1.msra.mxu0 0.0
        %2408 = vmatprep.subr.mxu0 0.0
        %2409 = vmatpush1.msra.mxu0 0.0
        %2410 = vmatprep.subr.mxu0 0.0
        %2411 = vmatpush1.msra.mxu0 %v1194
        %2412 = vmatprep.subr.mxu0 0.0
        %2413 = vmatpush2.msra.mxu0 0.0
        %2414 = vmatprep.subr.mxu0 0.0
        %2415 = vmatpush2.msra.mxu0 0.0
        %2416 = vmatprep.subr.mxu0 0.0
        %2417 = vmatpush2.msra.mxu0 0.0
        %2418 = vmatprep.subr.mxu0 0.0
        %2419 = vmatpush2.msra.mxu0 0.0
        %2420 = vmatprep.subr.mxu0 0.0
        %2421 = vmatpush2.msra.mxu0 0.0
        %2422 = vmatprep.subr.mxu0 0.0
        %2423 = vmatpush2.msra.mxu0 0.0
        %2424 = vmatprep.subr.mxu0 0.0
        %2425 = vmatpush2.msra.mxu0 0.0
        %2426 = vmatprep.subr.mxu0 0.0
        %2427 = vmatpush2.msra.mxu0 0.0
        %2428 = vmatprep.subr.mxu0 0.0
        %2429 = vmatpush2.msra.mxu0 0.0
        %2430 = vmatprep.subr.mxu0 0.0
        %2431 = vmatpush2.msra.mxu0 0.0
        %2432 = vmatprep.subr.mxu0 0.0
        %2433 = vmatpush2.msra.mxu0 0.0
        %2434 = vmatprep.subr.mxu0 0.0
        %2435 = vmatpush2.msra.mxu0 0.0
        %2436 = vmatprep.subr.mxu0 0.0
        %2437 = vmatpush2.msra.mxu0 0.0
        %2438 = vmatprep.subr.mxu0 0.0
        %2439 = vmatpush2.msra.mxu0 0.0
        %2440 = vmatprep.subr.mxu0 0.0
        %2441 = vmatpush2.msra.mxu0 0.0
        %2442 = vmatprep.subr.mxu0 0.0
        %2443 = vmatpush2.msra.mxu0 0.0
        %2444 = vmatprep.mubr.f32.mxu0 0.0
        %2445 = vmatmul.mubr.f32.gmra.mxu0 %v2375
        %v2446 = vpop.f32.mrf.mxu0
        %v2447 = vadd.f32 %v2366, %v2446
        %v2448 = vpop.f32.mrf.mxu0
        %2449 = vmatprep.mubr.f32.mxu0 0.0
        %2450 = vmatmul.mubr.f32.gmra.mxu0 %v2378
        %v2451 = vpop.f32.mrf.mxu0
        %v2452 = vadd.f32 %v2371, %v2451
        %v2453 = vpop.f32.mrf.mxu0
        %2454 = vdwg.mxu0
        %2455 = vst.msk [vmem:[#allocation4] sm:$0xff] %vm1271, 0.0
        %2456 = vst.msk [vmem:[#allocation4 + $0x8] sm:$0xff] %vm1271, 0.0
        %2459 = vrot.lane.b32.xlu0 %v2447, 1
        %v2460 = vpop.permute.xlu0 %2459
        %2461 = vrot.lane.b32.xlu0 %v2452, 1
        %v2462 = vpop.permute.xlu0 %2461
        %2465 = vst.msk [vmem:[#allocation4] sm:$0xff] %vm1282, %v2460
        %2466 = vst.msk [vmem:[#allocation4 + $0x8] sm:$0xff] %vm1282, %v2462
        %v2467 = vld [vmem:[#allocation4] sm:$0xff]
        %v2468 = vld [vmem:[#allocation4 + $0x8] sm:$0xff]
        %2469 = vst.msk [vmem:[#allocation5] sm:$0xff] %vm1287, %v2467
        %2470 = vst.msk [vmem:[#allocation5 + $0x8] sm:$0xff] %vm1287, %v2468
        %v2471 = vld [vmem:[#allocation4] sm:$0xff]
        %v2472 = vld [vmem:[#allocation4 + $0x8] sm:$0xff]
        %2475 = vrot.lane.b32.xlu0 %v2471, 127
        %v2476 = vpop.permute.xlu0 %2475
        %2477 = vrot.lane.b32.xlu0 %v2472, 127
        %v2478 = vpop.permute.xlu0 %2477
        %2481 = vst.msk [vmem:[#allocation5 + $0x10] sm:$0xff] %vm1287, %v2476
        %2482 = vst.msk [vmem:[#allocation5 + $0x18] sm:$0xff] %vm1287, %v2478
        %v2483 = vld [vmem:[#allocation4] sm:$0xff]
        %v2484 = vld [vmem:[#allocation4 + $0x8] sm:$0xff]
        %2487 = vrot.lane.b32.xlu0 %v2483, 126
        %v2488 = vpop.permute.xlu0 %2487
        %2489 = vrot.lane.b32.xlu0 %v2484, 126
        %v2490 = vpop.permute.xlu0 %2489
        %2493 = vst.msk [vmem:[#allocation5 + $0x20] sm:$0xff] %vm1287, %v2488
        %2494 = vst.msk [vmem:[#allocation5 + $0x28] sm:$0xff] %vm1287, %v2490
        %v2495 = vld [vmem:[#allocation4] sm:$0xff]
        %v2496 = vld [vmem:[#allocation4 + $0x8] sm:$0xff]
        %2499 = vrot.lane.b32.xlu0 %v2495, 125
        %v2500 = vpop.permute.xlu0 %2499
        %2501 = vrot.lane.b32.xlu0 %v2496, 125
        %v2502 = vpop.permute.xlu0 %2501
        %2505 = vst.msk [vmem:[#allocation5 + $0x30] sm:$0xff] %vm1287, %v2500
        %2506 = vst.msk [vmem:[#allocation5 + $0x38] sm:$0xff] %vm1287, %v2502
        %v2507 = vld [vmem:[%s8] sm:$0xff]
        %v2508 = vld [vmem:[%s8 + $0x8] sm:$0xff]
        %v2509 = vld [vmem:[%s8 + $0x10] sm:$0xff]
        %v2510 = vld [vmem:[%s8 + $0x18] sm:$0xff]
        %v2511 = vld [vmem:[#allocation5] sm:$0xff]
        %v2512 = vld [vmem:[#allocation5 + $0x8] sm:$0xff]
        %v2513 = vld [vmem:[#allocation5 + $0x10] sm:$0xff]
        %v2514 = vld [vmem:[#allocation5 + $0x18] sm:$0xff]
        %v2515 = vld [vmem:[#allocation5 + $0x20] sm:$0xff]
        %v2516 = vld [vmem:[#allocation5 + $0x28] sm:$0xff]
        %v2517 = vld [vmem:[%s9] sm:$0xff]
        %v2518 = vld [vmem:[%s9 + $0x8] sm:$0xff]
        %v2519 = vld [vmem:[%s9 + $0x10] sm:$0xff]
        %v2520 = vld [vmem:[%s9 + $0x18] sm:$0xff]
        %v2521 = vld [vmem:[#allocation5 + $0x30] sm:$0xff]
        %v2522 = vld [vmem:[#allocation5 + $0x38] sm:$0xff]
        %v2523 = vld [vmem:[%s10] sm:$0xff]
        %v2524 = vld [vmem:[%s10 + $0x8] sm:$0xff]
        %v2525 = vld [vmem:[%s10 + $0x10] sm:$0xff]
        %v2526 = vld [vmem:[%s10 + $0x18] sm:$0xff]
        %2528 = vset.pattern.permute.xlu0 0
        %2529 = vperm.xlu0 %2528, %v2523
        %v2530 = vpop.permute.xlu0 %2529
        %2533 = vset.pattern.permute.xlu0 0
        %2534 = vperm.xlu0 %2533, %v2524
        %v2535 = vpop.permute.xlu0 %2534
        %2538 = vset.pattern.permute.xlu0 0
        %2539 = vperm.xlu0 %2538, %v2525
        %v2540 = vpop.permute.xlu0 %2539
        %2543 = vset.pattern.permute.xlu0 0
        %2544 = vperm.xlu0 %2543, %v2526
        %v2545 = vpop.permute.xlu0 %2544
        %v2548 = vsel %vm934, %v2507, 0
        %v2551 = vsel %vm934, %v2508, 0
        %v2554 = vsel %vm934, %v2509, 0
        %v2557 = vsel %vm934, %v2510, 0
        %2559 = vmatprep.subr.mxu0 0.0
        %2560 = vmatpush1.msra.mxu0 0.0
        %2561 = vmatprep.subr.mxu0 0.0
        %2562 = vmatpush1.msra.mxu0 0.0
        %2563 = vmatprep.subr.mxu0 0.0
        %2564 = vmatpush1.msra.mxu0 0.0
        %2565 = vmatprep.subr.mxu0 0.0
        %2566 = vmatpush1.msra.mxu0 0.0
        %2567 = vmatprep.subr.mxu0 0.0
        %2568 = vmatpush1.msra.mxu0 0.0
        %2569 = vmatprep.subr.mxu0 0.0
        %2570 = vmatpush1.msra.mxu0 0.0
        %2571 = vmatprep.subr.mxu0 0.0
        %2572 = vmatpush1.msra.mxu0 0.0
        %2573 = vmatprep.subr.mxu0 0.0
        %2574 = vmatpush1.msra.mxu0 0.0
        %2575 = vmatprep.subr.mxu0 0.0
        %2576 = vmatpush1.msra.mxu0 0.0
        %2577 = vmatprep.subr.mxu0 0.0
        %2578 = vmatpush1.msra.mxu0 0.0
        %2579 = vmatprep.subr.mxu0 0.0
        %2580 = vmatpush1.msra.mxu0 %v2516
        %2581 = vmatprep.subr.mxu0 0.0
        %2582 = vmatpush1.msra.mxu0 %v2515
        %2583 = vmatprep.subr.mxu0 0.0
        %2584 = vmatpush1.msra.mxu0 %v2514
        %2585 = vmatprep.subr.mxu0 0.0
        %2586 = vmatpush1.msra.mxu0 %v2513
        %2587 = vmatprep.subr.mxu0 0.0
        %2588 = vmatpush1.msra.mxu0 %v2512
        %2589 = vmatprep.subr.mxu0 0.0
        %2590 = vmatpush1.msra.mxu0 %v2511
        %2591 = vmatprep.subr.mxu0 0.0
        %2592 = vmatpush2.msra.mxu0 0.0
        %2593 = vmatprep.subr.mxu0 0.0
        %2594 = vmatpush2.msra.mxu0 0.0
        %2595 = vmatprep.subr.mxu0 0.0
        %2596 = vmatpush2.msra.mxu0 0.0
        %2597 = vmatprep.subr.mxu0 0.0
        %2598 = vmatpush2.msra.mxu0 0.0
        %2599 = vmatprep.subr.mxu0 0.0
        %2600 = vmatpush2.msra.mxu0 0.0
        %2601 = vmatprep.subr.mxu0 0.0
        %2602 = vmatpush2.msra.mxu0 0.0
        %2603 = vmatprep.subr.mxu0 0.0
        %2604 = vmatpush2.msra.mxu0 0.0
        %2605 = vmatprep.subr.mxu0 0.0
        %2606 = vmatpush2.msra.mxu0 0.0
        %2607 = vmatprep.subr.mxu0 0.0
        %2608 = vmatpush2.msra.mxu0 0.0
        %2609 = vmatprep.subr.mxu0 0.0
        %2610 = vmatpush2.msra.mxu0 0.0
        %2611 = vmatprep.subr.mxu0 0.0
        %2612 = vmatpush2.msra.mxu0 0.0
        %2613 = vmatprep.subr.mxu0 0.0
        %2614 = vmatpush2.msra.mxu0 0.0
        %2615 = vmatprep.subr.mxu0 0.0
        %2616 = vmatpush2.msra.mxu0 0.0
        %2617 = vmatprep.subr.mxu0 0.0
        %2618 = vmatpush2.msra.mxu0 0.0
        %2619 = vmatprep.subr.mxu0 0.0
        %2620 = vmatpush2.msra.mxu0 0.0
        %2621 = vmatprep.subr.mxu0 0.0
        %2622 = vmatpush2.msra.mxu0 0.0
        %2623 = vmatprep.mubr.f32.mxu0 0.0
        %2624 = vmatmul.mubr.f32.gmra.mxu0 %v2548
        %v2625 = vpop.f32.mrf.mxu0
        %v2626 = vadd.f32 %v2530, %v2625
        %v2627 = vpop.f32.mrf.mxu0
        %2628 = vmatprep.mubr.f32.mxu0 0.0
        %2629 = vmatmul.mubr.f32.gmra.mxu0 %v2551
        %v2630 = vpop.f32.mrf.mxu0
        %v2631 = vadd.f32 %v2535, %v2630
        %v2632 = vpop.f32.mrf.mxu0
        %2633 = vmatprep.mubr.f32.mxu0 0.0
        %2634 = vmatmul.mubr.f32.gmra.mxu0 %v2554
        %v2635 = vpop.f32.mrf.mxu0
        %v2636 = vadd.f32 %v2540, %v2635
        %v2637 = vpop.f32.mrf.mxu0
        %2638 = vmatprep.mubr.f32.mxu0 0.0
        %2639 = vmatmul.mubr.f32.gmra.mxu0 %v2557
        %v2640 = vpop.f32.mrf.mxu0
        %v2641 = vadd.f32 %v2545, %v2640
        %v2642 = vpop.f32.mrf.mxu0
        %2643 = vdwg.mxu0
        %v2644 = vmax.f32 %v2626, 0.0
        %v2645 = vmax.f32 %v2631, 0.0
        %v2646 = vmax.f32 %v2636, 0.0
        %v2647 = vmax.f32 %v2641, 0.0
        %v2649 = vsel %vm1018, %v2517, 0
        %v2652 = vsel %vm1018, %v2518, 0
        %v2655 = vsel %vm1018, %v2519, 0
        %v2658 = vsel %vm1018, %v2520, 0
        %2660 = vmatprep.subr.mxu0 0.0
        %2661 = vmatpush1.msra.mxu0 0.0
        %2662 = vmatprep.subr.mxu0 0.0
        %2663 = vmatpush1.msra.mxu0 0.0
        %2664 = vmatprep.subr.mxu0 0.0
        %2665 = vmatpush1.msra.mxu0 0.0
        %2666 = vmatprep.subr.mxu0 0.0
        %2667 = vmatpush1.msra.mxu0 0.0
        %2668 = vmatprep.subr.mxu0 0.0
        %2669 = vmatpush1.msra.mxu0 0.0
        %2670 = vmatprep.subr.mxu0 0.0
        %2671 = vmatpush1.msra.mxu0 0.0
        %2672 = vmatprep.subr.mxu0 0.0
        %2673 = vmatpush1.msra.mxu0 0.0
        %2674 = vmatprep.subr.mxu0 0.0
        %2675 = vmatpush1.msra.mxu0 0.0
        %2676 = vmatprep.subr.mxu0 0.0
        %2677 = vmatpush1.msra.mxu0 %v2522
        %2678 = vmatprep.subr.mxu0 0.0
        %2679 = vmatpush1.msra.mxu0 %v2521
        %2680 = vmatprep.subr.mxu0 0.0
        %2681 = vmatpush1.msra.mxu0 %v2516
        %2682 = vmatprep.subr.mxu0 0.0
        %2683 = vmatpush1.msra.mxu0 %v2515
        %2684 = vmatprep.subr.mxu0 0.0
        %2685 = vmatpush1.msra.mxu0 %v2514
        %2686 = vmatprep.subr.mxu0 0.0
        %2687 = vmatpush1.msra.mxu0 %v2513
        %2688 = vmatprep.subr.mxu0 0.0
        %2689 = vmatpush1.msra.mxu0 %v2512
        %2690 = vmatprep.subr.mxu0 0.0
        %2691 = vmatpush1.msra.mxu0 %v2511
        %2692 = vmatprep.subr.mxu0 0.0
        %2693 = vmatpush2.msra.mxu0 0.0
        %2694 = vmatprep.subr.mxu0 0.0
        %2695 = vmatpush2.msra.mxu0 0.0
        %2696 = vmatprep.subr.mxu0 0.0
        %2697 = vmatpush2.msra.mxu0 0.0
        %2698 = vmatprep.subr.mxu0 0.0
        %2699 = vmatpush2.msra.mxu0 0.0
        %2700 = vmatprep.subr.mxu0 0.0
        %2701 = vmatpush2.msra.mxu0 0.0
        %2702 = vmatprep.subr.mxu0 0.0
        %2703 = vmatpush2.msra.mxu0 0.0
        %2704 = vmatprep.subr.mxu0 0.0
        %2705 = vmatpush2.msra.mxu0 0.0
        %2706 = vmatprep.subr.mxu0 0.0
        %2707 = vmatpush2.msra.mxu0 0.0
        %2708 = vmatprep.subr.mxu0 0.0
        %2709 = vmatpush2.msra.mxu0 0.0
        %2710 = vmatprep.subr.mxu0 0.0
        %2711 = vmatpush2.msra.mxu0 0.0
        %2712 = vmatprep.subr.mxu0 0.0
        %2713 = vmatpush2.msra.mxu0 0.0
        %2714 = vmatprep.subr.mxu0 0.0
        %2715 = vmatpush2.msra.mxu0 0.0
        %2716 = vmatprep.subr.mxu0 0.0
        %2717 = vmatpush2.msra.mxu0 0.0
        %2718 = vmatprep.subr.mxu0 0.0
        %2719 = vmatpush2.msra.mxu0 0.0
        %2720 = vmatprep.subr.mxu0 0.0
        %2721 = vmatpush2.msra.mxu0 0.0
        %2722 = vmatprep.subr.mxu0 0.0
        %2723 = vmatpush2.msra.mxu0 0.0
        %2724 = vmatprep.mubr.f32.mxu0 0.0
        %2725 = vmatmul.mubr.f32.gmra.mxu0 %v2649
        %v2726 = vpop.f32.mrf.mxu0
        %v2727 = vadd.f32 %v2530, %v2726
        %v2728 = vpop.f32.mrf.mxu0
        %2729 = vmatprep.mubr.f32.mxu0 0.0
        %2730 = vmatmul.mubr.f32.gmra.mxu0 %v2652
        %v2731 = vpop.f32.mrf.mxu0
        %v2732 = vadd.f32 %v2535, %v2731
        %v2733 = vpop.f32.mrf.mxu0
        %2734 = vmatprep.mubr.f32.mxu0 0.0
        %2735 = vmatmul.mubr.f32.gmra.mxu0 %v2655
        %v2736 = vpop.f32.mrf.mxu0
        %v2737 = vadd.f32 %v2540, %v2736
        %v2738 = vpop.f32.mrf.mxu0
        %2739 = vmatprep.mubr.f32.mxu0 0.0
        %2740 = vmatmul.mubr.f32.gmra.mxu0 %v2658
        %v2741 = vpop.f32.mrf.mxu0
        %v2742 = vadd.f32 %v2545, %v2741
        %v2743 = vpop.f32.mrf.mxu0
        %2744 = vdwg.mxu0
        %v2745 = vmax.f32 %v2727, 0.0
        %v2746 = vmax.f32 %v2732, 0.0
        %v2747 = vmax.f32 %v2737, 0.0
        %v2748 = vmax.f32 %v2742, 0.0
        %v2750 = vsel %vm1287, %v2745, 0
        %v2753 = vsel %vm1287, %v2746, 0
        %v2756 = vsel %vm1287, %v2747, 0
        %v2759 = vsel %vm1287, %v2748, 0
        %2761 = vmatprep.subr.mxu0 0.0
        %2762 = vmatpush1.msra.mxu0 0.0
        %2763 = vmatprep.subr.mxu0 0.0
        %2764 = vmatpush1.msra.mxu0 0.0
        %2765 = vmatprep.subr.mxu0 0.0
        %2766 = vmatpush1.msra.mxu0 0.0
        %2767 = vmatprep.subr.mxu0 0.0
        %2768 = vmatpush1.msra.mxu0 0.0
        %2769 = vmatprep.subr.mxu0 0.0
        %2770 = vmatpush1.msra.mxu0 0.0
        %2771 = vmatprep.subr.mxu0 0.0
        %2772 = vmatpush1.msra.mxu0 0.0
        %2773 = vmatprep.subr.mxu0 0.0
        %2774 = vmatpush1.msra.mxu0 0.0
        %2775 = vmatprep.subr.mxu0 0.0
        %2776 = vmatpush1.msra.mxu0 0.0
        %2777 = vmatprep.subr.mxu0 0.0
        %2778 = vmatpush1.msra.mxu0 0.0
        %2779 = vmatprep.subr.mxu0 0.0
        %2780 = vmatpush1.msra.mxu0 0.0
        %2781 = vmatprep.subr.mxu0 0.0
        %2782 = vmatpush1.msra.mxu0 0.0
        %2783 = vmatprep.subr.mxu0 0.0
        %2784 = vmatpush1.msra.mxu0 0.0
        %2785 = vmatprep.subr.mxu0 0.0
        %2786 = vmatpush1.msra.mxu0 0.0
        %2787 = vmatprep.subr.mxu0 0.0
        %2788 = vmatpush1.msra.mxu0 0.0
        %2789 = vmatprep.subr.mxu0 0.0
        %2790 = vmatpush1.msra.mxu0 0.0
        %2791 = vmatprep.subr.mxu0 0.0
        %2792 = vmatpush1.msra.mxu0 %v528
        %2793 = vmatprep.subr.mxu0 0.0
        %2794 = vmatpush2.msra.mxu0 0.0
        %2795 = vmatprep.subr.mxu0 0.0
        %2796 = vmatpush2.msra.mxu0 0.0
        %2797 = vmatprep.subr.mxu0 0.0
        %2798 = vmatpush2.msra.mxu0 0.0
        %2799 = vmatprep.subr.mxu0 0.0
        %2800 = vmatpush2.msra.mxu0 0.0
        %2801 = vmatprep.subr.mxu0 0.0
        %2802 = vmatpush2.msra.mxu0 0.0
        %2803 = vmatprep.subr.mxu0 0.0
        %2804 = vmatpush2.msra.mxu0 0.0
        %2805 = vmatprep.subr.mxu0 0.0
        %2806 = vmatpush2.msra.mxu0 0.0
        %2807 = vmatprep.subr.mxu0 0.0
        %2808 = vmatpush2.msra.mxu0 0.0
        %2809 = vmatprep.subr.mxu0 0.0
        %2810 = vmatpush2.msra.mxu0 0.0
        %2811 = vmatprep.subr.mxu0 0.0
        %2812 = vmatpush2.msra.mxu0 0.0
        %2813 = vmatprep.subr.mxu0 0.0
        %2814 = vmatpush2.msra.mxu0 0.0
        %2815 = vmatprep.subr.mxu0 0.0
        %2816 = vmatpush2.msra.mxu0 0.0
        %2817 = vmatprep.subr.mxu0 0.0
        %2818 = vmatpush2.msra.mxu0 0.0
        %2819 = vmatprep.subr.mxu0 0.0
        %2820 = vmatpush2.msra.mxu0 0.0
        %2821 = vmatprep.subr.mxu0 0.0
        %2822 = vmatpush2.msra.mxu0 0.0
        %2823 = vmatprep.subr.mxu0 0.0
        %2824 = vmatpush2.msra.mxu0 0.0
        %2825 = vmatprep.mubr.f32.mxu0 0.0
        %2826 = vmatmul.mubr.f32.gmra.mxu0 %v2750
        %v2827 = vpop.f32.mrf.mxu0
        %v2828 = vadd.f32 0.0, %v2827
        %v2829 = vpop.f32.mrf.mxu0
        %2830 = vmatprep.mubr.f32.mxu0 0.0
        %2831 = vmatmul.mubr.f32.gmra.mxu0 %v2753
        %v2832 = vpop.f32.mrf.mxu0
        %v2833 = vadd.f32 0.0, %v2832
        %v2834 = vpop.f32.mrf.mxu0
        %2835 = vmatprep.mubr.f32.mxu0 0.0
        %2836 = vmatmul.mubr.f32.gmra.mxu0 %v2756
        %v2837 = vpop.f32.mrf.mxu0
        %v2838 = vadd.f32 0.0, %v2837
        %v2839 = vpop.f32.mrf.mxu0
        %2840 = vmatprep.mubr.f32.mxu0 0.0
        %2841 = vmatmul.mubr.f32.gmra.mxu0 %v2759
        %v2842 = vpop.f32.mrf.mxu0
        %v2843 = vadd.f32 0.0, %v2842
        %v2844 = vpop.f32.mrf.mxu0
        %2845 = vdwg.mxu0
        %v2847 = vsel %vm1287, %v2644, 0
        %v2850 = vsel %vm1287, %v2645, 0
        %v2853 = vsel %vm1287, %v2646, 0
        %v2856 = vsel %vm1287, %v2647, 0
        %2858 = vmatprep.subr.mxu0 0.0
        %2859 = vmatpush1.msra.mxu0 0.0
        %2860 = vmatprep.subr.mxu0 0.0
        %2861 = vmatpush1.msra.mxu0 0.0
        %2862 = vmatprep.subr.mxu0 0.0
        %2863 = vmatpush1.msra.mxu0 0.0
        %2864 = vmatprep.subr.mxu0 0.0
        %2865 = vmatpush1.msra.mxu0 0.0
        %2866 = vmatprep.subr.mxu0 0.0
        %2867 = vmatpush1.msra.mxu0 0.0
        %2868 = vmatprep.subr.mxu0 0.0
        %2869 = vmatpush1.msra.mxu0 0.0
        %2870 = vmatprep.subr.mxu0 0.0
        %2871 = vmatpush1.msra.mxu0 0.0
        %2872 = vmatprep.subr.mxu0 0.0
        %2873 = vmatpush1.msra.mxu0 0.0
        %2874 = vmatprep.subr.mxu0 0.0
        %2875 = vmatpush1.msra.mxu0 0.0
        %2876 = vmatprep.subr.mxu0 0.0
        %2877 = vmatpush1.msra.mxu0 0.0
        %2878 = vmatprep.subr.mxu0 0.0
        %2879 = vmatpush1.msra.mxu0 0.0
        %2880 = vmatprep.subr.mxu0 0.0
        %2881 = vmatpush1.msra.mxu0 0.0
        %2882 = vmatprep.subr.mxu0 0.0
        %2883 = vmatpush1.msra.mxu0 0.0
        %2884 = vmatprep.subr.mxu0 0.0
        %2885 = vmatpush1.msra.mxu0 0.0
        %2886 = vmatprep.subr.mxu0 0.0
        %2887 = vmatpush1.msra.mxu0 0.0
        %2888 = vmatprep.subr.mxu0 0.0
        %2889 = vmatpush1.msra.mxu0 %v524
        %2890 = vmatprep.subr.mxu0 0.0
        %2891 = vmatpush2.msra.mxu0 0.0
        %2892 = vmatprep.subr.mxu0 0.0
        %2893 = vmatpush2.msra.mxu0 0.0
        %2894 = vmatprep.subr.mxu0 0.0
        %2895 = vmatpush2.msra.mxu0 0.0
        %2896 = vmatprep.subr.mxu0 0.0
        %2897 = vmatpush2.msra.mxu0 0.0
        %2898 = vmatprep.subr.mxu0 0.0
        %2899 = vmatpush2.msra.mxu0 0.0
        %2900 = vmatprep.subr.mxu0 0.0
        %2901 = vmatpush2.msra.mxu0 0.0
        %2902 = vmatprep.subr.mxu0 0.0
        %2903 = vmatpush2.msra.mxu0 0.0
        %2904 = vmatprep.subr.mxu0 0.0
        %2905 = vmatpush2.msra.mxu0 0.0
        %2906 = vmatprep.subr.mxu0 0.0
        %2907 = vmatpush2.msra.mxu0 0.0
        %2908 = vmatprep.subr.mxu0 0.0
        %2909 = vmatpush2.msra.mxu0 0.0
        %2910 = vmatprep.subr.mxu0 0.0
        %2911 = vmatpush2.msra.mxu0 0.0
        %2912 = vmatprep.subr.mxu0 0.0
        %2913 = vmatpush2.msra.mxu0 0.0
        %2914 = vmatprep.subr.mxu0 0.0
        %2915 = vmatpush2.msra.mxu0 0.0
        %2916 = vmatprep.subr.mxu0 0.0
        %2917 = vmatpush2.msra.mxu0 0.0
        %2918 = vmatprep.subr.mxu0 0.0
        %2919 = vmatpush2.msra.mxu0 0.0
        %2920 = vmatprep.subr.mxu0 0.0
        %2921 = vmatpush2.msra.mxu0 0.0
        %2922 = vmatprep.mubr.f32.mxu0 0.0
        %2923 = vmatmul.mubr.f32.gmra.mxu0 %v2847
        %v2924 = vpop.f32.mrf.mxu0
        %v2925 = vadd.f32 %v2828, %v2924
        %v2926 = vpop.f32.mrf.mxu0
        %2927 = vmatprep.mubr.f32.mxu0 0.0
        %2928 = vmatmul.mubr.f32.gmra.mxu0 %v2850
        %v2929 = vpop.f32.mrf.mxu0
        %v2930 = vadd.f32 %v2833, %v2929
        %v2931 = vpop.f32.mrf.mxu0
        %2932 = vmatprep.mubr.f32.mxu0 0.0
        %2933 = vmatmul.mubr.f32.gmra.mxu0 %v2853
        %v2934 = vpop.f32.mrf.mxu0
        %v2935 = vadd.f32 %v2838, %v2934
        %v2936 = vpop.f32.mrf.mxu0
        %2937 = vmatprep.mubr.f32.mxu0 0.0
        %2938 = vmatmul.mubr.f32.gmra.mxu0 %v2856
        %v2939 = vpop.f32.mrf.mxu0
        %v2940 = vadd.f32 %v2843, %v2939
        %v2941 = vpop.f32.mrf.mxu0
        %2942 = vdwg.mxu0
        %2943 = vst.msk [vmem:[#allocation6] sm:$0xff] %vm1762, 0.0
        %2944 = vst.msk [vmem:[#allocation6 + $0x8] sm:$0xff] %vm1762, 0.0
        %2945 = vst.msk [vmem:[#allocation6 + $0x10] sm:$0xff] %vm1762, 0.0
        %2946 = vst.msk [vmem:[#allocation6 + $0x18] sm:$0xff] %vm1762, 0.0
        %2951 = vrot.lane.b32.xlu0 %v2925, 3
        %v2952 = vpop.permute.xlu0 %2951
        %2953 = vrot.lane.b32.xlu0 %v2930, 3
        %v2954 = vpop.permute.xlu0 %2953
        %2955 = vrot.lane.b32.xlu0 %v2935, 3
        %v2956 = vpop.permute.xlu0 %2955
        %2957 = vrot.lane.b32.xlu0 %v2940, 3
        %v2958 = vpop.permute.xlu0 %2957
        %2963 = vst.msk [vmem:[#allocation6] sm:$0xff] %vm1783, %v2952
        %2964 = vst.msk [vmem:[#allocation6 + $0x8] sm:$0xff] %vm1783, %v2954
        %2965 = vst.msk [vmem:[#allocation6 + $0x10] sm:$0xff] %vm1783, %v2956
        %2966 = vst.msk [vmem:[#allocation6 + $0x18] sm:$0xff] %vm1783, %v2958
        %v2967 = vld [vmem:[#allocation6] sm:$0xff]
        %v2968 = vld [vmem:[#allocation6 + $0x8] sm:$0xff]
        %v2969 = vld [vmem:[#allocation6 + $0x10] sm:$0xff]
        %v2970 = vld [vmem:[#allocation6 + $0x18] sm:$0xff]
        %2971 = vst.msk [vmem:[#allocation7] sm:$0xff] %vm573, %v2967
        %2972 = vst.msk [vmem:[#allocation7 + $0x8] sm:$0xff] %vm573, %v2968
        %2973 = vst.msk [vmem:[#allocation7 + $0x10] sm:$0xff] %vm573, %v2969
        %2974 = vst.msk [vmem:[#allocation7 + $0x18] sm:$0xff] %vm573, %v2970
        %v2975 = vld [vmem:[#allocation6] sm:$0xff]
        %v2976 = vld [vmem:[#allocation6 + $0x8] sm:$0xff]
        %v2977 = vld [vmem:[#allocation6 + $0x10] sm:$0xff]
        %v2978 = vld [vmem:[#allocation6 + $0x18] sm:$0xff]
        %2983 = vrot.lane.b32.xlu0 %v2975, 127
        %v2984 = vpop.permute.xlu0 %2983
        %2985 = vrot.lane.b32.xlu0 %v2976, 127
        %v2986 = vpop.permute.xlu0 %2985
        %2987 = vrot.lane.b32.xlu0 %v2977, 127
        %v2988 = vpop.permute.xlu0 %2987
        %2989 = vrot.lane.b32.xlu0 %v2978, 127
        %v2990 = vpop.permute.xlu0 %2989
        %2995 = vst.msk [vmem:[#allocation7 + $0x20] sm:$0xff] %vm573, %v2984
        %2996 = vst.msk [vmem:[#allocation7 + $0x28] sm:$0xff] %vm573, %v2986
        %2997 = vst.msk [vmem:[#allocation7 + $0x30] sm:$0xff] %vm573, %v2988
        %2998 = vst.msk [vmem:[#allocation7 + $0x38] sm:$0xff] %vm573, %v2990
        %v2999 = vld [vmem:[#allocation6] sm:$0xff]
        %v3000 = vld [vmem:[#allocation6 + $0x8] sm:$0xff]
        %v3001 = vld [vmem:[#allocation6 + $0x10] sm:$0xff]
        %v3002 = vld [vmem:[#allocation6 + $0x18] sm:$0xff]
        %3007 = vrot.lane.b32.xlu0 %v2999, 126
        %v3008 = vpop.permute.xlu0 %3007
        %3009 = vrot.lane.b32.xlu0 %v3000, 126
        %v3010 = vpop.permute.xlu0 %3009
        %3011 = vrot.lane.b32.xlu0 %v3001, 126
        %v3012 = vpop.permute.xlu0 %3011
        %3013 = vrot.lane.b32.xlu0 %v3002, 126
        %v3014 = vpop.permute.xlu0 %3013
        %3019 = vst.msk [vmem:[#allocation7 + $0x40] sm:$0xff] %vm573, %v3008
        %3020 = vst.msk [vmem:[#allocation7 + $0x48] sm:$0xff] %vm573, %v3010
        %3021 = vst.msk [vmem:[#allocation7 + $0x50] sm:$0xff] %vm573, %v3012
        %3022 = vst.msk [vmem:[#allocation7 + $0x58] sm:$0xff] %vm573, %v3014
        %v3023 = vld [vmem:[#allocation6] sm:$0xff]
        %v3024 = vld [vmem:[#allocation6 + $0x8] sm:$0xff]
        %v3025 = vld [vmem:[#allocation6 + $0x10] sm:$0xff]
        %v3026 = vld [vmem:[#allocation6 + $0x18] sm:$0xff]
        %3031 = vrot.lane.b32.xlu0 %v3023, 125
        %v3032 = vpop.permute.xlu0 %3031
        %3033 = vrot.lane.b32.xlu0 %v3024, 125
        %v3034 = vpop.permute.xlu0 %3033
        %3035 = vrot.lane.b32.xlu0 %v3025, 125
        %v3036 = vpop.permute.xlu0 %3035
        %3037 = vrot.lane.b32.xlu0 %v3026, 125
        %v3038 = vpop.permute.xlu0 %3037
        %3043 = vst.msk [vmem:[#allocation7 + $0x60] sm:$0xff] %vm573, %v3032
        %3044 = vst.msk [vmem:[#allocation7 + $0x68] sm:$0xff] %vm573, %v3034
        %3045 = vst.msk [vmem:[#allocation7 + $0x70] sm:$0xff] %vm573, %v3036
        %3046 = vst.msk [vmem:[#allocation7 + $0x78] sm:$0xff] %vm573, %v3038
        %v3047 = vld [vmem:[#allocation6] sm:$0xff]
        %v3048 = vld [vmem:[#allocation6 + $0x8] sm:$0xff]
        %v3049 = vld [vmem:[#allocation6 + $0x10] sm:$0xff]
        %v3050 = vld [vmem:[#allocation6 + $0x18] sm:$0xff]
        %3055 = vrot.lane.b32.xlu0 %v3047, 124
        %v3056 = vpop.permute.xlu0 %3055
        %3057 = vrot.lane.b32.xlu0 %v3048, 124
        %v3058 = vpop.permute.xlu0 %3057
        %3059 = vrot.lane.b32.xlu0 %v3049, 124
        %v3060 = vpop.permute.xlu0 %3059
        %3061 = vrot.lane.b32.xlu0 %v3050, 124
        %v3062 = vpop.permute.xlu0 %3061
        %3067 = vst.msk [vmem:[#allocation7 + $0x80] sm:$0xff] %vm573, %v3056
        %3068 = vst.msk [vmem:[#allocation7 + $0x88] sm:$0xff] %vm573, %v3058
        %3069 = vst.msk [vmem:[#allocation7 + $0x90] sm:$0xff] %vm573, %v3060
        %3070 = vst.msk [vmem:[#allocation7 + $0x98] sm:$0xff] %vm573, %v3062
        %v3071 = vld [vmem:[#allocation6] sm:$0xff]
        %v3072 = vld [vmem:[#allocation6 + $0x8] sm:$0xff]
        %v3073 = vld [vmem:[#allocation6 + $0x10] sm:$0xff]
        %v3074 = vld [vmem:[#allocation6 + $0x18] sm:$0xff]
        %3079 = vrot.lane.b32.xlu0 %v3071, 123
        %v3080 = vpop.permute.xlu0 %3079
        %3081 = vrot.lane.b32.xlu0 %v3072, 123
        %v3082 = vpop.permute.xlu0 %3081
        %3083 = vrot.lane.b32.xlu0 %v3073, 123
        %v3084 = vpop.permute.xlu0 %3083
        %3085 = vrot.lane.b32.xlu0 %v3074, 123
        %v3086 = vpop.permute.xlu0 %3085
        %3091 = vst.msk [vmem:[#allocation7 + $0xa0] sm:$0xff] %vm573, %v3080
        %3092 = vst.msk [vmem:[#allocation7 + $0xa8] sm:$0xff] %vm573, %v3082
        %3093 = vst.msk [vmem:[#allocation7 + $0xb0] sm:$0xff] %vm573, %v3084
        %3094 = vst.msk [vmem:[#allocation7 + $0xb8] sm:$0xff] %vm573, %v3086
        %v3095 = vld [vmem:[#allocation6] sm:$0xff]
        %v3096 = vld [vmem:[#allocation6 + $0x8] sm:$0xff]
        %v3097 = vld [vmem:[#allocation6 + $0x10] sm:$0xff]
        %v3098 = vld [vmem:[#allocation6 + $0x18] sm:$0xff]
        %3103 = vrot.lane.b32.xlu0 %v3095, 122
        %v3104 = vpop.permute.xlu0 %3103
        %3105 = vrot.lane.b32.xlu0 %v3096, 122
        %v3106 = vpop.permute.xlu0 %3105
        %3107 = vrot.lane.b32.xlu0 %v3097, 122
        %v3108 = vpop.permute.xlu0 %3107
        %3109 = vrot.lane.b32.xlu0 %v3098, 122
        %v3110 = vpop.permute.xlu0 %3109
        %3115 = vst.msk [vmem:[#allocation7 + $0xc0] sm:$0xff] %vm573, %v3104
        %3116 = vst.msk [vmem:[#allocation7 + $0xc8] sm:$0xff] %vm573, %v3106
        %3117 = vst.msk [vmem:[#allocation7 + $0xd0] sm:$0xff] %vm573, %v3108
        %3118 = vst.msk [vmem:[#allocation7 + $0xd8] sm:$0xff] %vm573, %v3110
        %v3119 = vld [vmem:[%s11] sm:$0xff]
        %v3120 = vld [vmem:[%s11 + $0x8] sm:$0xff]
        %v3121 = vld [vmem:[#allocation7] sm:$0xff]
        %v3122 = vld [vmem:[#allocation7 + $0x8] sm:$0xff]
        %v3123 = vld [vmem:[#allocation7 + $0x10] sm:$0xff]
        %v3124 = vld [vmem:[#allocation7 + $0x18] sm:$0xff]
        %v3125 = vld [vmem:[#allocation7 + $0x20] sm:$0xff]
        %v3126 = vld [vmem:[#allocation7 + $0x28] sm:$0xff]
        %v3127 = vld [vmem:[#allocation7 + $0x30] sm:$0xff]
        %v3128 = vld [vmem:[#allocation7 + $0x38] sm:$0xff]
        %v3129 = vld [vmem:[#allocation7 + $0x40] sm:$0xff]
        %v3130 = vld [vmem:[#allocation7 + $0x48] sm:$0xff]
        %v3131 = vld [vmem:[#allocation7 + $0x50] sm:$0xff]
        %v3132 = vld [vmem:[#allocation7 + $0x58] sm:$0xff]
        %v3133 = vld [vmem:[#allocation7 + $0x60] sm:$0xff]
        %v3134 = vld [vmem:[#allocation7 + $0x68] sm:$0xff]
        %v3135 = vld [vmem:[#allocation7 + $0x70] sm:$0xff]
        %v3136 = vld [vmem:[#allocation7 + $0x78] sm:$0xff]
        %v3137 = vld [vmem:[#allocation7 + $0x80] sm:$0xff]
        %v3138 = vld [vmem:[#allocation7 + $0x88] sm:$0xff]
        %v3139 = vld [vmem:[#allocation7 + $0x90] sm:$0xff]
        %v3140 = vld [vmem:[#allocation7 + $0x98] sm:$0xff]
        %v3141 = vld [vmem:[#allocation7 + $0xa0] sm:$0xff]
        %v3142 = vld [vmem:[#allocation7 + $0xa8] sm:$0xff]
        %v3143 = vld [vmem:[#allocation7 + $0xb0] sm:$0xff]
        %v3144 = vld [vmem:[#allocation7 + $0xb8] sm:$0xff]
        %v3145 = vld [vmem:[#allocation7 + $0xc0] sm:$0xff]
        %v3146 = vld [vmem:[#allocation7 + $0xc8] sm:$0xff]
        %v3147 = vld [vmem:[#allocation7 + $0xd0] sm:$0xff]
        %v3148 = vld [vmem:[#allocation7 + $0xd8] sm:$0xff]
        %v3149 = vld [vmem:[%s12] sm:$0xff]
        %3151 = vset.pattern.permute.xlu0 0
        %3152 = vperm.xlu0 %3151, %v3149
        %v3153 = vpop.permute.xlu0 %3152
        %v3156 = vsel %vm1976, %v3120, 0
        %3158 = vmatprep.subr.mxu0 0.0
        %3159 = vmatpush1.msra.mxu0 %v3136
        %3160 = vmatprep.subr.mxu0 0.0
        %3161 = vmatpush1.msra.mxu0 %v3135
        %3162 = vmatprep.subr.mxu0 0.0
        %3163 = vmatpush1.msra.mxu0 %v3134
        %3164 = vmatprep.subr.mxu0 0.0
        %3165 = vmatpush1.msra.mxu0 %v3133
        %3166 = vmatprep.subr.mxu0 0.0
        %3167 = vmatpush1.msra.mxu0 %v3132
        %3168 = vmatprep.subr.mxu0 0.0
        %3169 = vmatpush1.msra.mxu0 %v3131
        %3170 = vmatprep.subr.mxu0 0.0
        %3171 = vmatpush1.msra.mxu0 %v3130
        %3172 = vmatprep.subr.mxu0 0.0
        %3173 = vmatpush1.msra.mxu0 %v3129
        %3174 = vmatprep.subr.mxu0 0.0
        %3175 = vmatpush1.msra.mxu0 %v3128
        %3176 = vmatprep.subr.mxu0 0.0
        %3177 = vmatpush1.msra.mxu0 %v3127
        %3178 = vmatprep.subr.mxu0 0.0
        %3179 = vmatpush1.msra.mxu0 %v3126
        %3180 = vmatprep.subr.mxu0 0.0
        %3181 = vmatpush1.msra.mxu0 %v3125
        %3182 = vmatprep.subr.mxu0 0.0
        %3183 = vmatpush1.msra.mxu0 %v3124
        %3184 = vmatprep.subr.mxu0 0.0
        %3185 = vmatpush1.msra.mxu0 %v3123
        %3186 = vmatprep.subr.mxu0 0.0
        %3187 = vmatpush1.msra.mxu0 %v3122
        %3188 = vmatprep.subr.mxu0 0.0
        %3189 = vmatpush1.msra.mxu0 %v3121
        %3190 = vmatprep.subr.mxu0 0.0
        %3191 = vmatpush2.msra.mxu0 0.0
        %3192 = vmatprep.subr.mxu0 0.0
        %3193 = vmatpush2.msra.mxu0 0.0
        %3194 = vmatprep.subr.mxu0 0.0
        %3195 = vmatpush2.msra.mxu0 0.0
        %3196 = vmatprep.subr.mxu0 0.0
        %3197 = vmatpush2.msra.mxu0 0.0
        %3198 = vmatprep.subr.mxu0 0.0
        %3199 = vmatpush2.msra.mxu0 %v3148
        %3200 = vmatprep.subr.mxu0 0.0
        %3201 = vmatpush2.msra.mxu0 %v3147
        %3202 = vmatprep.subr.mxu0 0.0
        %3203 = vmatpush2.msra.mxu0 %v3146
        %3204 = vmatprep.subr.mxu0 0.0
        %3205 = vmatpush2.msra.mxu0 %v3145
        %3206 = vmatprep.subr.mxu0 0.0
        %3207 = vmatpush2.msra.mxu0 %v3144
        %3208 = vmatprep.subr.mxu0 0.0
        %3209 = vmatpush2.msra.mxu0 %v3143
        %3210 = vmatprep.subr.mxu0 0.0
        %3211 = vmatpush2.msra.mxu0 %v3142
        %3212 = vmatprep.subr.mxu0 0.0
        %3213 = vmatpush2.msra.mxu0 %v3141
        %3214 = vmatprep.subr.mxu0 0.0
        %3215 = vmatpush2.msra.mxu0 %v3140
        %3216 = vmatprep.subr.mxu0 0.0
        %3217 = vmatpush2.msra.mxu0 %v3139
        %3218 = vmatprep.subr.mxu0 0.0
        %3219 = vmatpush2.msra.mxu0 %v3138
        %3220 = vmatprep.subr.mxu0 0.0
        %3221 = vmatpush2.msra.mxu0 %v3137
        %3222 = vmatprep.mubr.f32.mxu0 %v3156
        %3223 = vmatmul.mubr.f32.gmra.mxu0 %v3119
        %v3224 = vpop.f32.mrf.mxu0
        %v3225 = vadd.f32 %v3153, %v3224
        %v3226 = vpop.f32.mrf.mxu0
        %3227 = vdwg.mxu0
        %3228 = vst.msk [vmem:[%s501] sm:$0xff] %vm573, %v3225
        %s3229 = sand.u32 %s328, 1
        %s3230 = scalar_lea.sflag [#allocation9], %s3229
        %s3231 = sand.u32 %s328, 1
        %s3232 = smul.addr %s3231, 8
        %s3233 = scalar_lea.vmem [#allocation8], %s3232
        %s3234 = sand.u32 %s354, 1
        %s3235 = scalar_lea.sflag [#allocation11], %s3234
        %s3236 = sand.u32 %s354, 1
        %s3237 = smul.addr %s3236, 8
        %s3238 = scalar_lea.vmem [#allocation10], %s3237
        // Predicated region
        $region73: #{convae_mtce_forward.3} parent=71 // pred_check
          %p3239 = pneg %p338
        $region74: #{convae_mtce_forward.3} parent=71 // pred_check_branch
          %3241 = sbr.rel (%p3239) target = $region76
        $region75: #{convae_mtce_forward.3} parent=71 // pred_region
          %s3243 = ssub.s32 128, 128
          %3244 = vsyncadd %s3230, %s3243
          %s3245 = smul.addr %s32, 128
          %s3246 = scalar_lea.hbm %s13, %s3245
          %s3248 = sshll.u32 %s3233, 4
          %s3249 = int_to_ptr.vmem [resolvable:$true] %s3248
          %3251 = dma.vmem_to_hbm [thread:$0]  %s3249, 128, %s3246, %s3230
        $region76: #{convae_mtce_forward.3} parent=71 // pred_fallthru
          _
        // Predicated region
        $region77: #{convae_mtce_forward.3} parent=71 // pred_check
          %p3252 = pneg %p364
        $region78: #{convae_mtce_forward.3} parent=71 // pred_check_branch
          %3254 = sbr.rel (%p3252) target = $region80
        $region79: #{convae_mtce_forward.3} parent=71 // pred_region
          %s3256 = ssub.s32 128, 128
          %3257 = vsyncadd %s3235, %s3256
          %s3258 = smul.addr %s32, 128
          %s3259 = scalar_lea.hbm %s14, %s3258
          %s3261 = sshll.u32 %s3238, 4
          %s3262 = int_to_ptr.vmem [resolvable:$true] %s3261
          %3264 = dma.vmem_to_hbm [thread:$0]  %s3262, 128, %s3259, %s3235
        $region80: #{convae_mtce_forward.3} parent=71 // pred_fallthru
          _
      $region72: #{convae_mtce_forward.3} parent=5 // pred_fallthru
        _
      %p3265 = scmp.le.s32.totalorder 2, %s27
      // Predicated region
      $region81: #{convae_mtce_forward.3} parent=5 // pred_check
        %p3266 = pneg %p3265
      $region82: #{convae_mtce_forward.3} parent=5 // pred_check_branch
        %3268 = sbr.rel (%p3266) target = $region84
      $region83: #{convae_mtce_forward.3} parent=5 // pred_region
        %s3269 = ssub.s32 %s27, 2
        // Predicated region
        $region85: #{convae_mtce_forward.3} parent=83 // pred_check
          %p3270 = pneg %p344
        $region86: #{convae_mtce_forward.3} parent=83 // pred_check_branch
          %3272 = sbr.rel (%p3270) target = $region88
        $region87: #{convae_mtce_forward.3} parent=83 // pred_region
          %s3273 = sand.u32 %s329, 1
          %s3274 = scalar_lea.sflag [#allocation9], %s3273
          %s3275 = sand.u32 %s329, 1
          %s3276 = smul.addr %s3275, 8
          %s3277 = scalar_lea.vmem [#allocation8], %s3276
          %3278 = dma.done %s3274, 128
        $region88: #{convae_mtce_forward.3} parent=83 // pred_fallthru
          _
        // Predicated region
        $region89: #{convae_mtce_forward.3} parent=83 // pred_check
          %p3279 = pneg %p370
        $region90: #{convae_mtce_forward.3} parent=83 // pred_check_branch
          %3281 = sbr.rel (%p3279) target = $region92
        $region91: #{convae_mtce_forward.3} parent=83 // pred_region
          %s3282 = sand.u32 %s355, 1
          %s3283 = scalar_lea.sflag [#allocation11], %s3282
          %s3284 = sand.u32 %s355, 1
          %s3285 = smul.addr %s3284, 8
          %s3286 = scalar_lea.vmem [#allocation10], %s3285
          %3287 = dma.done %s3283, 128
        $region92: #{convae_mtce_forward.3} parent=83 // pred_fallthru
          _
      $region84: #{convae_mtce_forward.3} parent=5 // pred_fallthru
        _
    $region6: #{convae_mtce_forward.3} parent=1 // loop_footer
      %s31 = sadd.s32 1, %s27
    $region7: #{convae_mtce_forward.3} parent=1 // loop_footer_branch
      %26 = sbr.rel target = $region3
    $region8: #{convae_mtce_forward.3} parent=1 // loop_exit
      _
    %3288 = vsyncpa [#allocation9], 1
    %s3289 = scalar_lea.sflag [#allocation9], 1
    %3290 = vsyncpa %s3289, 1
    %3291 = vsyncpa [#allocation11], 1
    %s3292 = scalar_lea.sflag [#allocation11], 1
    %3293 = vsyncpa %s3292, 1

</llo_original>
